<compile_context>
chip_gen: v6e
topology: v6e:2x2x1
jax: 0.10.0
libtpu: 0.0.40
codegen_flags: <defaults>
</compile_context>

<pallas_src>
import math

import jax
import jax.numpy as jnp
from jax.experimental import pallas as pl
from jax.experimental.pallas import tpu as pltpu

# ---------------- config (scaled-down but structurally faithful DistilBERT) ----------------
VOCAB = 100
MAX_POS = 32
HIDDEN = 128
N_HEADS = 4
HEAD_DIM = HIDDEN // N_HEADS
FFN = 256
N_LAYERS = 2
N_CLASSES = 6
CLS_PAD = 128          # classifier output padded to a full 128-lane tile
B = 2
S = 8
BS = B * S
LN_EPS = 1e-12         # DistilBERT layernorm eps
MASK_NEG = -1e9        # additive attention-bias value for masked / cross-sequence keys

# ---- packed "vector" (bias / LayerNorm) table layout: one [N_VEC_ROWS, 3H] f32 array ----
VEC_W = 3 * HIDDEN
ROW_EMB_G, ROW_EMB_B, ROW_B_PRE, ROW_B_CLS = 0, 1, 2, 3
ROW_LAYER0 = 4
ROWS_PER_LAYER = 8     # [bqkv, bo, sa_g, sa_b, b1, b2, out_g, out_b]
N_VEC_ROWS = ROW_LAYER0 + N_LAYERS * ROWS_PER_LAYER


# ---------------- shared math helpers (pure f32 value math) ----------------
def _layernorm_f32(x, g, b):
    mean = jnp.mean(x, axis=-1, keepdims=True)
    xc = x - mean
    var = jnp.mean(xc * xc, axis=-1, keepdims=True)
    return xc * jax.lax.rsqrt(var + LN_EPS) * g + b


def _gelu_tanh(x):
    # TODO(synk): HF DistilBERT uses exact erf-GELU; tanh-approx (~1e-3 close) used here
    # to stay on guaranteed-lowering EUP ops.
    c = jnp.float32(0.7978845608028654)  # sqrt(2/pi)
    return 0.5 * x * (1.0 + jnp.tanh(c * (x + 0.044715 * x * x * x)))


# ---------------- fused whole-model kernel (single invocation, no grid) ----------------
def fused_model_kernel(
    x_emb_ref,      # [BS, H]  f32  pre-LN embeddings
    bias_ref,       # [BS, BS] f32  additive attention bias (0 keep / -1e9 mask)
    vecs_ref,       # [N_VEC_ROWS, 3H] f32  all biases + LN params
    wqkv_ref,       # [L, H, 3H]  bf16 (scale folded into Q columns)
    wo_ref,         # [L, H, H]   bf16
    w1_ref,         # [L, H, FFN] bf16
    w2_ref,         # [L, FFN, H] bf16
    whead_ref,      # [H, H + CLS_PAD] bf16  (pre_classifier | padded classifier)
    logits_ref,     # [B, CLS_PAD] f32
):
    def vec(row, width):
        return vecs_ref[row:row + 1, 0:width]          # [1, width] f32, static slice

    # --- embedding LayerNorm (token/pos gather done in the wrapper) ---
    x = _layernorm_f32(x_emb_ref[...], vec(ROW_EMB_G, HIDDEN), vec(ROW_EMB_B, HIDDEN))

    attn_bias = bias_ref[...]                          # hoisted: padding + cross-seq mask

    # --- encoder layers: Python-unrolled, weights VMEM-resident ---
    for l in range(N_LAYERS):
        r0 = ROW_LAYER0 + l * ROWS_PER_LAYER
        x_bf = x.astype(jnp.bfloat16)

        # fused Q|K|V projection: [BS, H] @ [H, 3H], bf16 -> f32 acc (Q pre-scaled)
        qkv = (jnp.dot(x_bf, wqkv_ref[l], preferred_element_type=jnp.float32)
               + vec(r0 + 0, 3 * HIDDEN))              # [BS, 3H] f32

        wo_l = wo_ref[l]                               # [H, H] bf16
        attn = jnp.zeros((BS, HIDDEN), jnp.float32)
        for h in range(N_HEADS):
            c0 = h * HEAD_DIM
            qh = qkv[:, c0:c0 + HEAD_DIM].astype(jnp.bfloat16)
            kh = qkv[:, HIDDEN + c0:HIDDEN + c0 + HEAD_DIM].astype(jnp.bfloat16)
            vh = qkv[:, 2 * HIDDEN + c0:2 * HIDDEN + c0 + HEAD_DIM].astype(jnp.bfloat16)

            # full [BS, BS] scores; cross-sequence pairs are killed by the additive bias
            s = jax.lax.dot_general(qh, kh, (((1,), (1,)), ((), ())),
                                    preferred_element_type=jnp.float32)
            s = s + attn_bias
            m = jnp.max(s, axis=-1, keepdims=True)
            p = jnp.exp(s - m)
            p = p / jnp.sum(p, axis=-1, keepdims=True)             # exact softmax
            ctx_h = jnp.dot(p.astype(jnp.bfloat16), vh,
                            preferred_element_type=jnp.float32)    # [BS, D]
            # fold the head concat into the out-projection (no 32-lane concat / stores)
            attn = attn + jnp.dot(ctx_h.astype(jnp.bfloat16),
                                  wo_l[c0:c0 + HEAD_DIM, :],
                                  preferred_element_type=jnp.float32)

        attn = attn + vec(r0 + 1, HIDDEN)                                      # bo
        xa = _layernorm_f32(attn + x, vec(r0 + 2, HIDDEN), vec(r0 + 3, HIDDEN))

        # FFN: Linear -> GELU -> Linear, residual + LayerNorm
        h1 = (jnp.dot(xa.astype(jnp.bfloat16), w1_ref[l],
                      preferred_element_type=jnp.float32) + vec(r0 + 4, FFN))
        h1 = _gelu_tanh(h1)
        h2 = (jnp.dot(h1.astype(jnp.bfloat16), w2_ref[l],
                      preferred_element_type=jnp.float32) + vec(r0 + 5, HIDDEN))
        x = _layernorm_f32(h2 + xa, vec(r0 + 6, HIDDEN), vec(r0 + 7, HIDDEN))

    # --- classifier head on the CLS token of each sequence ---
    pooled = jnp.concatenate([x[bi * S: bi * S + 1, :] for bi in range(B)], axis=0)  # [B, H]
    hp = (jnp.dot(pooled.astype(jnp.bfloat16), whead_ref[:, 0:HIDDEN],
                  preferred_element_type=jnp.float32) + vec(ROW_B_PRE, HIDDEN))
    hp = jnp.maximum(hp, 0.0)            # ReLU; TODO(synk): Dropout(0.3) omitted (inference)
    logits_ref[...] = (jnp.dot(hp.astype(jnp.bfloat16),
                               whead_ref[:, HIDDEN:HIDDEN + CLS_PAD],
                               preferred_element_type=jnp.float32)
                       + vec(ROW_B_CLS, CLS_PAD)).astype(logits_ref.dtype)


# ---------------- wrapper ----------------
def fused_forward(x_emb, attn_bias, p):
    vmem = pl.BlockSpec(memory_space=pltpu.MemorySpace.VMEM)
    logits_pad = pl.pallas_call(
        fused_model_kernel,
        out_shape=jax.ShapeDtypeStruct((B, CLS_PAD), jnp.float32),
        in_specs=[vmem] * 8,
        out_specs=vmem,
    )(x_emb, attn_bias, p["vecs"], p["wqkv"], p["wo"], p["w1"], p["w2"], p["whead"])
    return logits_pad[:, :N_CLASSES]


def _pack_params(params):
    """Consolidate operands: one f32 bias/LN table, layer-stacked bf16 matmul weights,
    packed head weights. Folds 1/sqrt(head_dim) into Wq / bq."""
    bf = jnp.bfloat16
    scale = jnp.float32(1.0 / math.sqrt(HEAD_DIM))
    L = params["layers"]

    def row(v):
        v = jnp.asarray(v, jnp.float32).reshape(-1)
        return jnp.pad(v, (0, VEC_W - v.shape[0]))

    vec_rows = [
        row(params["emb_ln_g"]), row(params["emb_ln_b"]),
        row(params["b_pre"]),
        row(jnp.pad(params["b_cls"], (0, CLS_PAD - N_CLASSES))),
    ]
    wqkv, wo, w1, w2 = [], [], [], []
    for lp in L:
        wqkv.append(jnp.concatenate([lp["wq"] * scale, lp["wk"], lp["wv"]], axis=1))
        wo.append(lp["wo"])
        w1.append(lp["w_ffn1"])
        w2.append(lp["w_ffn2"])
        vec_rows += [
            row(jnp.concatenate([lp["bq"] * scale, lp["bk"], lp["bv"]])),
            row(lp["bo"]),
            row(lp["sa_ln_g"]), row(lp["sa_ln_b"]),
            row(lp["b_ffn1"]), row(lp["b_ffn2"]),
            row(lp["out_ln_g"]), row(lp["out_ln_b"]),
        ]
    assert len(vec_rows) == N_VEC_ROWS

    whead = jnp.concatenate(
        [params["w_pre"],
         jnp.pad(params["w_cls"], ((0, 0), (0, CLS_PAD - N_CLASSES)))], axis=1)

    return dict(
        vecs=jnp.stack(vec_rows, axis=0),            # [20, 384] f32 (single small DMA)
        wqkv=jnp.stack(wqkv, 0).astype(bf),          # [L, H, 3H]
        wo=jnp.stack(wo, 0).astype(bf),              # [L, H, H]
        w1=jnp.stack(w1, 0).astype(bf),              # [L, H, FFN]
        w2=jnp.stack(w2, 0).astype(bf),              # [L, FFN, H]
        whead=whead.astype(bf),                      # [H, H + CLS_PAD]
    )


# ---------------- model params ----------------
def init_params(key):
    keys = iter(jax.random.split(key, 64))

    def nrm(shape, scale=0.02):
        return (scale * jax.random.normal(next(keys), shape)).astype(jnp.float32)

    def zeros(shape):
        return jnp.zeros(shape, jnp.float32)

    def ones(shape):
        return jnp.ones(shape, jnp.float32)

    params = {
        "word_emb": nrm((VOCAB, HIDDEN)),
        "pos_emb": nrm((MAX_POS, HIDDEN)),
        "emb_ln_g": ones((1, HIDDEN)),
        "emb_ln_b": zeros((1, HIDDEN)),
        "layers": [],
        "w_pre": nrm((HIDDEN, HIDDEN)),   # pre_classifier Linear(768,768) analogue
        "b_pre": zeros((HIDDEN,)),
        "w_cls": nrm((HIDDEN, N_CLASSES)),  # classifier Linear(768,6) analogue
        "b_cls": zeros((N_CLASSES,)),
    }
    for _ in range(N_LAYERS):
        params["layers"].append({
            "wq": nrm((HIDDEN, HIDDEN)), "bq": zeros((HIDDEN,)),
            "wk": nrm((HIDDEN, HIDDEN)), "bk": zeros((HIDDEN,)),
            "wv": nrm((HIDDEN, HIDDEN)), "bv": zeros((HIDDEN,)),
            "wo": nrm((HIDDEN, HIDDEN)), "bo": zeros((HIDDEN,)),
            "sa_ln_g": ones((1, HIDDEN)), "sa_ln_b": zeros((1, HIDDEN)),
            "w_ffn1": nrm((HIDDEN, FFN)), "b_ffn1": zeros((FFN,)),
            "w_ffn2": nrm((FFN, HIDDEN)), "b_ffn2": zeros((HIDDEN,)),
            "out_ln_g": ones((1, HIDDEN)), "out_ln_b": zeros((1, HIDDEN)),
        })
    return params


@jax.jit
def model_forward(params, input_ids, attention_mask):
    b, s = input_ids.shape
    # Embedding lookup (gather) stays as JAX glue; everything else is in the kernel.
    x_emb = (params["word_emb"][input_ids]
             + params["pos_emb"][jnp.arange(s)][None, :, :]).reshape(b * s, HIDDEN)
    # Hoisted additive attention bias: 0 where (same sequence AND key not padded), else -1e9.
    batch_ids = jnp.repeat(jnp.arange(b), s)
    same_seq = batch_ids[:, None] == batch_ids[None, :]
    key_ok = (attention_mask.reshape(b * s) > 0)[None, :]
    attn_bias = jnp.where(same_seq & key_ok, 0.0, MASK_NEG).astype(jnp.float32)
    packed = _pack_params(params)
    return fused_forward(x_emb, attn_bias, packed)


# ---------------- pure-JAX reference (mirrors the kernel's bf16/f32 precision) ----------------
def reference_forward(params, input_ids, attention_mask):
    bf, f32 = jnp.bfloat16, jnp.float32
    b, s = input_ids.shape
    x = (params["word_emb"][input_ids]
         + params["pos_emb"][jnp.arange(s)][None, :, :]).reshape(b * s, HIDDEN)
    x = _layernorm_f32(x, params["emb_ln_g"], params["emb_ln_b"])
    mask = attention_mask.astype(f32)
    scale = 1.0 / math.sqrt(HEAD_DIM)
    for lp in params["layers"]:
        xb = x.astype(bf)
        q = jnp.dot(xb, lp["wq"].astype(bf), preferred_element_type=f32) + lp["bq"]
        k = jnp.dot(xb, lp["wk"].astype(bf), preferred_element_type=f32) + lp["bk"]
        v = jnp.dot(xb, lp["wv"].astype(bf), preferred_element_type=f32) + lp["bv"]
        rows = []
        for bi in range(b):
            r0 = bi * s
            mb = mask[bi]
            heads = []
            for h in range(N_HEADS):
                c0 = h * HEAD_DIM
                qh = (q[r0:r0 + s, c0:c0 + HEAD_DIM] * scale).astype(bf)
                kh = k[r0:r0 + s, c0:c0 + HEAD_DIM].astype(bf)
                vh = v[r0:r0 + s, c0:c0 + HEAD_DIM].astype(bf)
                sc = jnp.dot(qh, kh.T, preferred_element_type=f32)
                sc = jnp.where(mb[None, :] > 0, sc, MASK_NEG)
                p = jax.nn.softmax(sc, axis=-1)
                heads.append(jnp.dot(p.astype(bf), vh, preferred_element_type=f32))
            rows.append(jnp.concatenate(heads, axis=1))
        ctx = jnp.concatenate(rows, axis=0)
        attn = jnp.dot(ctx.astype(bf), lp["wo"].astype(bf),
                       preferred_element_type=f32) + lp["bo"]
        x = _layernorm_f32(attn + x, lp["sa_ln_g"], lp["sa_ln_b"])
        h1 = jnp.dot(x.astype(bf), lp["w_ffn1"].astype(bf),
                     preferred_element_type=f32) + lp["b_ffn1"]
        h1 = _gelu_tanh(h1)
        h2 = jnp.dot(h1.astype(bf), lp["w_ffn2"].astype(bf),
                     preferred_element_type=f32) + lp["b_ffn2"]
        x = _layernorm_f32(h2 + x, lp["out_ln_g"], lp["out_ln_b"])
    pooled = x.reshape(b, s, HIDDEN)[:, 0, :]
    hp = jnp.dot(pooled.astype(bf), params["w_pre"].astype(bf),
                 preferred_element_type=f32) + params["b_pre"]
    hp = jnp.maximum(hp, 0.0)
    return jnp.dot(hp.astype(bf), params["w_cls"].astype(bf),
                   preferred_element_type=f32) + params["b_cls"]


if __name__ == "__main__":
    key = jax.random.PRNGKey(0)
    pkey, ikey = jax.random.split(key, 2)
    params = init_params(pkey)

    input_ids = jax.random.randint(ikey, (B, S), 0, VOCAB, dtype=jnp.int32)
    # mask out the last 2 tokens of each sequence as padding
    attention_mask = jnp.ones((B, S), jnp.int32).at[:, S - 2:].set(0)

    logits = model_forward(params, input_ids, attention_mask)
    logits = jax.block_until_ready(logits)
    assert logits.shape == (B, N_CLASSES)
    assert bool(jnp.all(jnp.isfinite(logits)))

    ref = reference_forward(params, input_ids, attention_mask)
    max_err = float(jnp.max(jnp.abs(logits - ref)))
    assert max_err < 2e-2, f"kernel vs reference mismatch: max abs err = {max_err}"

    print("KERNEL_OK")
</pallas_src>

<mosaic_0001>
module attributes {stable_mosaic.version = 11 : i64} {
  func.func @fused_model_kernel(%arg0: memref<16x128xf32, #tpu.memory_space<vmem>>, %arg1: memref<16x16xf32, #tpu.memory_space<vmem>>, %arg2: memref<20x384xf32, #tpu.memory_space<vmem>>, %arg3: memref<2x128x384xbf16, #tpu.memory_space<vmem>>, %arg4: memref<2x128x128xbf16, #tpu.memory_space<vmem>>, %arg5: memref<2x128x256xbf16, #tpu.memory_space<vmem>>, %arg6: memref<2x256x128xbf16, #tpu.memory_space<vmem>>, %arg7: memref<128x256xbf16, #tpu.memory_space<vmem>>, %arg8: memref<2x128xf32, #tpu.memory_space<vmem>>) attributes {dimension_semantics = [], scalar_prefetch = 0 : i64, scratch_operands = 0 : i64, tpu.core_type = #tpu.core_type<tc>} {
    %c0 = arith.constant 0 : index
    %c0_0 = arith.constant 0 : index
    %0 = vector.load %arg0[%c0, %c0_0] : memref<16x128xf32, #tpu.memory_space<vmem>>, vector<16x128xf32>
    %c0_1 = arith.constant 0 : index
    %c0_2 = arith.constant 0 : index
    %1 = vector.load %arg2[%c0_1, %c0_2] : memref<20x384xf32, #tpu.memory_space<vmem>>, vector<1x128xf32>
    %c1 = arith.constant 1 : index
    %c0_3 = arith.constant 0 : index
    %2 = vector.load %arg2[%c1, %c0_3] : memref<20x384xf32, #tpu.memory_space<vmem>>, vector<1x128xf32>
    %cst = arith.constant dense<0.000000e+00> : vector<16xf32>
    %3 = vector.multi_reduction <add>, %0, %cst [1] : vector<16x128xf32> to vector<16xf32>
    %4 = vector.shape_cast %3 : vector<16xf32> to vector<16x1xf32>
    %cst_4 = arith.constant 1.280000e+02 : f32
    %5 = vector.broadcast %cst_4 : f32 to vector<16x1xf32>
    %6 = arith.divf %4, %5 : vector<16x1xf32>
    %7 = vector.broadcast %6 : vector<16x1xf32> to vector<16x128xf32>
    %8 = arith.subf %0, %7 : vector<16x128xf32>
    %9 = arith.mulf %8, %8 : vector<16x128xf32>
    %cst_5 = arith.constant dense<0.000000e+00> : vector<16xf32>
    %10 = vector.multi_reduction <add>, %9, %cst_5 [1] : vector<16x128xf32> to vector<16xf32>
    %11 = vector.shape_cast %10 : vector<16xf32> to vector<16x1xf32>
    %cst_6 = arith.constant 1.280000e+02 : f32
    %12 = vector.broadcast %cst_6 : f32 to vector<16x1xf32>
    %13 = arith.divf %11, %12 : vector<16x1xf32>
    %cst_7 = arith.constant 9.99999996E-13 : f32
    %14 = vector.broadcast %cst_7 : f32 to vector<16x1xf32>
    %15 = arith.addf %13, %14 : vector<16x1xf32>
    %16 = math.rsqrt %15 : vector<16x1xf32>
    %17 = vector.broadcast %16 : vector<16x1xf32> to vector<16x128xf32>
    %18 = arith.mulf %8, %17 : vector<16x128xf32>
    %19 = vector.broadcast %1 : vector<1x128xf32> to vector<16x128xf32>
    %20 = arith.mulf %18, %19 : vector<16x128xf32>
    %21 = vector.broadcast %2 : vector<1x128xf32> to vector<16x128xf32>
    %22 = arith.addf %20, %21 : vector<16x128xf32>
    %c0_8 = arith.constant 0 : index
    %c0_9 = arith.constant 0 : index
    %23 = vector.load %arg1[%c0_8, %c0_9] : memref<16x16xf32, #tpu.memory_space<vmem>>, vector<16x16xf32>
    %24 = arith.truncf %22 : vector<16x128xf32> to vector<16x128xbf16>
    %c0_10 = arith.constant 0 : index
    %c0_11 = arith.constant 0 : index
    %c0_12 = arith.constant 0 : index
    %25 = vector.load %arg3[%c0_10, %c0_11, %c0_12] : memref<2x128x384xbf16, #tpu.memory_space<vmem>>, vector<1x128x384xbf16>
    %26 = vector.shape_cast %25 : vector<1x128x384xbf16> to vector<128x384xbf16>
    %cst_13 = arith.constant dense<0.000000e+00> : vector<16x384xf32>
    %27 = tpu.matmul %24, %26, %cst_13 {dimension_numbers = #tpu.dot_dimension_numbers<[1], [0], [0], [1], [0, 0, 1, 1], [], []>} : vector<16x128xbf16>, vector<128x384xbf16>, vector<16x384xf32> -> vector<16x384xf32>
    %c4 = arith.constant 4 : index
    %c0_14 = arith.constant 0 : index
    %28 = vector.load %arg2[%c4, %c0_14] : memref<20x384xf32, #tpu.memory_space<vmem>>, vector<1x384xf32>
    %29 = vector.broadcast %28 : vector<1x384xf32> to vector<16x384xf32>
    %30 = arith.addf %27, %29 : vector<16x384xf32>
    %c0_15 = arith.constant 0 : index
    %c0_16 = arith.constant 0 : index
    %c0_17 = arith.constant 0 : index
    %31 = vector.load %arg4[%c0_15, %c0_16, %c0_17] : memref<2x128x128xbf16, #tpu.memory_space<vmem>>, vector<1x128x128xbf16>
    %32 = vector.shape_cast %31 : vector<1x128x128xbf16> to vector<128x128xbf16>
    %cst_18 = arith.constant 0.000000e+00 : f32
    %33 = vector.broadcast %cst_18 : f32 to vector<16x128xf32>
    %34 = vector.extract_strided_slice %30 {offsets = [0, 0], sizes = [16, 32], strides = [1, 1]} : vector<16x384xf32> to vector<16x32xf32>
    %35 = arith.truncf %34 : vector<16x32xf32> to vector<16x32xbf16>
    %36 = vector.extract_strided_slice %30 {offsets = [0, 128], sizes = [16, 32], strides = [1, 1]} : vector<16x384xf32> to vector<16x32xf32>
    %37 = arith.truncf %36 : vector<16x32xf32> to vector<16x32xbf16>
    %38 = vector.extract_strided_slice %30 {offsets = [0, 256], sizes = [16, 32], strides = [1, 1]} : vector<16x384xf32> to vector<16x32xf32>
    %39 = arith.truncf %38 : vector<16x32xf32> to vector<16x32xbf16>
    %cst_19 = arith.constant dense<0.000000e+00> : vector<16x16xf32>
    %40 = tpu.matmul %35, %37, %cst_19 {dimension_numbers = #tpu.dot_dimension_numbers<[1], [1], [0], [0], [0, 0, 1, 0], [], []>} : vector<16x32xbf16>, vector<16x32xbf16>, vector<16x16xf32> -> vector<16x16xf32>
    %41 = arith.addf %40, %23 : vector<16x16xf32>
    %cst_20 = arith.constant dense<0xFF800000> : vector<16xf32>
    %42 = vector.multi_reduction <maximumf>, %41, %cst_20 [1] : vector<16x16xf32> to vector<16xf32>
    %43 = vector.shape_cast %42 : vector<16xf32> to vector<16x1xf32>
    %44 = vector.broadcast %43 : vector<16x1xf32> to vector<16x16xf32>
    %45 = arith.subf %41, %44 : vector<16x16xf32>
    %46 = math.exp %45 : vector<16x16xf32>
    %cst_21 = arith.constant dense<0.000000e+00> : vector<16xf32>
    %47 = vector.multi_reduction <add>, %46, %cst_21 [1] : vector<16x16xf32> to vector<16xf32>
    %48 = vector.shape_cast %47 : vector<16xf32> to vector<16x1xf32>
    %49 = vector.broadcast %48 : vector<16x1xf32> to vector<16x16xf32>
    %50 = arith.divf %46, %49 : vector<16x16xf32>
    %51 = arith.truncf %50 : vector<16x16xf32> to vector<16x16xbf16>
    %cst_22 = arith.constant dense<0.000000e+00> : vector<16x32xf32>
    %52 = tpu.matmul %51, %39, %cst_22 {dimension_numbers = #tpu.dot_dimension_numbers<[1], [0], [0], [1], [0, 0, 1, 1], [], []>} : vector<16x16xbf16>, vector<16x32xbf16>, vector<16x32xf32> -> vector<16x32xf32>
    %53 = arith.truncf %52 : vector<16x32xf32> to vector<16x32xbf16>
    %54 = vector.extract_strided_slice %32 {offsets = [0, 0], sizes = [32, 128], strides = [1, 1]} : vector<128x128xbf16> to vector<32x128xbf16>
    %cst_23 = arith.constant dense<0.000000e+00> : vector<16x128xf32>
    %55 = tpu.matmul %53, %54, %cst_23 {dimension_numbers = #tpu.dot_dimension_numbers<[1], [0], [0], [1], [0, 0, 1, 1], [], []>} : vector<16x32xbf16>, vector<32x128xbf16>, vector<16x128xf32> -> vector<16x128xf32>
    %56 = arith.addf %33, %55 : vector<16x128xf32>
    %57 = vector.extract_strided_slice %30 {offsets = [0, 32], sizes = [16, 32], strides = [1, 1]} : vector<16x384xf32> to vector<16x32xf32>
    %58 = arith.truncf %57 : vector<16x32xf32> to vector<16x32xbf16>
    %59 = vector.extract_strided_slice %30 {offsets = [0, 160], sizes = [16, 32], strides = [1, 1]} : vector<16x384xf32> to vector<16x32xf32>
    %60 = arith.truncf %59 : vector<16x32xf32> to vector<16x32xbf16>
    %61 = vector.extract_strided_slice %30 {offsets = [0, 288], sizes = [16, 32], strides = [1, 1]} : vector<16x384xf32> to vector<16x32xf32>
    %62 = arith.truncf %61 : vector<16x32xf32> to vector<16x32xbf16>
    %cst_24 = arith.constant dense<0.000000e+00> : vector<16x16xf32>
    %63 = tpu.matmul %58, %60, %cst_24 {dimension_numbers = #tpu.dot_dimension_numbers<[1], [1], [0], [0], [0, 0, 1, 0], [], []>} : vector<16x32xbf16>, vector<16x32xbf16>, vector<16x16xf32> -> vector<16x16xf32>
    %64 = arith.addf %63, %23 : vector<16x16xf32>
    %cst_25 = arith.constant dense<0xFF800000> : vector<16xf32>
    %65 = vector.multi_reduction <maximumf>, %64, %cst_25 [1] : vector<16x16xf32> to vector<16xf32>
    %66 = vector.shape_cast %65 : vector<16xf32> to vector<16x1xf32>
    %67 = vector.broadcast %66 : vector<16x1xf32> to vector<16x16xf32>
    %68 = arith.subf %64, %67 : vector<16x16xf32>
    %69 = math.exp %68 : vector<16x16xf32>
    %cst_26 = arith.constant dense<0.000000e+00> : vector<16xf32>
    %70 = vector.multi_reduction <add>, %69, %cst_26 [1] : vector<16x16xf32> to vector<16xf32>
    %71 = vector.shape_cast %70 : vector<16xf32> to vector<16x1xf32>
    %72 = vector.broadcast %71 : vector<16x1xf32> to vector<16x16xf32>
    %73 = arith.divf %69, %72 : vector<16x16xf32>
    %74 = arith.truncf %73 : vector<16x16xf32> to vector<16x16xbf16>
    %cst_27 = arith.constant dense<0.000000e+00> : vector<16x32xf32>
    %75 = tpu.matmul %74, %62, %cst_27 {dimension_numbers = #tpu.dot_dimension_numbers<[1], [0], [0], [1], [0, 0, 1, 1], [], []>} : vector<16x16xbf16>, vector<16x32xbf16>, vector<16x32xf32> -> vector<16x32xf32>
    %76 = arith.truncf %75 : vector<16x32xf32> to vector<16x32xbf16>
    %77 = vector.extract_strided_slice %32 {offsets = [32, 0], sizes = [32, 128], strides = [1, 1]} : vector<128x128xbf16> to vector<32x128xbf16>
    %cst_28 = arith.constant dense<0.000000e+00> : vector<16x128xf32>
    %78 = tpu.matmul %76, %77, %cst_28 {dimension_numbers = #tpu.dot_dimension_numbers<[1], [0], [0], [1], [0, 0, 1, 1], [], []>} : vector<16x32xbf16>, vector<32x128xbf16>, vector<16x128xf32> -> vector<16x128xf32>
    %79 = arith.addf %56, %78 : vector<16x128xf32>
    %80 = vector.extract_strided_slice %30 {offsets = [0, 64], sizes = [16, 32], strides = [1, 1]} : vector<16x384xf32> to vector<16x32xf32>
    %81 = arith.truncf %80 : vector<16x32xf32> to vector<16x32xbf16>
    %82 = vector.extract_strided_slice %30 {offsets = [0, 192], sizes = [16, 32], strides = [1, 1]} : vector<16x384xf32> to vector<16x32xf32>
    %83 = arith.truncf %82 : vector<16x32xf32> to vector<16x32xbf16>
    %84 = vector.extract_strided_slice %30 {offsets = [0, 320], sizes = [16, 32], strides = [1, 1]} : vector<16x384xf32> to vector<16x32xf32>
    %85 = arith.truncf %84 : vector<16x32xf32> to vector<16x32xbf16>
    %cst_29 = arith.constant dense<0.000000e+00> : vector<16x16xf32>
    %86 = tpu.matmul %81, %83, %cst_29 {dimension_numbers = #tpu.dot_dimension_numbers<[1], [1], [0], [0], [0, 0, 1, 0], [], []>} : vector<16x32xbf16>, vector<16x32xbf16>, vector<16x16xf32> -> vector<16x16xf32>
    %87 = arith.addf %86, %23 : vector<16x16xf32>
    %cst_30 = arith.constant dense<0xFF800000> : vector<16xf32>
    %88 = vector.multi_reduction <maximumf>, %87, %cst_30 [1] : vector<16x16xf32> to vector<16xf32>
    %89 = vector.shape_cast %88 : vector<16xf32> to vector<16x1xf32>
    %90 = vector.broadcast %89 : vector<16x1xf32> to vector<16x16xf32>
    %91 = arith.subf %87, %90 : vector<16x16xf32>
    %92 = math.exp %91 : vector<16x16xf32>
    %cst_31 = arith.constant dense<0.000000e+00> : vector<16xf32>
    %93 = vector.multi_reduction <add>, %92, %cst_31 [1] : vector<16x16xf32> to vector<16xf32>
    %94 = vector.shape_cast %93 : vector<16xf32> to vector<16x1xf32>
    %95 = vector.broadcast %94 : vector<16x1xf32> to vector<16x16xf32>
    %96 = arith.divf %92, %95 : vector<16x16xf32>
    %97 = arith.truncf %96 : vector<16x16xf32> to vector<16x16xbf16>
    %cst_32 = arith.constant dense<0.000000e+00> : vector<16x32xf32>
    %98 = tpu.matmul %97, %85, %cst_32 {dimension_numbers = #tpu.dot_dimension_numbers<[1], [0], [0], [1], [0, 0, 1, 1], [], []>} : vector<16x16xbf16>, vector<16x32xbf16>, vector<16x32xf32> -> vector<16x32xf32>
    %99 = arith.truncf %98 : vector<16x32xf32> to vector<16x32xbf16>
    %100 = vector.extract_strided_slice %32 {offsets = [64, 0], sizes = [32, 128], strides = [1, 1]} : vector<128x128xbf16> to vector<32x128xbf16>
    %cst_33 = arith.constant dense<0.000000e+00> : vector<16x128xf32>
    %101 = tpu.matmul %99, %100, %cst_33 {dimension_numbers = #tpu.dot_dimension_numbers<[1], [0], [0], [1], [0, 0, 1, 1], [], []>} : vector<16x32xbf16>, vector<32x128xbf16>, vector<16x128xf32> -> vector<16x128xf32>
    %102 = arith.addf %79, %101 : vector<16x128xf32>
    %103 = vector.extract_strided_slice %30 {offsets = [0, 96], sizes = [16, 32], strides = [1, 1]} : vector<16x384xf32> to vector<16x32xf32>
    %104 = arith.truncf %103 : vector<16x32xf32> to vector<16x32xbf16>
    %105 = vector.extract_strided_slice %30 {offsets = [0, 224], sizes = [16, 32], strides = [1, 1]} : vector<16x384xf32> to vector<16x32xf32>
    %106 = arith.truncf %105 : vector<16x32xf32> to vector<16x32xbf16>
    %107 = vector.extract_strided_slice %30 {offsets = [0, 352], sizes = [16, 32], strides = [1, 1]} : vector<16x384xf32> to vector<16x32xf32>
    %108 = arith.truncf %107 : vector<16x32xf32> to vector<16x32xbf16>
    %cst_34 = arith.constant dense<0.000000e+00> : vector<16x16xf32>
    %109 = tpu.matmul %104, %106, %cst_34 {dimension_numbers = #tpu.dot_dimension_numbers<[1], [1], [0], [0], [0, 0, 1, 0], [], []>} : vector<16x32xbf16>, vector<16x32xbf16>, vector<16x16xf32> -> vector<16x16xf32>
    %110 = arith.addf %109, %23 : vector<16x16xf32>
    %cst_35 = arith.constant dense<0xFF800000> : vector<16xf32>
    %111 = vector.multi_reduction <maximumf>, %110, %cst_35 [1] : vector<16x16xf32> to vector<16xf32>
    %112 = vector.shape_cast %111 : vector<16xf32> to vector<16x1xf32>
    %113 = vector.broadcast %112 : vector<16x1xf32> to vector<16x16xf32>
    %114 = arith.subf %110, %113 : vector<16x16xf32>
    %115 = math.exp %114 : vector<16x16xf32>
    %cst_36 = arith.constant dense<0.000000e+00> : vector<16xf32>
    %116 = vector.multi_reduction <add>, %115, %cst_36 [1] : vector<16x16xf32> to vector<16xf32>
    %117 = vector.shape_cast %116 : vector<16xf32> to vector<16x1xf32>
    %118 = vector.broadcast %117 : vector<16x1xf32> to vector<16x16xf32>
    %119 = arith.divf %115, %118 : vector<16x16xf32>
    %120 = arith.truncf %119 : vector<16x16xf32> to vector<16x16xbf16>
    %cst_37 = arith.constant dense<0.000000e+00> : vector<16x32xf32>
    %121 = tpu.matmul %120, %108, %cst_37 {dimension_numbers = #tpu.dot_dimension_numbers<[1], [0], [0], [1], [0, 0, 1, 1], [], []>} : vector<16x16xbf16>, vector<16x32xbf16>, vector<16x32xf32> -> vector<16x32xf32>
    %122 = arith.truncf %121 : vector<16x32xf32> to vector<16x32xbf16>
    %123 = vector.extract_strided_slice %32 {offsets = [96, 0], sizes = [32, 128], strides = [1, 1]} : vector<128x128xbf16> to vector<32x128xbf16>
    %cst_38 = arith.constant dense<0.000000e+00> : vector<16x128xf32>
    %124 = tpu.matmul %122, %123, %cst_38 {dimension_numbers = #tpu.dot_dimension_numbers<[1], [0], [0], [1], [0, 0, 1, 1], [], []>} : vector<16x32xbf16>, vector<32x128xbf16>, vector<16x128xf32> -> vector<16x128xf32>
    %125 = arith.addf %102, %124 : vector<16x128xf32>
    %c5 = arith.constant 5 : index
    %c0_39 = arith.constant 0 : index
    %126 = vector.load %arg2[%c5, %c0_39] : memref<20x384xf32, #tpu.memory_space<vmem>>, vector<1x128xf32>
    %127 = vector.broadcast %126 : vector<1x128xf32> to vector<16x128xf32>
    %128 = arith.addf %125, %127 : vector<16x128xf32>
    %129 = arith.addf %128, %22 : vector<16x128xf32>
    %c6 = arith.constant 6 : index
    %c0_40 = arith.constant 0 : index
    %130 = vector.load %arg2[%c6, %c0_40] : memref<20x384xf32, #tpu.memory_space<vmem>>, vector<1x128xf32>
    %c7 = arith.constant 7 : index
    %c0_41 = arith.constant 0 : index
    %131 = vector.load %arg2[%c7, %c0_41] : memref<20x384xf32, #tpu.memory_space<vmem>>, vector<1x128xf32>
    %cst_42 = arith.constant dense<0.000000e+00> : vector<16xf32>
    %132 = vector.multi_reduction <add>, %129, %cst_42 [1] : vector<16x128xf32> to vector<16xf32>
    %133 = vector.shape_cast %132 : vector<16xf32> to vector<16x1xf32>
    %cst_43 = arith.constant 1.280000e+02 : f32
    %134 = vector.broadcast %cst_43 : f32 to vector<16x1xf32>
    %135 = arith.divf %133, %134 : vector<16x1xf32>
    %136 = vector.broadcast %135 : vector<16x1xf32> to vector<16x128xf32>
    %137 = arith.subf %129, %136 : vector<16x128xf32>
    %138 = arith.mulf %137, %137 : vector<16x128xf32>
    %cst_44 = arith.constant dense<0.000000e+00> : vector<16xf32>
    %139 = vector.multi_reduction <add>, %138, %cst_44 [1] : vector<16x128xf32> to vector<16xf32>
    %140 = vector.shape_cast %139 : vector<16xf32> to vector<16x1xf32>
    %cst_45 = arith.constant 1.280000e+02 : f32
    %141 = vector.broadcast %cst_45 : f32 to vector<16x1xf32>
    %142 = arith.divf %140, %141 : vector<16x1xf32>
    %cst_46 = arith.constant 9.99999996E-13 : f32
    %143 = vector.broadcast %cst_46 : f32 to vector<16x1xf32>
    %144 = arith.addf %142, %143 : vector<16x1xf32>
    %145 = math.rsqrt %144 : vector<16x1xf32>
    %146 = vector.broadcast %145 : vector<16x1xf32> to vector<16x128xf32>
    %147 = arith.mulf %137, %146 : vector<16x128xf32>
    %148 = vector.broadcast %130 : vector<1x128xf32> to vector<16x128xf32>
    %149 = arith.mulf %147, %148 : vector<16x128xf32>
    %150 = vector.broadcast %131 : vector<1x128xf32> to vector<16x128xf32>
    %151 = arith.addf %149, %150 : vector<16x128xf32>
    %152 = arith.truncf %151 : vector<16x128xf32> to vector<16x128xbf16>
    %c0_47 = arith.constant 0 : index
    %c0_48 = arith.constant 0 : index
    %c0_49 = arith.constant 0 : index
    %153 = vector.load %arg5[%c0_47, %c0_48, %c0_49] : memref<2x128x256xbf16, #tpu.memory_space<vmem>>, vector<1x128x256xbf16>
    %154 = vector.shape_cast %153 : vector<1x128x256xbf16> to vector<128x256xbf16>
    %cst_50 = arith.constant dense<0.000000e+00> : vector<16x256xf32>
    %155 = tpu.matmul %152, %154, %cst_50 {dimension_numbers = #tpu.dot_dimension_numbers<[1], [0], [0], [1], [0, 0, 1, 1], [], []>} : vector<16x128xbf16>, vector<128x256xbf16>, vector<16x256xf32> -> vector<16x256xf32>
    %c8 = arith.constant 8 : index
    %c0_51 = arith.constant 0 : index
    %156 = vector.load %arg2[%c8, %c0_51] : memref<20x384xf32, #tpu.memory_space<vmem>>, vector<1x256xf32>
    %157 = vector.broadcast %156 : vector<1x256xf32> to vector<16x256xf32>
    %158 = arith.addf %155, %157 : vector<16x256xf32>
    %cst_52 = arith.constant 5.000000e-01 : f32
    %159 = vector.broadcast %cst_52 : f32 to vector<16x256xf32>
    %160 = arith.mulf %159, %158 : vector<16x256xf32>
    %cst_53 = arith.constant 4.471500e-02 : f32
    %161 = vector.broadcast %cst_53 : f32 to vector<16x256xf32>
    %162 = arith.mulf %161, %158 : vector<16x256xf32>
    %163 = arith.mulf %162, %158 : vector<16x256xf32>
    %164 = arith.mulf %163, %158 : vector<16x256xf32>
    %165 = arith.addf %158, %164 : vector<16x256xf32>
    %cst_54 = arith.constant 0.797884583 : f32
    %166 = vector.broadcast %cst_54 : f32 to vector<16x256xf32>
    %167 = arith.mulf %166, %165 : vector<16x256xf32>
    %168 = math.tanh %167 : vector<16x256xf32>
    %cst_55 = arith.constant 1.000000e+00 : f32
    %169 = vector.broadcast %cst_55 : f32 to vector<16x256xf32>
    %170 = arith.addf %169, %168 : vector<16x256xf32>
    %171 = arith.mulf %160, %170 : vector<16x256xf32>
    %172 = arith.truncf %171 : vector<16x256xf32> to vector<16x256xbf16>
    %c0_56 = arith.constant 0 : index
    %c0_57 = arith.constant 0 : index
    %c0_58 = arith.constant 0 : index
    %173 = vector.load %arg6[%c0_56, %c0_57, %c0_58] : memref<2x256x128xbf16, #tpu.memory_space<vmem>>, vector<1x256x128xbf16>
    %174 = vector.shape_cast %173 : vector<1x256x128xbf16> to vector<256x128xbf16>
    %cst_59 = arith.constant dense<0.000000e+00> : vector<16x128xf32>
    %175 = tpu.matmul %172, %174, %cst_59 {dimension_numbers = #tpu.dot_dimension_numbers<[1], [0], [0], [1], [0, 0, 1, 1], [], []>} : vector<16x256xbf16>, vector<256x128xbf16>, vector<16x128xf32> -> vector<16x128xf32>
    %c9 = arith.constant 9 : index
    %c0_60 = arith.constant 0 : index
    %176 = vector.load %arg2[%c9, %c0_60] : memref<20x384xf32, #tpu.memory_space<vmem>>, vector<1x128xf32>
    %177 = vector.broadcast %176 : vector<1x128xf32> to vector<16x128xf32>
    %178 = arith.addf %175, %177 : vector<16x128xf32>
    %179 = arith.addf %178, %151 : vector<16x128xf32>
    %c10 = arith.constant 10 : index
    %c0_61 = arith.constant 0 : index
    %180 = vector.load %arg2[%c10, %c0_61] : memref<20x384xf32, #tpu.memory_space<vmem>>, vector<1x128xf32>
    %c11 = arith.constant 11 : index
    %c0_62 = arith.constant 0 : index
    %181 = vector.load %arg2[%c11, %c0_62] : memref<20x384xf32, #tpu.memory_space<vmem>>, vector<1x128xf32>
    %cst_63 = arith.constant dense<0.000000e+00> : vector<16xf32>
    %182 = vector.multi_reduction <add>, %179, %cst_63 [1] : vector<16x128xf32> to vector<16xf32>
    %183 = vector.shape_cast %182 : vector<16xf32> to vector<16x1xf32>
    %cst_64 = arith.constant 1.280000e+02 : f32
    %184 = vector.broadcast %cst_64 : f32 to vector<16x1xf32>
    %185 = arith.divf %183, %184 : vector<16x1xf32>
    %186 = vector.broadcast %185 : vector<16x1xf32> to vector<16x128xf32>
    %187 = arith.subf %179, %186 : vector<16x128xf32>
    %188 = arith.mulf %187, %187 : vector<16x128xf32>
    %cst_65 = arith.constant dense<0.000000e+00> : vector<16xf32>
    %189 = vector.multi_reduction <add>, %188, %cst_65 [1] : vector<16x128xf32> to vector<16xf32>
    %190 = vector.shape_cast %189 : vector<16xf32> to vector<16x1xf32>
    %cst_66 = arith.constant 1.280000e+02 : f32
    %191 = vector.broadcast %cst_66 : f32 to vector<16x1xf32>
    %192 = arith.divf %190, %191 : vector<16x1xf32>
    %cst_67 = arith.constant 9.99999996E-13 : f32
    %193 = vector.broadcast %cst_67 : f32 to vector<16x1xf32>
    %194 = arith.addf %192, %193 : vector<16x1xf32>
    %195 = math.rsqrt %194 : vector<16x1xf32>
    %196 = vector.broadcast %195 : vector<16x1xf32> to vector<16x128xf32>
    %197 = arith.mulf %187, %196 : vector<16x128xf32>
    %198 = vector.broadcast %180 : vector<1x128xf32> to vector<16x128xf32>
    %199 = arith.mulf %197, %198 : vector<16x128xf32>
    %200 = vector.broadcast %181 : vector<1x128xf32> to vector<16x128xf32>
    %201 = arith.addf %199, %200 : vector<16x128xf32>
    %202 = arith.truncf %201 : vector<16x128xf32> to vector<16x128xbf16>
    %c1_68 = arith.constant 1 : index
    %c0_69 = arith.constant 0 : index
    %c0_70 = arith.constant 0 : index
    %203 = vector.load %arg3[%c1_68, %c0_69, %c0_70] : memref<2x128x384xbf16, #tpu.memory_space<vmem>>, vector<1x128x384xbf16>
    %204 = vector.shape_cast %203 : vector<1x128x384xbf16> to vector<128x384xbf16>
    %cst_71 = arith.constant dense<0.000000e+00> : vector<16x384xf32>
    %205 = tpu.matmul %202, %204, %cst_71 {dimension_numbers = #tpu.dot_dimension_numbers<[1], [0], [0], [1], [0, 0, 1, 1], [], []>} : vector<16x128xbf16>, vector<128x384xbf16>, vector<16x384xf32> -> vector<16x384xf32>
    %c12 = arith.constant 12 : index
    %c0_72 = arith.constant 0 : index
    %206 = vector.load %arg2[%c12, %c0_72] : memref<20x384xf32, #tpu.memory_space<vmem>>, vector<1x384xf32>
    %207 = vector.broadcast %206 : vector<1x384xf32> to vector<16x384xf32>
    %208 = arith.addf %205, %207 : vector<16x384xf32>
    %c1_73 = arith.constant 1 : index
    %c0_74 = arith.constant 0 : index
    %c0_75 = arith.constant 0 : index
    %209 = vector.load %arg4[%c1_73, %c0_74, %c0_75] : memref<2x128x128xbf16, #tpu.memory_space<vmem>>, vector<1x128x128xbf16>
    %210 = vector.shape_cast %209 : vector<1x128x128xbf16> to vector<128x128xbf16>
    %cst_76 = arith.constant 0.000000e+00 : f32
    %211 = vector.broadcast %cst_76 : f32 to vector<16x128xf32>
    %212 = vector.extract_strided_slice %208 {offsets = [0, 0], sizes = [16, 32], strides = [1, 1]} : vector<16x384xf32> to vector<16x32xf32>
    %213 = arith.truncf %212 : vector<16x32xf32> to vector<16x32xbf16>
    %214 = vector.extract_strided_slice %208 {offsets = [0, 128], sizes = [16, 32], strides = [1, 1]} : vector<16x384xf32> to vector<16x32xf32>
    %215 = arith.truncf %214 : vector<16x32xf32> to vector<16x32xbf16>
    %216 = vector.extract_strided_slice %208 {offsets = [0, 256], sizes = [16, 32], strides = [1, 1]} : vector<16x384xf32> to vector<16x32xf32>
    %217 = arith.truncf %216 : vector<16x32xf32> to vector<16x32xbf16>
    %cst_77 = arith.constant dense<0.000000e+00> : vector<16x16xf32>
    %218 = tpu.matmul %213, %215, %cst_77 {dimension_numbers = #tpu.dot_dimension_numbers<[1], [1], [0], [0], [0, 0, 1, 0], [], []>} : vector<16x32xbf16>, vector<16x32xbf16>, vector<16x16xf32> -> vector<16x16xf32>
    %219 = arith.addf %218, %23 : vector<16x16xf32>
    %cst_78 = arith.constant dense<0xFF800000> : vector<16xf32>
    %220 = vector.multi_reduction <maximumf>, %219, %cst_78 [1] : vector<16x16xf32> to vector<16xf32>
    %221 = vector.shape_cast %220 : vector<16xf32> to vector<16x1xf32>
    %222 = vector.broadcast %221 : vector<16x1xf32> to vector<16x16xf32>
    %223 = arith.subf %219, %222 : vector<16x16xf32>
    %224 = math.exp %223 : vector<16x16xf32>
    %cst_79 = arith.constant dense<0.000000e+00> : vector<16xf32>
    %225 = vector.multi_reduction <add>, %224, %cst_79 [1] : vector<16x16xf32> to vector<16xf32>
    %226 = vector.shape_cast %225 : vector<16xf32> to vector<16x1xf32>
    %227 = vector.broadcast %226 : vector<16x1xf32> to vector<16x16xf32>
    %228 = arith.divf %224, %227 : vector<16x16xf32>
    %229 = arith.truncf %228 : vector<16x16xf32> to vector<16x16xbf16>
    %cst_80 = arith.constant dense<0.000000e+00> : vector<16x32xf32>
    %230 = tpu.matmul %229, %217, %cst_80 {dimension_numbers = #tpu.dot_dimension_numbers<[1], [0], [0], [1], [0, 0, 1, 1], [], []>} : vector<16x16xbf16>, vector<16x32xbf16>, vector<16x32xf32> -> vector<16x32xf32>
    %231 = arith.truncf %230 : vector<16x32xf32> to vector<16x32xbf16>
    %232 = vector.extract_strided_slice %210 {offsets = [0, 0], sizes = [32, 128], strides = [1, 1]} : vector<128x128xbf16> to vector<32x128xbf16>
    %cst_81 = arith.constant dense<0.000000e+00> : vector<16x128xf32>
    %233 = tpu.matmul %231, %232, %cst_81 {dimension_numbers = #tpu.dot_dimension_numbers<[1], [0], [0], [1], [0, 0, 1, 1], [], []>} : vector<16x32xbf16>, vector<32x128xbf16>, vector<16x128xf32> -> vector<16x128xf32>
    %234 = arith.addf %211, %233 : vector<16x128xf32>
    %235 = vector.extract_strided_slice %208 {offsets = [0, 32], sizes = [16, 32], strides = [1, 1]} : vector<16x384xf32> to vector<16x32xf32>
    %236 = arith.truncf %235 : vector<16x32xf32> to vector<16x32xbf16>
    %237 = vector.extract_strided_slice %208 {offsets = [0, 160], sizes = [16, 32], strides = [1, 1]} : vector<16x384xf32> to vector<16x32xf32>
    %238 = arith.truncf %237 : vector<16x32xf32> to vector<16x32xbf16>
    %239 = vector.extract_strided_slice %208 {offsets = [0, 288], sizes = [16, 32], strides = [1, 1]} : vector<16x384xf32> to vector<16x32xf32>
    %240 = arith.truncf %239 : vector<16x32xf32> to vector<16x32xbf16>
    %cst_82 = arith.constant dense<0.000000e+00> : vector<16x16xf32>
    %241 = tpu.matmul %236, %238, %cst_82 {dimension_numbers = #tpu.dot_dimension_numbers<[1], [1], [0], [0], [0, 0, 1, 0], [], []>} : vector<16x32xbf16>, vector<16x32xbf16>, vector<16x16xf32> -> vector<16x16xf32>
    %242 = arith.addf %241, %23 : vector<16x16xf32>
    %cst_83 = arith.constant dense<0xFF800000> : vector<16xf32>
    %243 = vector.multi_reduction <maximumf>, %242, %cst_83 [1] : vector<16x16xf32> to vector<16xf32>
    %244 = vector.shape_cast %243 : vector<16xf32> to vector<16x1xf32>
    %245 = vector.broadcast %244 : vector<16x1xf32> to vector<16x16xf32>
    %246 = arith.subf %242, %245 : vector<16x16xf32>
    %247 = math.exp %246 : vector<16x16xf32>
    %cst_84 = arith.constant dense<0.000000e+00> : vector<16xf32>
    %248 = vector.multi_reduction <add>, %247, %cst_84 [1] : vector<16x16xf32> to vector<16xf32>
    %249 = vector.shape_cast %248 : vector<16xf32> to vector<16x1xf32>
    %250 = vector.broadcast %249 : vector<16x1xf32> to vector<16x16xf32>
    %251 = arith.divf %247, %250 : vector<16x16xf32>
    %252 = arith.truncf %251 : vector<16x16xf32> to vector<16x16xbf16>
    %cst_85 = arith.constant dense<0.000000e+00> : vector<16x32xf32>
    %253 = tpu.matmul %252, %240, %cst_85 {dimension_numbers = #tpu.dot_dimension_numbers<[1], [0], [0], [1], [0, 0, 1, 1], [], []>} : vector<16x16xbf16>, vector<16x32xbf16>, vector<16x32xf32> -> vector<16x32xf32>
    %254 = arith.truncf %253 : vector<16x32xf32> to vector<16x32xbf16>
    %255 = vector.extract_strided_slice %210 {offsets = [32, 0], sizes = [32, 128], strides = [1, 1]} : vector<128x128xbf16> to vector<32x128xbf16>
    %cst_86 = arith.constant dense<0.000000e+00> : vector<16x128xf32>
    %256 = tpu.matmul %254, %255, %cst_86 {dimension_numbers = #tpu.dot_dimension_numbers<[1], [0], [0], [1], [0, 0, 1, 1], [], []>} : vector<16x32xbf16>, vector<32x128xbf16>, vector<16x128xf32> -> vector<16x128xf32>
    %257 = arith.addf %234, %256 : vector<16x128xf32>
    %258 = vector.extract_strided_slice %208 {offsets = [0, 64], sizes = [16, 32], strides = [1, 1]} : vector<16x384xf32> to vector<16x32xf32>
    %259 = arith.truncf %258 : vector<16x32xf32> to vector<16x32xbf16>
    %260 = vector.extract_strided_slice %208 {offsets = [0, 192], sizes = [16, 32], strides = [1, 1]} : vector<16x384xf32> to vector<16x32xf32>
    %261 = arith.truncf %260 : vector<16x32xf32> to vector<16x32xbf16>
    %262 = vector.extract_strided_slice %208 {offsets = [0, 320], sizes = [16, 32], strides = [1, 1]} : vector<16x384xf32> to vector<16x32xf32>
    %263 = arith.truncf %262 : vector<16x32xf32> to vector<16x32xbf16>
    %cst_87 = arith.constant dense<0.000000e+00> : vector<16x16xf32>
    %264 = tpu.matmul %259, %261, %cst_87 {dimension_numbers = #tpu.dot_dimension_numbers<[1], [1], [0], [0], [0, 0, 1, 0], [], []>} : vector<16x32xbf16>, vector<16x32xbf16>, vector<16x16xf32> -> vector<16x16xf32>
    %265 = arith.addf %264, %23 : vector<16x16xf32>
    %cst_88 = arith.constant dense<0xFF800000> : vector<16xf32>
    %266 = vector.multi_reduction <maximumf>, %265, %cst_88 [1] : vector<16x16xf32> to vector<16xf32>
    %267 = vector.shape_cast %266 : vector<16xf32> to vector<16x1xf32>
    %268 = vector.broadcast %267 : vector<16x1xf32> to vector<16x16xf32>
    %269 = arith.subf %265, %268 : vector<16x16xf32>
    %270 = math.exp %269 : vector<16x16xf32>
    %cst_89 = arith.constant dense<0.000000e+00> : vector<16xf32>
    %271 = vector.multi_reduction <add>, %270, %cst_89 [1] : vector<16x16xf32> to vector<16xf32>
    %272 = vector.shape_cast %271 : vector<16xf32> to vector<16x1xf32>
    %273 = vector.broadcast %272 : vector<16x1xf32> to vector<16x16xf32>
    %274 = arith.divf %270, %273 : vector<16x16xf32>
    %275 = arith.truncf %274 : vector<16x16xf32> to vector<16x16xbf16>
    %cst_90 = arith.constant dense<0.000000e+00> : vector<16x32xf32>
    %276 = tpu.matmul %275, %263, %cst_90 {dimension_numbers = #tpu.dot_dimension_numbers<[1], [0], [0], [1], [0, 0, 1, 1], [], []>} : vector<16x16xbf16>, vector<16x32xbf16>, vector<16x32xf32> -> vector<16x32xf32>
    %277 = arith.truncf %276 : vector<16x32xf32> to vector<16x32xbf16>
    %278 = vector.extract_strided_slice %210 {offsets = [64, 0], sizes = [32, 128], strides = [1, 1]} : vector<128x128xbf16> to vector<32x128xbf16>
    %cst_91 = arith.constant dense<0.000000e+00> : vector<16x128xf32>
    %279 = tpu.matmul %277, %278, %cst_91 {dimension_numbers = #tpu.dot_dimension_numbers<[1], [0], [0], [1], [0, 0, 1, 1], [], []>} : vector<16x32xbf16>, vector<32x128xbf16>, vector<16x128xf32> -> vector<16x128xf32>
    %280 = arith.addf %257, %279 : vector<16x128xf32>
    %281 = vector.extract_strided_slice %208 {offsets = [0, 96], sizes = [16, 32], strides = [1, 1]} : vector<16x384xf32> to vector<16x32xf32>
    %282 = arith.truncf %281 : vector<16x32xf32> to vector<16x32xbf16>
    %283 = vector.extract_strided_slice %208 {offsets = [0, 224], sizes = [16, 32], strides = [1, 1]} : vector<16x384xf32> to vector<16x32xf32>
    %284 = arith.truncf %283 : vector<16x32xf32> to vector<16x32xbf16>
    %285 = vector.extract_strided_slice %208 {offsets = [0, 352], sizes = [16, 32], strides = [1, 1]} : vector<16x384xf32> to vector<16x32xf32>
    %286 = arith.truncf %285 : vector<16x32xf32> to vector<16x32xbf16>
    %cst_92 = arith.constant dense<0.000000e+00> : vector<16x16xf32>
    %287 = tpu.matmul %282, %284, %cst_92 {dimension_numbers = #tpu.dot_dimension_numbers<[1], [1], [0], [0], [0, 0, 1, 0], [], []>} : vector<16x32xbf16>, vector<16x32xbf16>, vector<16x16xf32> -> vector<16x16xf32>
    %288 = arith.addf %287, %23 : vector<16x16xf32>
    %cst_93 = arith.constant dense<0xFF800000> : vector<16xf32>
    %289 = vector.multi_reduction <maximumf>, %288, %cst_93 [1] : vector<16x16xf32> to vector<16xf32>
    %290 = vector.shape_cast %289 : vector<16xf32> to vector<16x1xf32>
    %291 = vector.broadcast %290 : vector<16x1xf32> to vector<16x16xf32>
    %292 = arith.subf %288, %291 : vector<16x16xf32>
    %293 = math.exp %292 : vector<16x16xf32>
    %cst_94 = arith.constant dense<0.000000e+00> : vector<16xf32>
    %294 = vector.multi_reduction <add>, %293, %cst_94 [1] : vector<16x16xf32> to vector<16xf32>
    %295 = vector.shape_cast %294 : vector<16xf32> to vector<16x1xf32>
    %296 = vector.broadcast %295 : vector<16x1xf32> to vector<16x16xf32>
    %297 = arith.divf %293, %296 : vector<16x16xf32>
    %298 = arith.truncf %297 : vector<16x16xf32> to vector<16x16xbf16>
    %cst_95 = arith.constant dense<0.000000e+00> : vector<16x32xf32>
    %299 = tpu.matmul %298, %286, %cst_95 {dimension_numbers = #tpu.dot_dimension_numbers<[1], [0], [0], [1], [0, 0, 1, 1], [], []>} : vector<16x16xbf16>, vector<16x32xbf16>, vector<16x32xf32> -> vector<16x32xf32>
    %300 = arith.truncf %299 : vector<16x32xf32> to vector<16x32xbf16>
    %301 = vector.extract_strided_slice %210 {offsets = [96, 0], sizes = [32, 128], strides = [1, 1]} : vector<128x128xbf16> to vector<32x128xbf16>
    %cst_96 = arith.constant dense<0.000000e+00> : vector<16x128xf32>
    %302 = tpu.matmul %300, %301, %cst_96 {dimension_numbers = #tpu.dot_dimension_numbers<[1], [0], [0], [1], [0, 0, 1, 1], [], []>} : vector<16x32xbf16>, vector<32x128xbf16>, vector<16x128xf32> -> vector<16x128xf32>
    %303 = arith.addf %280, %302 : vector<16x128xf32>
    %c13 = arith.constant 13 : index
    %c0_97 = arith.constant 0 : index
    %304 = vector.load %arg2[%c13, %c0_97] : memref<20x384xf32, #tpu.memory_space<vmem>>, vector<1x128xf32>
    %305 = vector.broadcast %304 : vector<1x128xf32> to vector<16x128xf32>
    %306 = arith.addf %303, %305 : vector<16x128xf32>
    %307 = arith.addf %306, %201 : vector<16x128xf32>
    %c14 = arith.constant 14 : index
    %c0_98 = arith.constant 0 : index
    %308 = vector.load %arg2[%c14, %c0_98] : memref<20x384xf32, #tpu.memory_space<vmem>>, vector<1x128xf32>
    %c15 = arith.constant 15 : index
    %c0_99 = arith.constant 0 : index
    %309 = vector.load %arg2[%c15, %c0_99] : memref<20x384xf32, #tpu.memory_space<vmem>>, vector<1x128xf32>
    %cst_100 = arith.constant dense<0.000000e+00> : vector<16xf32>
    %310 = vector.multi_reduction <add>, %307, %cst_100 [1] : vector<16x128xf32> to vector<16xf32>
    %311 = vector.shape_cast %310 : vector<16xf32> to vector<16x1xf32>
    %cst_101 = arith.constant 1.280000e+02 : f32
    %312 = vector.broadcast %cst_101 : f32 to vector<16x1xf32>
    %313 = arith.divf %311, %312 : vector<16x1xf32>
    %314 = vector.broadcast %313 : vector<16x1xf32> to vector<16x128xf32>
    %315 = arith.subf %307, %314 : vector<16x128xf32>
    %316 = arith.mulf %315, %315 : vector<16x128xf32>
    %cst_102 = arith.constant dense<0.000000e+00> : vector<16xf32>
    %317 = vector.multi_reduction <add>, %316, %cst_102 [1] : vector<16x128xf32> to vector<16xf32>
    %318 = vector.shape_cast %317 : vector<16xf32> to vector<16x1xf32>
    %cst_103 = arith.constant 1.280000e+02 : f32
    %319 = vector.broadcast %cst_103 : f32 to vector<16x1xf32>
    %320 = arith.divf %318, %319 : vector<16x1xf32>
    %cst_104 = arith.constant 9.99999996E-13 : f32
    %321 = vector.broadcast %cst_104 : f32 to vector<16x1xf32>
    %322 = arith.addf %320, %321 : vector<16x1xf32>
    %323 = math.rsqrt %322 : vector<16x1xf32>
    %324 = vector.broadcast %323 : vector<16x1xf32> to vector<16x128xf32>
    %325 = arith.mulf %315, %324 : vector<16x128xf32>
    %326 = vector.broadcast %308 : vector<1x128xf32> to vector<16x128xf32>
    %327 = arith.mulf %325, %326 : vector<16x128xf32>
    %328 = vector.broadcast %309 : vector<1x128xf32> to vector<16x128xf32>
    %329 = arith.addf %327, %328 : vector<16x128xf32>
    %330 = arith.truncf %329 : vector<16x128xf32> to vector<16x128xbf16>
    %c1_105 = arith.constant 1 : index
    %c0_106 = arith.constant 0 : index
    %c0_107 = arith.constant 0 : index
    %331 = vector.load %arg5[%c1_105, %c0_106, %c0_107] : memref<2x128x256xbf16, #tpu.memory_space<vmem>>, vector<1x128x256xbf16>
    %332 = vector.shape_cast %331 : vector<1x128x256xbf16> to vector<128x256xbf16>
    %cst_108 = arith.constant dense<0.000000e+00> : vector<16x256xf32>
    %333 = tpu.matmul %330, %332, %cst_108 {dimension_numbers = #tpu.dot_dimension_numbers<[1], [0], [0], [1], [0, 0, 1, 1], [], []>} : vector<16x128xbf16>, vector<128x256xbf16>, vector<16x256xf32> -> vector<16x256xf32>
    %c16 = arith.constant 16 : index
    %c0_109 = arith.constant 0 : index
    %334 = vector.load %arg2[%c16, %c0_109] : memref<20x384xf32, #tpu.memory_space<vmem>>, vector<1x256xf32>
    %335 = vector.broadcast %334 : vector<1x256xf32> to vector<16x256xf32>
    %336 = arith.addf %333, %335 : vector<16x256xf32>
    %cst_110 = arith.constant 5.000000e-01 : f32
    %337 = vector.broadcast %cst_110 : f32 to vector<16x256xf32>
    %338 = arith.mulf %337, %336 : vector<16x256xf32>
    %cst_111 = arith.constant 4.471500e-02 : f32
    %339 = vector.broadcast %cst_111 : f32 to vector<16x256xf32>
    %340 = arith.mulf %339, %336 : vector<16x256xf32>
    %341 = arith.mulf %340, %336 : vector<16x256xf32>
    %342 = arith.mulf %341, %336 : vector<16x256xf32>
    %343 = arith.addf %336, %342 : vector<16x256xf32>
    %cst_112 = arith.constant 0.797884583 : f32
    %344 = vector.broadcast %cst_112 : f32 to vector<16x256xf32>
    %345 = arith.mulf %344, %343 : vector<16x256xf32>
    %346 = math.tanh %345 : vector<16x256xf32>
    %cst_113 = arith.constant 1.000000e+00 : f32
    %347 = vector.broadcast %cst_113 : f32 to vector<16x256xf32>
    %348 = arith.addf %347, %346 : vector<16x256xf32>
    %349 = arith.mulf %338, %348 : vector<16x256xf32>
    %350 = arith.truncf %349 : vector<16x256xf32> to vector<16x256xbf16>
    %c1_114 = arith.constant 1 : index
    %c0_115 = arith.constant 0 : index
    %c0_116 = arith.constant 0 : index
    %351 = vector.load %arg6[%c1_114, %c0_115, %c0_116] : memref<2x256x128xbf16, #tpu.memory_space<vmem>>, vector<1x256x128xbf16>
    %352 = vector.shape_cast %351 : vector<1x256x128xbf16> to vector<256x128xbf16>
    %cst_117 = arith.constant dense<0.000000e+00> : vector<16x128xf32>
    %353 = tpu.matmul %350, %352, %cst_117 {dimension_numbers = #tpu.dot_dimension_numbers<[1], [0], [0], [1], [0, 0, 1, 1], [], []>} : vector<16x256xbf16>, vector<256x128xbf16>, vector<16x128xf32> -> vector<16x128xf32>
    %c17 = arith.constant 17 : index
    %c0_118 = arith.constant 0 : index
    %354 = vector.load %arg2[%c17, %c0_118] : memref<20x384xf32, #tpu.memory_space<vmem>>, vector<1x128xf32>
    %355 = vector.broadcast %354 : vector<1x128xf32> to vector<16x128xf32>
    %356 = arith.addf %353, %355 : vector<16x128xf32>
    %357 = arith.addf %356, %329 : vector<16x128xf32>
    %c18 = arith.constant 18 : index
    %c0_119 = arith.constant 0 : index
    %358 = vector.load %arg2[%c18, %c0_119] : memref<20x384xf32, #tpu.memory_space<vmem>>, vector<1x128xf32>
    %c19 = arith.constant 19 : index
    %c0_120 = arith.constant 0 : index
    %359 = vector.load %arg2[%c19, %c0_120] : memref<20x384xf32, #tpu.memory_space<vmem>>, vector<1x128xf32>
    %cst_121 = arith.constant dense<0.000000e+00> : vector<16xf32>
    %360 = vector.multi_reduction <add>, %357, %cst_121 [1] : vector<16x128xf32> to vector<16xf32>
    %361 = vector.shape_cast %360 : vector<16xf32> to vector<16x1xf32>
    %cst_122 = arith.constant 1.280000e+02 : f32
    %362 = vector.broadcast %cst_122 : f32 to vector<16x1xf32>
    %363 = arith.divf %361, %362 : vector<16x1xf32>
    %364 = vector.broadcast %363 : vector<16x1xf32> to vector<16x128xf32>
    %365 = arith.subf %357, %364 : vector<16x128xf32>
    %366 = arith.mulf %365, %365 : vector<16x128xf32>
    %cst_123 = arith.constant dense<0.000000e+00> : vector<16xf32>
    %367 = vector.multi_reduction <add>, %366, %cst_123 [1] : vector<16x128xf32> to vector<16xf32>
    %368 = vector.shape_cast %367 : vector<16xf32> to vector<16x1xf32>
    %cst_124 = arith.constant 1.280000e+02 : f32
    %369 = vector.broadcast %cst_124 : f32 to vector<16x1xf32>
    %370 = arith.divf %368, %369 : vector<16x1xf32>
    %cst_125 = arith.constant 9.99999996E-13 : f32
    %371 = vector.broadcast %cst_125 : f32 to vector<16x1xf32>
    %372 = arith.addf %370, %371 : vector<16x1xf32>
    %373 = math.rsqrt %372 : vector<16x1xf32>
    %374 = vector.broadcast %373 : vector<16x1xf32> to vector<16x128xf32>
    %375 = arith.mulf %365, %374 : vector<16x128xf32>
    %376 = vector.broadcast %358 : vector<1x128xf32> to vector<16x128xf32>
    %377 = arith.mulf %375, %376 : vector<16x128xf32>
    %378 = vector.broadcast %359 : vector<1x128xf32> to vector<16x128xf32>
    %379 = arith.addf %377, %378 : vector<16x128xf32>
    %380 = vector.extract_strided_slice %379 {offsets = [0, 0], sizes = [1, 128], strides = [1, 1]} : vector<16x128xf32> to vector<1x128xf32>
    %381 = vector.extract_strided_slice %379 {offsets = [8, 0], sizes = [1, 128], strides = [1, 1]} : vector<16x128xf32> to vector<1x128xf32>
    %382 = tpu.concatenate %380, %381 in 0 : vector<1x128xf32>, vector<1x128xf32> -> vector<2x128xf32>
    %383 = arith.truncf %382 : vector<2x128xf32> to vector<2x128xbf16>
    %c0_126 = arith.constant 0 : index
    %c0_127 = arith.constant 0 : index
    %384 = vector.load %arg7[%c0_126, %c0_127] : memref<128x256xbf16, #tpu.memory_space<vmem>>, vector<128x128xbf16>
    %cst_128 = arith.constant dense<0.000000e+00> : vector<2x128xf32>
    %385 = tpu.matmul %383, %384, %cst_128 {dimension_numbers = #tpu.dot_dimension_numbers<[1], [0], [0], [1], [0, 0, 1, 1], [], []>} : vector<2x128xbf16>, vector<128x128xbf16>, vector<2x128xf32> -> vector<2x128xf32>
    %c2 = arith.constant 2 : index
    %c0_129 = arith.constant 0 : index
    %386 = vector.load %arg2[%c2, %c0_129] : memref<20x384xf32, #tpu.memory_space<vmem>>, vector<1x128xf32>
    %387 = vector.broadcast %386 : vector<1x128xf32> to vector<2x128xf32>
    %388 = arith.addf %385, %387 : vector<2x128xf32>
    %cst_130 = arith.constant 0.000000e+00 : f32
    %389 = vector.broadcast %cst_130 : f32 to vector<2x128xf32>
    %390 = arith.maximumf %388, %389 : vector<2x128xf32>
    %391 = arith.truncf %390 : vector<2x128xf32> to vector<2x128xbf16>
    %c0_131 = arith.constant 0 : index
    %c128 = arith.constant 128 : index
    %392 = vector.load %arg7[%c0_131, %c128] : memref<128x256xbf16, #tpu.memory_space<vmem>>, vector<128x128xbf16>
    %cst_132 = arith.constant dense<0.000000e+00> : vector<2x128xf32>
    %393 = tpu.matmul %391, %392, %cst_132 {dimension_numbers = #tpu.dot_dimension_numbers<[1], [0], [0], [1], [0, 0, 1, 1], [], []>} : vector<2x128xbf16>, vector<128x128xbf16>, vector<2x128xf32> -> vector<2x128xf32>
    %c3 = arith.constant 3 : index
    %c0_133 = arith.constant 0 : index
    %394 = vector.load %arg2[%c3, %c0_133] : memref<20x384xf32, #tpu.memory_space<vmem>>, vector<1x128xf32>
    %395 = vector.broadcast %394 : vector<1x128xf32> to vector<2x128xf32>
    %396 = arith.addf %393, %395 : vector<2x128xf32>
    %c0_134 = arith.constant 0 : index
    %c0_135 = arith.constant 0 : index
    %397 = vector.load %arg8[%c0_134, %c0_135] : memref<2x128xf32, #tpu.memory_space<vmem>>, vector<2x128xf32>
    tpu.vector_store %arg8[%c0_134, %c0_135], %396 {strides = array<i32>} : memref<2x128xf32, #tpu.memory_space<vmem>>, vector<2x128xf32>,
    return
  }
}

</mosaic_0001>

<llo_original>
// kernel: model_forward.1
$region0: #{model_forward.1}
  #allocation0 [shape = 'u32[]', space=smem, size = 0x4, offset = 0x4, fixed_abs, tag = 'smem constant byte address 0x4 - core index']
  #allocation1 [shape = 'u32[144,128]{1,0:T(1,128)}', space=vmem, size = 0x12000, scoped, tag = 'internal scratch']
  %s0 = inlined_call_operand.vmem [shape: f32[16,128], index: 0, kind: input, shape index: {}]
  %s1 = inlined_call_operand.vmem [shape: f32[16,16], index: 1, kind: input, shape index: {}]
  %s2 = inlined_call_operand.vmem [shape: f32[20,384], index: 2, kind: input, shape index: {}]
  %s3 = inlined_call_operand.vmem [shape: bf16[2,128,384], index: 3, kind: input, shape index: {}]
  %s4 = inlined_call_operand.vmem [shape: bf16[2,128,128], index: 4, kind: input, shape index: {}]
  %s5 = inlined_call_operand.vmem [shape: bf16[2,128,256], index: 5, kind: input, shape index: {}]
  %s6 = inlined_call_operand.vmem [shape: bf16[2,256,128], index: 6, kind: input, shape index: {}]
  %s7 = inlined_call_operand.vmem [shape: bf16[128,256], index: 7, kind: input, shape index: {}]
  %s8 = inlined_call_operand.hbm [shape: f32[2,128], index: 8, kind: output, shape index: {}]
  %s9 = sld [smem:[#allocation0]]
  $region42: #{model_forward.1} parent=0
    _
  %s11 = ssub.s32 1, %s9
  %s12 = scalar_select 0, %s11, %s9
  $region1: #{model_forward.1} parent=0
    #allocation2 [shape = 'u8[1024]{0}', space=vmem, size = 0x400, scoped, tag = 'output window, operand 0, single buffered']
    #allocation3 [shape = 's32[1]{0}', space=sflag, size = 0x4, scoped, tag = 'scoped memory for model_forward.1']
    %13 = vsyncpa [#allocation3], 0
    // Predicated region
    $region2: #{model_forward.1} parent=1 // pred_check
      _
    $region3: #{model_forward.1} parent=1 // pred_check_branch
      %15 = sbr.rel (0) target = $region5
    $region4: #{model_forward.1} parent=1 // pred_region
      _
    $region5: #{model_forward.1} parent=1 // pred_fallthru
      _
    // Predicated region
    $region6: #{model_forward.1} parent=1 // pred_check
      _
    $region7: #{model_forward.1} parent=1 // pred_check_branch
      %17 = sbr.rel (0) target = $region9
    $region8: #{model_forward.1} parent=1 // pred_region
      _
    $region9: #{model_forward.1} parent=1 // pred_fallthru
      _
    // Predicated region
    $region10: #{model_forward.1} parent=1 // pred_check
      _
    $region11: #{model_forward.1} parent=1 // pred_check_branch
      %19 = sbr.rel (0) target = $region13
    $region12: #{model_forward.1} parent=1 // pred_region
      _
    $region13: #{model_forward.1} parent=1 // pred_fallthru
      _
    // Predicated region
    $region14: #{model_forward.1} parent=1 // pred_check
      _
    $region15: #{model_forward.1} parent=1 // pred_check_branch
      %21 = sbr.rel (0) target = $region17
    $region16: #{model_forward.1} parent=1 // pred_region
      _
    $region17: #{model_forward.1} parent=1 // pred_fallthru
      _
    // Predicated region
    $region18: #{model_forward.1} parent=1 // pred_check
      _
    $region19: #{model_forward.1} parent=1 // pred_check_branch
      %23 = sbr.rel (0) target = $region21
    $region20: #{model_forward.1} parent=1 // pred_region
      _
    $region21: #{model_forward.1} parent=1 // pred_fallthru
      _
    // Predicated region
    $region22: #{model_forward.1} parent=1 // pred_check
      _
    $region23: #{model_forward.1} parent=1 // pred_check_branch
      %25 = sbr.rel (0) target = $region25
    $region24: #{model_forward.1} parent=1 // pred_region
      _
    $region25: #{model_forward.1} parent=1 // pred_fallthru
      _
    // Predicated region
    $region26: #{model_forward.1} parent=1 // pred_check
      _
    $region27: #{model_forward.1} parent=1 // pred_check_branch
      %27 = sbr.rel (0) target = $region29
    $region28: #{model_forward.1} parent=1 // pred_region
      _
    $region29: #{model_forward.1} parent=1 // pred_fallthru
      _
    // Predicated region
    $region30: #{model_forward.1} parent=1 // pred_check
      _
    $region31: #{model_forward.1} parent=1 // pred_check_branch
      %29 = sbr.rel (0) target = $region33
    $region32: #{model_forward.1} parent=1 // pred_region
      _
    $region33: #{model_forward.1} parent=1 // pred_fallthru
      _
    %v31 = vld [vmem:[%s0] sm:$0xff]
    %v32 = vld [vmem:[%s0 + $0x8] sm:$0xff]
    %v33 = vld [vmem:[%s2] ss:$0 sm:$0xff]
    %v34 = vld [vmem:[%s2 + $0x1] ss:$0 sm:$0xff]
    %35 = vadd.xlane.f32.xlu0 %v31
    %v36 = vpop.xlane.xlu0 %35
    %37 = vadd.xlane.f32.xlu0 %v32
    %v38 = vpop.xlane.xlu0 %37
    %v39 = vrcp.pop 128.0
    %v40 = vmul.f32 %v36, %v39
    %v41 = vmul.f32 %v38, %v39
    %v42 = vsub.f32 %v31, %v40
    %v43 = vsub.f32 %v32, %v41
    %v44 = vmul.f32 %v42, %v42
    %v45 = vmul.f32 %v43, %v43
    %46 = vadd.xlane.f32.xlu0 %v44
    %v47 = vpop.xlane.xlu0 %46
    %48 = vadd.xlane.f32.xlu0 %v45
    %v49 = vpop.xlane.xlu0 %48
    %v50 = vmul.f32 %v47, %v39
    %v51 = vmul.f32 %v49, %v39
    %v52 = vadd.f32 %v50, 1e-12
    %v53 = vadd.f32 %v51, 1e-12
    %v54 = vrsqrt.pop %v52
    %v55 = vrsqrt.pop %v53
    %v56 = vmul.f32 %v42, %v54
    %v57 = vmul.f32 %v43, %v55
    %v58 = vmul.f32 %v56, %v33
    %v59 = vmul.f32 %v57, %v33
    %v60 = vadd.f32 %v58, %v34
    %v61 = vadd.f32 %v59, %v34
    %v62 = vld [vmem:[%s1] sm:$0xff]
    %v63 = vld [vmem:[%s1 + $0x8] sm:$0xff]
    %v64 = vpack.c.bf16 %v61, %v60
    %v65 = vld [vmem:[%s3] sm:$0xff]
    %v66 = vld [vmem:[%s3 + $0x8] sm:$0xf]
    %v67 = vld [vmem:[%s3 + $0xc] sm:$0xff]
    %v68 = vld [vmem:[%s3 + $0x14] sm:$0xf]
    %v69 = vld [vmem:[%s3 + $0x18] sm:$0xff]
    %v70 = vld [vmem:[%s3 + $0x20] sm:$0xf]
    %v71 = vld [vmem:[%s3 + $0x24] sm:$0xff]
    %v72 = vld [vmem:[%s3 + $0x2c] sm:$0xf]
    %v73 = vld [vmem:[%s3 + $0x30] sm:$0xff]
    %v74 = vld [vmem:[%s3 + $0x38] sm:$0xf]
    %v75 = vld [vmem:[%s3 + $0x3c] sm:$0xff]
    %v76 = vld [vmem:[%s3 + $0x44] sm:$0xf]
    %v77 = vld [vmem:[%s3 + $0x48] sm:$0xff]
    %v78 = vld [vmem:[%s3 + $0x50] sm:$0xf]
    %v79 = vld [vmem:[%s3 + $0x54] sm:$0xff]
    %v80 = vld [vmem:[%s3 + $0x5c] sm:$0xf]
    %v81 = vld [vmem:[%s3 + $0x60] sm:$0xff]
    %v82 = vld [vmem:[%s3 + $0x68] sm:$0xf]
    %v83 = vld [vmem:[%s3 + $0x6c] sm:$0xff]
    %v84 = vld [vmem:[%s3 + $0x74] sm:$0xf]
    %v85 = vld [vmem:[%s3 + $0x78] sm:$0xff]
    %v86 = vld [vmem:[%s3 + $0x80] sm:$0xf]
    %v87 = vld [vmem:[%s3 + $0x84] sm:$0xff]
    %v88 = vld [vmem:[%s3 + $0x8c] sm:$0xf]
    %v89 = vld [vmem:[%s3 + $0x90] sm:$0xff]
    %v90 = vld [vmem:[%s3 + $0x98] sm:$0xf]
    %v91 = vld [vmem:[%s3 + $0x9c] sm:$0xff]
    %v92 = vld [vmem:[%s3 + $0xa4] sm:$0xf]
    %v93 = vld [vmem:[%s3 + $0xa8] sm:$0xff]
    %v94 = vld [vmem:[%s3 + $0xb0] sm:$0xf]
    %v95 = vld [vmem:[%s3 + $0xb4] sm:$0xff]
    %v96 = vld [vmem:[%s3 + $0xbc] sm:$0xf]
    %s97 = scalar_lea.vmem %s2, 4
    %v98 = vld [vmem:[%s97] ss:$8 sm:$0x7]
    %v100 = vlaneseq
    %v101 = vshrl.u32 %v100, 7
    %v102 = vsub.s32 0, %v101
    %v103 = vrot.slane %v98, %v102
    %v104 = vlaneseq
    %v105 = vshrl.u32 %v104, 7
    %v106 = vsub.s32 1, %v105
    %v107 = vrot.slane %v98, %v106
    %v108 = vlaneseq
    %v109 = vshrl.u32 %v108, 7
    %v110 = vsub.s32 2, %v109
    %v111 = vrot.slane %v98, %v110
    %v147 = vunpack.c.l.b16 %v65
    %v148 = vunpack.c.h.b16 %v65
    %v149 = vunpack.c.l.b16 %v66
    %v150 = vunpack.c.l.b16 %v67
    %v151 = vunpack.c.h.b16 %v67
    %v152 = vunpack.c.l.b16 %v68
    %v153 = vunpack.c.l.b16 %v69
    %v154 = vunpack.c.h.b16 %v69
    %v155 = vunpack.c.l.b16 %v70
    %v156 = vunpack.c.l.b16 %v71
    %v157 = vunpack.c.h.b16 %v71
    %v158 = vunpack.c.l.b16 %v72
    %v159 = vunpack.c.l.b16 %v73
    %v160 = vunpack.c.h.b16 %v73
    %v161 = vunpack.c.l.b16 %v74
    %v162 = vunpack.c.l.b16 %v75
    %v163 = vunpack.c.h.b16 %v75
    %v164 = vunpack.c.l.b16 %v76
    %v165 = vunpack.c.l.b16 %v77
    %v166 = vunpack.c.h.b16 %v77
    %v167 = vunpack.c.l.b16 %v78
    %v168 = vunpack.c.l.b16 %v79
    %v169 = vunpack.c.h.b16 %v79
    %v170 = vunpack.c.l.b16 %v80
    %v171 = vunpack.c.l.b16 %v81
    %v172 = vunpack.c.h.b16 %v81
    %v173 = vunpack.c.l.b16 %v82
    %v174 = vunpack.c.l.b16 %v83
    %v175 = vunpack.c.h.b16 %v83
    %v176 = vunpack.c.l.b16 %v84
    %v177 = vunpack.c.l.b16 %v85
    %v178 = vunpack.c.h.b16 %v85
    %v179 = vunpack.c.l.b16 %v86
    %v180 = vunpack.c.l.b16 %v87
    %v181 = vunpack.c.h.b16 %v87
    %v182 = vunpack.c.l.b16 %v88
    %v183 = vunpack.c.l.b16 %v89
    %v184 = vunpack.c.h.b16 %v89
    %v185 = vunpack.c.l.b16 %v90
    %v186 = vunpack.c.l.b16 %v91
    %v187 = vunpack.c.h.b16 %v91
    %v188 = vunpack.c.l.b16 %v92
    %v189 = vunpack.c.l.b16 %v93
    %v190 = vunpack.c.h.b16 %v93
    %v191 = vunpack.c.l.b16 %v94
    %v192 = vunpack.c.l.b16 %v95
    %v193 = vunpack.c.h.b16 %v95
    %v194 = vunpack.c.l.b16 %v96
    %v195 = vpack.c.b16 %v150, %v147
    %v196 = vpack.c.b16 %v151, %v148
    %v197 = vpack.c.b16 %v152, %v149
    %v198 = vpack.c.b16 %v156, %v153
    %v199 = vpack.c.b16 %v157, %v154
    %v200 = vpack.c.b16 %v158, %v155
    %v201 = vpack.c.b16 %v162, %v159
    %v202 = vpack.c.b16 %v163, %v160
    %v203 = vpack.c.b16 %v164, %v161
    %v204 = vpack.c.b16 %v168, %v165
    %v205 = vpack.c.b16 %v169, %v166
    %v206 = vpack.c.b16 %v170, %v167
    %v207 = vpack.c.b16 %v174, %v171
    %v208 = vpack.c.b16 %v175, %v172
    %v209 = vpack.c.b16 %v176, %v173
    %v210 = vpack.c.b16 %v180, %v177
    %v211 = vpack.c.b16 %v181, %v178
    %v212 = vpack.c.b16 %v182, %v179
    %v213 = vpack.c.b16 %v186, %v183
    %v214 = vpack.c.b16 %v187, %v184
    %v215 = vpack.c.b16 %v188, %v185
    %v216 = vpack.c.b16 %v192, %v189
    %v217 = vpack.c.b16 %v193, %v190
    %v218 = vpack.c.b16 %v194, %v191
    %243 = vmatprep.subr.bf16.mxu0 %v217
    %244 = vmatpush1.bf16.msra.mxu0 %v216
    %245 = vmatprep.subr.bf16.mxu0 %v214
    %246 = vmatpush1.bf16.msra.mxu0 %v213
    %247 = vmatprep.subr.bf16.mxu0 %v211
    %248 = vmatpush1.bf16.msra.mxu0 %v210
    %249 = vmatprep.subr.bf16.mxu0 %v208
    %250 = vmatpush1.bf16.msra.mxu0 %v207
    %251 = vmatprep.subr.bf16.mxu0 %v205
    %252 = vmatpush1.bf16.msra.mxu0 %v204
    %253 = vmatprep.subr.bf16.mxu0 %v202
    %254 = vmatpush1.bf16.msra.mxu0 %v201
    %255 = vmatprep.subr.bf16.mxu0 %v199
    %256 = vmatpush1.bf16.msra.mxu0 %v198
    %257 = vmatprep.subr.bf16.mxu0 %v196
    %258 = vmatpush1.bf16.msra.mxu0 %v195
    %259 = vmatprep.subr.bf16.mxu0 0
    %260 = vmatpush2.bf16.msra.mxu0 0
    %261 = vmatprep.subr.bf16.mxu0 0
    %262 = vmatpush2.bf16.msra.mxu0 0
    %263 = vmatprep.subr.bf16.mxu0 0
    %264 = vmatpush2.bf16.msra.mxu0 0
    %265 = vmatprep.subr.bf16.mxu0 0
    %266 = vmatpush2.bf16.msra.mxu0 0
    %267 = vmatprep.subr.bf16.mxu0 0
    %268 = vmatpush2.bf16.msra.mxu0 0
    %269 = vmatprep.subr.bf16.mxu0 0
    %270 = vmatpush2.bf16.msra.mxu0 0
    %271 = vmatprep.subr.bf16.mxu0 0
    %272 = vmatpush2.bf16.msra.mxu0 0
    %273 = vmatprep.subr.bf16.mxu0 0
    %274 = vmatpush2.bf16.msra.mxu0 0
    %275 = vmatprep.mubr.bf16.mxu0 0
    %276 = vmatmul.mubr.bf16.gmra.mxu0 %v64
    %v277 = vpop.f32.mrf.mxu0
    %v278 = vadd.f32 %v103, %v277
    %v279 = vpop.f32.mrf.mxu0
    %v280 = vadd.f32 %v107, %v279
    %v281 = vpop.f32.mrf.mxu0
    %v282 = vadd.f32 %v103, %v281
    %v283 = vpop.f32.mrf.mxu0
    %v284 = vadd.f32 %v107, %v283
    %285 = vdwg.mxu0
    %286 = vmatprep.subr.bf16.mxu0 0
    %287 = vmatpush1.bf16.msra.mxu0 %v218
    %288 = vmatprep.subr.bf16.mxu0 0
    %289 = vmatpush1.bf16.msra.mxu0 %v215
    %290 = vmatprep.subr.bf16.mxu0 0
    %291 = vmatpush1.bf16.msra.mxu0 %v212
    %292 = vmatprep.subr.bf16.mxu0 0
    %293 = vmatpush1.bf16.msra.mxu0 %v209
    %294 = vmatprep.subr.bf16.mxu0 0
    %295 = vmatpush1.bf16.msra.mxu0 %v206
    %296 = vmatprep.subr.bf16.mxu0 0
    %297 = vmatpush1.bf16.msra.mxu0 %v203
    %298 = vmatprep.subr.bf16.mxu0 0
    %299 = vmatpush1.bf16.msra.mxu0 %v200
    %300 = vmatprep.subr.bf16.mxu0 0
    %301 = vmatpush1.bf16.msra.mxu0 %v197
    %302 = vmatprep.subr.bf16.mxu0 0
    %303 = vmatpush2.bf16.msra.mxu0 0
    %304 = vmatprep.subr.bf16.mxu0 0
    %305 = vmatpush2.bf16.msra.mxu0 0
    %306 = vmatprep.subr.bf16.mxu0 0
    %307 = vmatpush2.bf16.msra.mxu0 0
    %308 = vmatprep.subr.bf16.mxu0 0
    %309 = vmatpush2.bf16.msra.mxu0 0
    %310 = vmatprep.subr.bf16.mxu0 0
    %311 = vmatpush2.bf16.msra.mxu0 0
    %312 = vmatprep.subr.bf16.mxu0 0
    %313 = vmatpush2.bf16.msra.mxu0 0
    %314 = vmatprep.subr.bf16.mxu0 0
    %315 = vmatpush2.bf16.msra.mxu0 0
    %316 = vmatprep.subr.bf16.mxu0 0
    %317 = vmatpush2.bf16.msra.mxu0 0
    %318 = vmatprep.mubr.bf16.mxu0 0
    %319 = vmatmul.mubr.bf16.gmra.mxu0 %v64
    %v320 = vpop.f32.mrf.mxu0
    %v321 = vadd.f32 %v111, %v320
    %v322 = vpop.f32.mrf.mxu0
    %v323 = vpop.f32.mrf.mxu0
    %v324 = vadd.f32 %v111, %v323
    %v325 = vpop.f32.mrf.mxu0
    %326 = vdwg.mxu0
    %v327 = vld [vmem:[%s4] sm:$0xf]
    %v328 = vld [vmem:[%s4 + $0x4] sm:$0xf]
    %v329 = vld [vmem:[%s4 + $0x8] sm:$0xf]
    %v330 = vld [vmem:[%s4 + $0xc] sm:$0xf]
    %v331 = vld [vmem:[%s4 + $0x10] sm:$0xf]
    %v332 = vld [vmem:[%s4 + $0x14] sm:$0xf]
    %v333 = vld [vmem:[%s4 + $0x18] sm:$0xf]
    %v334 = vld [vmem:[%s4 + $0x1c] sm:$0xf]
    %v335 = vld [vmem:[%s4 + $0x20] sm:$0xf]
    %v336 = vld [vmem:[%s4 + $0x24] sm:$0xf]
    %v337 = vld [vmem:[%s4 + $0x28] sm:$0xf]
    %v338 = vld [vmem:[%s4 + $0x2c] sm:$0xf]
    %v339 = vld [vmem:[%s4 + $0x30] sm:$0xf]
    %v340 = vld [vmem:[%s4 + $0x34] sm:$0xf]
    %v341 = vld [vmem:[%s4 + $0x38] sm:$0xf]
    %v342 = vld [vmem:[%s4 + $0x3c] sm:$0xf]
    %v343 = vpack.c.bf16 %v282, %v278
    %v344 = vpack.c.bf16 %v284, %v280
    %v345 = vpack.c.bf16 %v324, %v321
    %vm346 = vcmask 261120
    %v348 = vsel %vm346, %v343, 0
    %v351 = vsel %vm346, %v344, 0
    %353 = vmatprep.subr.bf16.mxu0 0
    %354 = vmatpush1.bf16.xpose.msra.mxu0 0
    %355 = vmatprep.subr.bf16.mxu0 0
    %356 = vmatpush1.bf16.xpose.msra.mxu0 0
    %357 = vmatprep.subr.bf16.mxu0 0
    %358 = vmatpush1.bf16.xpose.msra.mxu0 0
    %359 = vmatprep.subr.bf16.mxu0 0
    %360 = vmatpush1.bf16.xpose.msra.mxu0 0
    %361 = vmatprep.subr.bf16.mxu0 0
    %362 = vmatpush1.bf16.xpose.msra.mxu0 0
    %363 = vmatprep.subr.bf16.mxu0 0
    %364 = vmatpush1.bf16.xpose.msra.mxu0 0
    %365 = vmatprep.subr.bf16.mxu0 0
    %366 = vmatpush1.bf16.xpose.msra.mxu0 0
    %367 = vmatprep.subr.bf16.mxu0 0
    %368 = vmatpush1.bf16.xpose.msra.mxu0 %v351
    %369 = vmatprep.subr.bf16.mxu0 0
    %370 = vmatpush2.bf16.xpose.msra.mxu0 0
    %371 = vmatprep.subr.bf16.mxu0 0
    %372 = vmatpush2.bf16.xpose.msra.mxu0 0
    %373 = vmatprep.subr.bf16.mxu0 0
    %374 = vmatpush2.bf16.xpose.msra.mxu0 0
    %375 = vmatprep.subr.bf16.mxu0 0
    %376 = vmatpush2.bf16.xpose.msra.mxu0 0
    %377 = vmatprep.subr.bf16.mxu0 0
    %378 = vmatpush2.bf16.xpose.msra.mxu0 0
    %379 = vmatprep.subr.bf16.mxu0 0
    %380 = vmatpush2.bf16.xpose.msra.mxu0 0
    %381 = vmatprep.subr.bf16.mxu0 0
    %382 = vmatpush2.bf16.xpose.msra.mxu0 0
    %383 = vmatprep.subr.bf16.mxu0 0
    %384 = vmatpush2.bf16.xpose.msra.mxu0 0
    %385 = vmatprep.mubr.bf16.mxu0 0
    %386 = vmatmul.mubr.bf16.gmra.mxu0 %v348
    %v387 = vpop.f32.mrf.mxu0
    %v388 = vadd.f32 %v62, %v387
    %v389 = vpop.f32.mrf.mxu0
    %v390 = vpop.f32.mrf.mxu0
    %v391 = vadd.f32 %v63, %v390
    %v392 = vpop.f32.mrf.mxu0
    %393 = vdwg.mxu0
    %vm394 = vcmask 130048
    %v395 = vsel %vm394, %v388, -inf
    %396 = vmax.xlane.f32.xlu0 %v395
    %v397 = vpop.xlane.xlu0 %396
    %v398 = vsel %vm394, %v391, -inf
    %399 = vmax.xlane.f32.xlu0 %v398
    %v400 = vpop.xlane.xlu0 %399
    %v401 = vsub.f32 %v388, %v397
    %v402 = vsub.f32 %v391, %v400
    %v403 = vmul.f32 %v401, 1.442695
    %v404 = vpow.pop %v403
    %v405 = vmul.f32 %v402, 1.442695
    %v406 = vpow.pop %v405
    %v407 = vsel %vm394, %v404, 0.0
    %408 = vadd.xlane.f32.xlu0 %v407
    %v409 = vpop.xlane.xlu0 %408
    %v410 = vsel %vm394, %v406, 0.0
    %411 = vadd.xlane.f32.xlu0 %v410
    %v412 = vpop.xlane.xlu0 %411
    %v413 = vrcp.pop %v409
    %v414 = vmul.f32 %v404, %v413
    %v415 = vrcp.pop %v412
    %v416 = vmul.f32 %v406, %v415
    %v417 = vpack.c.bf16 %v416, %v414
    %v419 = vsel %vm394, %v417, 0
    %421 = vmatprep.subr.bf16.mxu0 0
    %422 = vmatpush1.bf16.msra.mxu0 0
    %423 = vmatprep.subr.bf16.mxu0 0
    %424 = vmatpush1.bf16.msra.mxu0 0
    %425 = vmatprep.subr.bf16.mxu0 0
    %426 = vmatpush1.bf16.msra.mxu0 0
    %427 = vmatprep.subr.bf16.mxu0 0
    %428 = vmatpush1.bf16.msra.mxu0 0
    %429 = vmatprep.subr.bf16.mxu0 0
    %430 = vmatpush1.bf16.msra.mxu0 0
    %431 = vmatprep.subr.bf16.mxu0 0
    %432 = vmatpush1.bf16.msra.mxu0 0
    %433 = vmatprep.subr.bf16.mxu0 0
    %434 = vmatpush1.bf16.msra.mxu0 0
    %435 = vmatprep.subr.bf16.mxu0 0
    %436 = vmatpush1.bf16.msra.mxu0 %v345
    %437 = vmatprep.subr.bf16.mxu0 0
    %438 = vmatpush2.bf16.msra.mxu0 0
    %439 = vmatprep.subr.bf16.mxu0 0
    %440 = vmatpush2.bf16.msra.mxu0 0
    %441 = vmatprep.subr.bf16.mxu0 0
    %442 = vmatpush2.bf16.msra.mxu0 0
    %443 = vmatprep.subr.bf16.mxu0 0
    %444 = vmatpush2.bf16.msra.mxu0 0
    %445 = vmatprep.subr.bf16.mxu0 0
    %446 = vmatpush2.bf16.msra.mxu0 0
    %447 = vmatprep.subr.bf16.mxu0 0
    %448 = vmatpush2.bf16.msra.mxu0 0
    %449 = vmatprep.subr.bf16.mxu0 0
    %450 = vmatpush2.bf16.msra.mxu0 0
    %451 = vmatprep.subr.bf16.mxu0 0
    %452 = vmatpush2.bf16.msra.mxu0 0
    %453 = vmatprep.mubr.bf16.mxu0 0
    %454 = vmatmul.mubr.bf16.gmra.mxu0 %v419
    %v455 = vpop.f32.mrf.mxu0
    %v456 = vadd.f32 0.0, %v455
    %v457 = vpop.f32.mrf.mxu0
    %v458 = vpop.f32.mrf.mxu0
    %v459 = vadd.f32 0.0, %v458
    %v460 = vpop.f32.mrf.mxu0
    %461 = vdwg.mxu0
    %v462 = vpack.c.bf16 %v459, %v456
    %464 = vrot.lane.b32.xlu0 %v343, 96
    %v465 = vpop.permute.xlu0 %464
    %467 = vrot.lane.b32.xlu0 %v344, 96
    %v468 = vpop.permute.xlu0 %467
    %v470 = vsel %vm346, %v465, 0
    %v473 = vsel %vm346, %v468, 0
    %475 = vmatprep.subr.bf16.mxu0 0
    %476 = vmatpush1.bf16.xpose.msra.mxu0 0
    %477 = vmatprep.subr.bf16.mxu0 0
    %478 = vmatpush1.bf16.xpose.msra.mxu0 0
    %479 = vmatprep.subr.bf16.mxu0 0
    %480 = vmatpush1.bf16.xpose.msra.mxu0 0
    %481 = vmatprep.subr.bf16.mxu0 0
    %482 = vmatpush1.bf16.xpose.msra.mxu0 0
    %483 = vmatprep.subr.bf16.mxu0 0
    %484 = vmatpush1.bf16.xpose.msra.mxu0 0
    %485 = vmatprep.subr.bf16.mxu0 0
    %486 = vmatpush1.bf16.xpose.msra.mxu0 0
    %487 = vmatprep.subr.bf16.mxu0 0
    %488 = vmatpush1.bf16.xpose.msra.mxu0 0
    %489 = vmatprep.subr.bf16.mxu0 0
    %490 = vmatpush1.bf16.xpose.msra.mxu0 %v473
    %491 = vmatprep.subr.bf16.mxu0 0
    %492 = vmatpush2.bf16.xpose.msra.mxu0 0
    %493 = vmatprep.subr.bf16.mxu0 0
    %494 = vmatpush2.bf16.xpose.msra.mxu0 0
    %495 = vmatprep.subr.bf16.mxu0 0
    %496 = vmatpush2.bf16.xpose.msra.mxu0 0
    %497 = vmatprep.subr.bf16.mxu0 0
    %498 = vmatpush2.bf16.xpose.msra.mxu0 0
    %499 = vmatprep.subr.bf16.mxu0 0
    %500 = vmatpush2.bf16.xpose.msra.mxu0 0
    %501 = vmatprep.subr.bf16.mxu0 0
    %502 = vmatpush2.bf16.xpose.msra.mxu0 0
    %503 = vmatprep.subr.bf16.mxu0 0
    %504 = vmatpush2.bf16.xpose.msra.mxu0 0
    %505 = vmatprep.subr.bf16.mxu0 0
    %506 = vmatpush2.bf16.xpose.msra.mxu0 0
    %507 = vmatprep.mubr.bf16.mxu0 0
    %508 = vmatmul.mubr.bf16.gmra.mxu0 %v470
    %v509 = vpop.f32.mrf.mxu0
    %v510 = vadd.f32 %v62, %v509
    %v511 = vpop.f32.mrf.mxu0
    %v512 = vpop.f32.mrf.mxu0
    %v513 = vadd.f32 %v63, %v512
    %v514 = vpop.f32.mrf.mxu0
    %515 = vdwg.mxu0
    %v516 = vsel %vm394, %v510, -inf
    %517 = vmax.xlane.f32.xlu0 %v516
    %v518 = vpop.xlane.xlu0 %517
    %v519 = vsel %vm394, %v513, -inf
    %520 = vmax.xlane.f32.xlu0 %v519
    %v521 = vpop.xlane.xlu0 %520
    %v522 = vsub.f32 %v510, %v518
    %v523 = vsub.f32 %v513, %v521
    %v524 = vmul.f32 %v522, 1.442695
    %v525 = vpow.pop %v524
    %v526 = vmul.f32 %v523, 1.442695
    %v527 = vpow.pop %v526
    %v528 = vsel %vm394, %v525, 0.0
    %529 = vadd.xlane.f32.xlu0 %v528
    %v530 = vpop.xlane.xlu0 %529
    %v531 = vsel %vm394, %v527, 0.0
    %532 = vadd.xlane.f32.xlu0 %v531
    %v533 = vpop.xlane.xlu0 %532
    %v534 = vrcp.pop %v530
    %v535 = vmul.f32 %v525, %v534
    %v536 = vrcp.pop %v533
    %v537 = vmul.f32 %v527, %v536
    %v538 = vpack.c.bf16 %v537, %v535
    %540 = vrot.lane.b32.xlu0 %v345, 96
    %v541 = vpop.permute.xlu0 %540
    %v544 = vsel %vm394, %v538, 0
    %546 = vmatprep.subr.bf16.mxu0 0
    %547 = vmatpush1.bf16.msra.mxu0 0
    %548 = vmatprep.subr.bf16.mxu0 0
    %549 = vmatpush1.bf16.msra.mxu0 0
    %550 = vmatprep.subr.bf16.mxu0 0
    %551 = vmatpush1.bf16.msra.mxu0 0
    %552 = vmatprep.subr.bf16.mxu0 0
    %553 = vmatpush1.bf16.msra.mxu0 0
    %554 = vmatprep.subr.bf16.mxu0 0
    %555 = vmatpush1.bf16.msra.mxu0 0
    %556 = vmatprep.subr.bf16.mxu0 0
    %557 = vmatpush1.bf16.msra.mxu0 0
    %558 = vmatprep.subr.bf16.mxu0 0
    %559 = vmatpush1.bf16.msra.mxu0 0
    %560 = vmatprep.subr.bf16.mxu0 0
    %561 = vmatpush1.bf16.msra.mxu0 %v541
    %562 = vmatprep.subr.bf16.mxu0 0
    %563 = vmatpush2.bf16.msra.mxu0 0
    %564 = vmatprep.subr.bf16.mxu0 0
    %565 = vmatpush2.bf16.msra.mxu0 0
    %566 = vmatprep.subr.bf16.mxu0 0
    %567 = vmatpush2.bf16.msra.mxu0 0
    %568 = vmatprep.subr.bf16.mxu0 0
    %569 = vmatpush2.bf16.msra.mxu0 0
    %570 = vmatprep.subr.bf16.mxu0 0
    %571 = vmatpush2.bf16.msra.mxu0 0
    %572 = vmatprep.subr.bf16.mxu0 0
    %573 = vmatpush2.bf16.msra.mxu0 0
    %574 = vmatprep.subr.bf16.mxu0 0
    %575 = vmatpush2.bf16.msra.mxu0 0
    %576 = vmatprep.subr.bf16.mxu0 0
    %577 = vmatpush2.bf16.msra.mxu0 0
    %578 = vmatprep.mubr.bf16.mxu0 0
    %579 = vmatmul.mubr.bf16.gmra.mxu0 %v544
    %v580 = vpop.f32.mrf.mxu0
    %v581 = vadd.f32 0.0, %v580
    %v582 = vpop.f32.mrf.mxu0
    %v583 = vpop.f32.mrf.mxu0
    %v584 = vadd.f32 0.0, %v583
    %v585 = vpop.f32.mrf.mxu0
    %586 = vdwg.mxu0
    %v587 = vpack.c.bf16 %v584, %v581
    %v592 = vunpack.c.l.b16 %v331
    %v593 = vunpack.c.l.b16 %v332
    %v594 = vunpack.c.l.b16 %v333
    %v595 = vunpack.c.l.b16 %v334
    %v596 = vpack.c.b16 %v593, %v592
    %v597 = vpack.c.b16 %v595, %v594
    %v601 = vsel %vm346, %v587, 0
    %603 = vmatprep.subr.bf16.mxu0 0
    %604 = vmatpush1.bf16.msra.mxu0 0
    %605 = vmatprep.subr.bf16.mxu0 0
    %606 = vmatpush1.bf16.msra.mxu0 0
    %607 = vmatprep.subr.bf16.mxu0 0
    %608 = vmatpush1.bf16.msra.mxu0 0
    %609 = vmatprep.subr.bf16.mxu0 0
    %610 = vmatpush1.bf16.msra.mxu0 0
    %611 = vmatprep.subr.bf16.mxu0 0
    %612 = vmatpush1.bf16.msra.mxu0 0
    %613 = vmatprep.subr.bf16.mxu0 0
    %614 = vmatpush1.bf16.msra.mxu0 0
    %615 = vmatprep.subr.bf16.mxu0 0
    %616 = vmatpush1.bf16.msra.mxu0 %v597
    %617 = vmatprep.subr.bf16.mxu0 0
    %618 = vmatpush1.bf16.msra.mxu0 %v596
    %619 = vmatprep.subr.bf16.mxu0 0
    %620 = vmatpush2.bf16.msra.mxu0 0
    %621 = vmatprep.subr.bf16.mxu0 0
    %622 = vmatpush2.bf16.msra.mxu0 0
    %623 = vmatprep.subr.bf16.mxu0 0
    %624 = vmatpush2.bf16.msra.mxu0 0
    %625 = vmatprep.subr.bf16.mxu0 0
    %626 = vmatpush2.bf16.msra.mxu0 0
    %627 = vmatprep.subr.bf16.mxu0 0
    %628 = vmatpush2.bf16.msra.mxu0 0
    %629 = vmatprep.subr.bf16.mxu0 0
    %630 = vmatpush2.bf16.msra.mxu0 0
    %631 = vmatprep.subr.bf16.mxu0 0
    %632 = vmatpush2.bf16.msra.mxu0 0
    %633 = vmatprep.subr.bf16.mxu0 0
    %634 = vmatpush2.bf16.msra.mxu0 0
    %635 = vmatprep.mubr.bf16.mxu0 0
    %636 = vmatmul.mubr.bf16.gmra.mxu0 %v601
    %v637 = vpop.f32.mrf.mxu0
    %v638 = vadd.f32 0.0, %v637
    %v639 = vpop.f32.mrf.mxu0
    %v640 = vpop.f32.mrf.mxu0
    %v641 = vadd.f32 0.0, %v640
    %v642 = vpop.f32.mrf.mxu0
    %643 = vdwg.mxu0
    %v648 = vunpack.c.l.b16 %v327
    %v649 = vunpack.c.l.b16 %v328
    %v650 = vunpack.c.l.b16 %v329
    %v651 = vunpack.c.l.b16 %v330
    %v652 = vpack.c.b16 %v649, %v648
    %v653 = vpack.c.b16 %v651, %v650
    %v657 = vsel %vm346, %v462, 0
    %659 = vmatprep.subr.bf16.mxu0 0
    %660 = vmatpush1.bf16.msra.mxu0 0
    %661 = vmatprep.subr.bf16.mxu0 0
    %662 = vmatpush1.bf16.msra.mxu0 0
    %663 = vmatprep.subr.bf16.mxu0 0
    %664 = vmatpush1.bf16.msra.mxu0 0
    %665 = vmatprep.subr.bf16.mxu0 0
    %666 = vmatpush1.bf16.msra.mxu0 0
    %667 = vmatprep.subr.bf16.mxu0 0
    %668 = vmatpush1.bf16.msra.mxu0 0
    %669 = vmatprep.subr.bf16.mxu0 0
    %670 = vmatpush1.bf16.msra.mxu0 0
    %671 = vmatprep.subr.bf16.mxu0 0
    %672 = vmatpush1.bf16.msra.mxu0 %v653
    %673 = vmatprep.subr.bf16.mxu0 0
    %674 = vmatpush1.bf16.msra.mxu0 %v652
    %675 = vmatprep.subr.bf16.mxu0 0
    %676 = vmatpush2.bf16.msra.mxu0 0
    %677 = vmatprep.subr.bf16.mxu0 0
    %678 = vmatpush2.bf16.msra.mxu0 0
    %679 = vmatprep.subr.bf16.mxu0 0
    %680 = vmatpush2.bf16.msra.mxu0 0
    %681 = vmatprep.subr.bf16.mxu0 0
    %682 = vmatpush2.bf16.msra.mxu0 0
    %683 = vmatprep.subr.bf16.mxu0 0
    %684 = vmatpush2.bf16.msra.mxu0 0
    %685 = vmatprep.subr.bf16.mxu0 0
    %686 = vmatpush2.bf16.msra.mxu0 0
    %687 = vmatprep.subr.bf16.mxu0 0
    %688 = vmatpush2.bf16.msra.mxu0 0
    %689 = vmatprep.subr.bf16.mxu0 0
    %690 = vmatpush2.bf16.msra.mxu0 0
    %691 = vmatprep.mubr.bf16.mxu0 0
    %692 = vmatmul.mubr.bf16.gmra.mxu0 %v657
    %v693 = vpop.f32.mrf.mxu0
    %v694 = vadd.f32 %v638, %v693
    %v695 = vpop.f32.mrf.mxu0
    %v696 = vpop.f32.mrf.mxu0
    %v697 = vadd.f32 %v641, %v696
    %v698 = vpop.f32.mrf.mxu0
    %699 = vdwg.mxu0
    %700 = vrot.lane.b32.xlu0 %v343, 64
    %v701 = vpop.permute.xlu0 %700
    %702 = vrot.lane.b32.xlu0 %v344, 64
    %v703 = vpop.permute.xlu0 %702
    %v705 = vsel %vm346, %v701, 0
    %v708 = vsel %vm346, %v703, 0
    %710 = vmatprep.subr.bf16.mxu0 0
    %711 = vmatpush1.bf16.xpose.msra.mxu0 0
    %712 = vmatprep.subr.bf16.mxu0 0
    %713 = vmatpush1.bf16.xpose.msra.mxu0 0
    %714 = vmatprep.subr.bf16.mxu0 0
    %715 = vmatpush1.bf16.xpose.msra.mxu0 0
    %716 = vmatprep.subr.bf16.mxu0 0
    %717 = vmatpush1.bf16.xpose.msra.mxu0 0
    %718 = vmatprep.subr.bf16.mxu0 0
    %719 = vmatpush1.bf16.xpose.msra.mxu0 0
    %720 = vmatprep.subr.bf16.mxu0 0
    %721 = vmatpush1.bf16.xpose.msra.mxu0 0
    %722 = vmatprep.subr.bf16.mxu0 0
    %723 = vmatpush1.bf16.xpose.msra.mxu0 0
    %724 = vmatprep.subr.bf16.mxu0 0
    %725 = vmatpush1.bf16.xpose.msra.mxu0 %v708
    %726 = vmatprep.subr.bf16.mxu0 0
    %727 = vmatpush2.bf16.xpose.msra.mxu0 0
    %728 = vmatprep.subr.bf16.mxu0 0
    %729 = vmatpush2.bf16.xpose.msra.mxu0 0
    %730 = vmatprep.subr.bf16.mxu0 0
    %731 = vmatpush2.bf16.xpose.msra.mxu0 0
    %732 = vmatprep.subr.bf16.mxu0 0
    %733 = vmatpush2.bf16.xpose.msra.mxu0 0
    %734 = vmatprep.subr.bf16.mxu0 0
    %735 = vmatpush2.bf16.xpose.msra.mxu0 0
    %736 = vmatprep.subr.bf16.mxu0 0
    %737 = vmatpush2.bf16.xpose.msra.mxu0 0
    %738 = vmatprep.subr.bf16.mxu0 0
    %739 = vmatpush2.bf16.xpose.msra.mxu0 0
    %740 = vmatprep.subr.bf16.mxu0 0
    %741 = vmatpush2.bf16.xpose.msra.mxu0 0
    %742 = vmatprep.mubr.bf16.mxu0 0
    %743 = vmatmul.mubr.bf16.gmra.mxu0 %v705
    %v744 = vpop.f32.mrf.mxu0
    %v745 = vadd.f32 %v62, %v744
    %v746 = vpop.f32.mrf.mxu0
    %v747 = vpop.f32.mrf.mxu0
    %v748 = vadd.f32 %v63, %v747
    %v749 = vpop.f32.mrf.mxu0
    %750 = vdwg.mxu0
    %v751 = vsel %vm394, %v745, -inf
    %752 = vmax.xlane.f32.xlu0 %v751
    %v753 = vpop.xlane.xlu0 %752
    %v754 = vsel %vm394, %v748, -inf
    %755 = vmax.xlane.f32.xlu0 %v754
    %v756 = vpop.xlane.xlu0 %755
    %v757 = vsub.f32 %v745, %v753
    %v758 = vsub.f32 %v748, %v756
    %v759 = vmul.f32 %v757, 1.442695
    %v760 = vpow.pop %v759
    %v761 = vmul.f32 %v758, 1.442695
    %v762 = vpow.pop %v761
    %v763 = vsel %vm394, %v760, 0.0
    %764 = vadd.xlane.f32.xlu0 %v763
    %v765 = vpop.xlane.xlu0 %764
    %v766 = vsel %vm394, %v762, 0.0
    %767 = vadd.xlane.f32.xlu0 %v766
    %v768 = vpop.xlane.xlu0 %767
    %v769 = vrcp.pop %v765
    %v770 = vmul.f32 %v760, %v769
    %v771 = vrcp.pop %v768
    %v772 = vmul.f32 %v762, %v771
    %v773 = vpack.c.bf16 %v772, %v770
    %774 = vrot.lane.b32.xlu0 %v345, 64
    %v775 = vpop.permute.xlu0 %774
    %v778 = vsel %vm394, %v773, 0
    %780 = vmatprep.subr.bf16.mxu0 0
    %781 = vmatpush1.bf16.msra.mxu0 0
    %782 = vmatprep.subr.bf16.mxu0 0
    %783 = vmatpush1.bf16.msra.mxu0 0
    %784 = vmatprep.subr.bf16.mxu0 0
    %785 = vmatpush1.bf16.msra.mxu0 0
    %786 = vmatprep.subr.bf16.mxu0 0
    %787 = vmatpush1.bf16.msra.mxu0 0
    %788 = vmatprep.subr.bf16.mxu0 0
    %789 = vmatpush1.bf16.msra.mxu0 0
    %790 = vmatprep.subr.bf16.mxu0 0
    %791 = vmatpush1.bf16.msra.mxu0 0
    %792 = vmatprep.subr.bf16.mxu0 0
    %793 = vmatpush1.bf16.msra.mxu0 0
    %794 = vmatprep.subr.bf16.mxu0 0
    %795 = vmatpush1.bf16.msra.mxu0 %v775
    %796 = vmatprep.subr.bf16.mxu0 0
    %797 = vmatpush2.bf16.msra.mxu0 0
    %798 = vmatprep.subr.bf16.mxu0 0
    %799 = vmatpush2.bf16.msra.mxu0 0
    %800 = vmatprep.subr.bf16.mxu0 0
    %801 = vmatpush2.bf16.msra.mxu0 0
    %802 = vmatprep.subr.bf16.mxu0 0
    %803 = vmatpush2.bf16.msra.mxu0 0
    %804 = vmatprep.subr.bf16.mxu0 0
    %805 = vmatpush2.bf16.msra.mxu0 0
    %806 = vmatprep.subr.bf16.mxu0 0
    %807 = vmatpush2.bf16.msra.mxu0 0
    %808 = vmatprep.subr.bf16.mxu0 0
    %809 = vmatpush2.bf16.msra.mxu0 0
    %810 = vmatprep.subr.bf16.mxu0 0
    %811 = vmatpush2.bf16.msra.mxu0 0
    %812 = vmatprep.mubr.bf16.mxu0 0
    %813 = vmatmul.mubr.bf16.gmra.mxu0 %v778
    %v814 = vpop.f32.mrf.mxu0
    %v815 = vadd.f32 0.0, %v814
    %v816 = vpop.f32.mrf.mxu0
    %v817 = vpop.f32.mrf.mxu0
    %v818 = vadd.f32 0.0, %v817
    %v819 = vpop.f32.mrf.mxu0
    %820 = vdwg.mxu0
    %v821 = vpack.c.bf16 %v818, %v815
    %v826 = vunpack.c.l.b16 %v335
    %v827 = vunpack.c.l.b16 %v336
    %v828 = vunpack.c.l.b16 %v337
    %v829 = vunpack.c.l.b16 %v338
    %v830 = vpack.c.b16 %v827, %v826
    %v831 = vpack.c.b16 %v829, %v828
    %v835 = vsel %vm346, %v821, 0
    %837 = vmatprep.subr.bf16.mxu0 0
    %838 = vmatpush1.bf16.msra.mxu0 0
    %839 = vmatprep.subr.bf16.mxu0 0
    %840 = vmatpush1.bf16.msra.mxu0 0
    %841 = vmatprep.subr.bf16.mxu0 0
    %842 = vmatpush1.bf16.msra.mxu0 0
    %843 = vmatprep.subr.bf16.mxu0 0
    %844 = vmatpush1.bf16.msra.mxu0 0
    %845 = vmatprep.subr.bf16.mxu0 0
    %846 = vmatpush1.bf16.msra.mxu0 0
    %847 = vmatprep.subr.bf16.mxu0 0
    %848 = vmatpush1.bf16.msra.mxu0 0
    %849 = vmatprep.subr.bf16.mxu0 0
    %850 = vmatpush1.bf16.msra.mxu0 %v831
    %851 = vmatprep.subr.bf16.mxu0 0
    %852 = vmatpush1.bf16.msra.mxu0 %v830
    %853 = vmatprep.subr.bf16.mxu0 0
    %854 = vmatpush2.bf16.msra.mxu0 0
    %855 = vmatprep.subr.bf16.mxu0 0
    %856 = vmatpush2.bf16.msra.mxu0 0
    %857 = vmatprep.subr.bf16.mxu0 0
    %858 = vmatpush2.bf16.msra.mxu0 0
    %859 = vmatprep.subr.bf16.mxu0 0
    %860 = vmatpush2.bf16.msra.mxu0 0
    %861 = vmatprep.subr.bf16.mxu0 0
    %862 = vmatpush2.bf16.msra.mxu0 0
    %863 = vmatprep.subr.bf16.mxu0 0
    %864 = vmatpush2.bf16.msra.mxu0 0
    %865 = vmatprep.subr.bf16.mxu0 0
    %866 = vmatpush2.bf16.msra.mxu0 0
    %867 = vmatprep.subr.bf16.mxu0 0
    %868 = vmatpush2.bf16.msra.mxu0 0
    %869 = vmatprep.mubr.bf16.mxu0 0
    %870 = vmatmul.mubr.bf16.gmra.mxu0 %v835
    %v871 = vpop.f32.mrf.mxu0
    %v872 = vadd.f32 0.0, %v871
    %v873 = vpop.f32.mrf.mxu0
    %v874 = vpop.f32.mrf.mxu0
    %v875 = vadd.f32 0.0, %v874
    %v876 = vpop.f32.mrf.mxu0
    %877 = vdwg.mxu0
    %v878 = vadd.f32 %v694, %v872
    %v879 = vadd.f32 %v697, %v875
    %880 = vrot.lane.b32.xlu0 %v343, 32
    %v881 = vpop.permute.xlu0 %880
    %882 = vrot.lane.b32.xlu0 %v344, 32
    %v883 = vpop.permute.xlu0 %882
    %v885 = vsel %vm346, %v881, 0
    %v888 = vsel %vm346, %v883, 0
    %890 = vmatprep.subr.bf16.mxu0 0
    %891 = vmatpush1.bf16.xpose.msra.mxu0 0
    %892 = vmatprep.subr.bf16.mxu0 0
    %893 = vmatpush1.bf16.xpose.msra.mxu0 0
    %894 = vmatprep.subr.bf16.mxu0 0
    %895 = vmatpush1.bf16.xpose.msra.mxu0 0
    %896 = vmatprep.subr.bf16.mxu0 0
    %897 = vmatpush1.bf16.xpose.msra.mxu0 0
    %898 = vmatprep.subr.bf16.mxu0 0
    %899 = vmatpush1.bf16.xpose.msra.mxu0 0
    %900 = vmatprep.subr.bf16.mxu0 0
    %901 = vmatpush1.bf16.xpose.msra.mxu0 0
    %902 = vmatprep.subr.bf16.mxu0 0
    %903 = vmatpush1.bf16.xpose.msra.mxu0 0
    %904 = vmatprep.subr.bf16.mxu0 0
    %905 = vmatpush1.bf16.xpose.msra.mxu0 %v888
    %906 = vmatprep.subr.bf16.mxu0 0
    %907 = vmatpush2.bf16.xpose.msra.mxu0 0
    %908 = vmatprep.subr.bf16.mxu0 0
    %909 = vmatpush2.bf16.xpose.msra.mxu0 0
    %910 = vmatprep.subr.bf16.mxu0 0
    %911 = vmatpush2.bf16.xpose.msra.mxu0 0
    %912 = vmatprep.subr.bf16.mxu0 0
    %913 = vmatpush2.bf16.xpose.msra.mxu0 0
    %914 = vmatprep.subr.bf16.mxu0 0
    %915 = vmatpush2.bf16.xpose.msra.mxu0 0
    %916 = vmatprep.subr.bf16.mxu0 0
    %917 = vmatpush2.bf16.xpose.msra.mxu0 0
    %918 = vmatprep.subr.bf16.mxu0 0
    %919 = vmatpush2.bf16.xpose.msra.mxu0 0
    %920 = vmatprep.subr.bf16.mxu0 0
    %921 = vmatpush2.bf16.xpose.msra.mxu0 0
    %922 = vmatprep.mubr.bf16.mxu0 0
    %923 = vmatmul.mubr.bf16.gmra.mxu0 %v885
    %v924 = vpop.f32.mrf.mxu0
    %v925 = vadd.f32 %v62, %v924
    %v926 = vpop.f32.mrf.mxu0
    %v927 = vpop.f32.mrf.mxu0
    %v928 = vadd.f32 %v63, %v927
    %v929 = vpop.f32.mrf.mxu0
    %930 = vdwg.mxu0
    %v931 = vsel %vm394, %v925, -inf
    %932 = vmax.xlane.f32.xlu0 %v931
    %v933 = vpop.xlane.xlu0 %932
    %v934 = vsel %vm394, %v928, -inf
    %935 = vmax.xlane.f32.xlu0 %v934
    %v936 = vpop.xlane.xlu0 %935
    %v937 = vsub.f32 %v925, %v933
    %v938 = vsub.f32 %v928, %v936
    %v939 = vmul.f32 %v937, 1.442695
    %v940 = vpow.pop %v939
    %v941 = vmul.f32 %v938, 1.442695
    %v942 = vpow.pop %v941
    %v943 = vsel %vm394, %v940, 0.0
    %944 = vadd.xlane.f32.xlu0 %v943
    %v945 = vpop.xlane.xlu0 %944
    %v946 = vsel %vm394, %v942, 0.0
    %947 = vadd.xlane.f32.xlu0 %v946
    %v948 = vpop.xlane.xlu0 %947
    %v949 = vrcp.pop %v945
    %v950 = vmul.f32 %v940, %v949
    %v951 = vrcp.pop %v948
    %v952 = vmul.f32 %v942, %v951
    %v953 = vpack.c.bf16 %v952, %v950
    %954 = vrot.lane.b32.xlu0 %v345, 32
    %v955 = vpop.permute.xlu0 %954
    %v958 = vsel %vm394, %v953, 0
    %960 = vmatprep.subr.bf16.mxu0 0
    %961 = vmatpush1.bf16.msra.mxu0 0
    %962 = vmatprep.subr.bf16.mxu0 0
    %963 = vmatpush1.bf16.msra.mxu0 0
    %964 = vmatprep.subr.bf16.mxu0 0
    %965 = vmatpush1.bf16.msra.mxu0 0
    %966 = vmatprep.subr.bf16.mxu0 0
    %967 = vmatpush1.bf16.msra.mxu0 0
    %968 = vmatprep.subr.bf16.mxu0 0
    %969 = vmatpush1.bf16.msra.mxu0 0
    %970 = vmatprep.subr.bf16.mxu0 0
    %971 = vmatpush1.bf16.msra.mxu0 0
    %972 = vmatprep.subr.bf16.mxu0 0
    %973 = vmatpush1.bf16.msra.mxu0 0
    %974 = vmatprep.subr.bf16.mxu0 0
    %975 = vmatpush1.bf16.msra.mxu0 %v955
    %976 = vmatprep.subr.bf16.mxu0 0
    %977 = vmatpush2.bf16.msra.mxu0 0
    %978 = vmatprep.subr.bf16.mxu0 0
    %979 = vmatpush2.bf16.msra.mxu0 0
    %980 = vmatprep.subr.bf16.mxu0 0
    %981 = vmatpush2.bf16.msra.mxu0 0
    %982 = vmatprep.subr.bf16.mxu0 0
    %983 = vmatpush2.bf16.msra.mxu0 0
    %984 = vmatprep.subr.bf16.mxu0 0
    %985 = vmatpush2.bf16.msra.mxu0 0
    %986 = vmatprep.subr.bf16.mxu0 0
    %987 = vmatpush2.bf16.msra.mxu0 0
    %988 = vmatprep.subr.bf16.mxu0 0
    %989 = vmatpush2.bf16.msra.mxu0 0
    %990 = vmatprep.subr.bf16.mxu0 0
    %991 = vmatpush2.bf16.msra.mxu0 0
    %992 = vmatprep.mubr.bf16.mxu0 0
    %993 = vmatmul.mubr.bf16.gmra.mxu0 %v958
    %v994 = vpop.f32.mrf.mxu0
    %v995 = vadd.f32 0.0, %v994
    %v996 = vpop.f32.mrf.mxu0
    %v997 = vpop.f32.mrf.mxu0
    %v998 = vadd.f32 0.0, %v997
    %v999 = vpop.f32.mrf.mxu0
    %1000 = vdwg.mxu0
    %v1001 = vpack.c.bf16 %v998, %v995
    %v1006 = vunpack.c.l.b16 %v339
    %v1007 = vunpack.c.l.b16 %v340
    %v1008 = vunpack.c.l.b16 %v341
    %v1009 = vunpack.c.l.b16 %v342
    %v1010 = vpack.c.b16 %v1007, %v1006
    %v1011 = vpack.c.b16 %v1009, %v1008
    %v1015 = vsel %vm346, %v1001, 0
    %1017 = vmatprep.subr.bf16.mxu0 0
    %1018 = vmatpush1.bf16.msra.mxu0 0
    %1019 = vmatprep.subr.bf16.mxu0 0
    %1020 = vmatpush1.bf16.msra.mxu0 0
    %1021 = vmatprep.subr.bf16.mxu0 0
    %1022 = vmatpush1.bf16.msra.mxu0 0
    %1023 = vmatprep.subr.bf16.mxu0 0
    %1024 = vmatpush1.bf16.msra.mxu0 0
    %1025 = vmatprep.subr.bf16.mxu0 0
    %1026 = vmatpush1.bf16.msra.mxu0 0
    %1027 = vmatprep.subr.bf16.mxu0 0
    %1028 = vmatpush1.bf16.msra.mxu0 0
    %1029 = vmatprep.subr.bf16.mxu0 0
    %1030 = vmatpush1.bf16.msra.mxu0 %v1011
    %1031 = vmatprep.subr.bf16.mxu0 0
    %1032 = vmatpush1.bf16.msra.mxu0 %v1010
    %1033 = vmatprep.subr.bf16.mxu0 0
    %1034 = vmatpush2.bf16.msra.mxu0 0
    %1035 = vmatprep.subr.bf16.mxu0 0
    %1036 = vmatpush2.bf16.msra.mxu0 0
    %1037 = vmatprep.subr.bf16.mxu0 0
    %1038 = vmatpush2.bf16.msra.mxu0 0
    %1039 = vmatprep.subr.bf16.mxu0 0
    %1040 = vmatpush2.bf16.msra.mxu0 0
    %1041 = vmatprep.subr.bf16.mxu0 0
    %1042 = vmatpush2.bf16.msra.mxu0 0
    %1043 = vmatprep.subr.bf16.mxu0 0
    %1044 = vmatpush2.bf16.msra.mxu0 0
    %1045 = vmatprep.subr.bf16.mxu0 0
    %1046 = vmatpush2.bf16.msra.mxu0 0
    %1047 = vmatprep.subr.bf16.mxu0 0
    %1048 = vmatpush2.bf16.msra.mxu0 0
    %1049 = vmatprep.mubr.bf16.mxu0 0
    %1050 = vmatmul.mubr.bf16.gmra.mxu0 %v1015
    %v1051 = vpop.f32.mrf.mxu0
    %v1052 = vadd.f32 0.0, %v1051
    %v1053 = vpop.f32.mrf.mxu0
    %v1054 = vpop.f32.mrf.mxu0
    %v1055 = vadd.f32 0.0, %v1054
    %v1056 = vpop.f32.mrf.mxu0
    %1057 = vdwg.mxu0
    %v1058 = vadd.f32 %v878, %v1052
    %v1059 = vadd.f32 %v879, %v1055
    %v1060 = vld [vmem:[%s2 + $0x5] ss:$0 sm:$0xff]
    %v1061 = vadd.f32 %v1058, %v1060
    %v1062 = vadd.f32 %v1059, %v1060
    %v1063 = vadd.f32 %v1061, %v60
    %v1064 = vadd.f32 %v1062, %v61
    %v1065 = vld [vmem:[%s2 + $0x6] ss:$0 sm:$0xff]
    %v1066 = vld [vmem:[%s2 + $0x7] ss:$0 sm:$0xff]
    %1067 = vadd.xlane.f32.xlu0 %v1063
    %v1068 = vpop.xlane.xlu0 %1067
    %1069 = vadd.xlane.f32.xlu0 %v1064
    %v1070 = vpop.xlane.xlu0 %1069
    %v1071 = vmul.f32 %v1068, %v39
    %v1072 = vmul.f32 %v1070, %v39
    %v1073 = vsub.f32 %v1063, %v1071
    %v1074 = vsub.f32 %v1064, %v1072
    %v1075 = vmul.f32 %v1073, %v1073
    %v1076 = vmul.f32 %v1074, %v1074
    %1077 = vadd.xlane.f32.xlu0 %v1075
    %v1078 = vpop.xlane.xlu0 %1077
    %1079 = vadd.xlane.f32.xlu0 %v1076
    %v1080 = vpop.xlane.xlu0 %1079
    %v1081 = vmul.f32 %v1078, %v39
    %v1082 = vmul.f32 %v1080, %v39
    %v1083 = vadd.f32 %v1081, 1e-12
    %v1084 = vadd.f32 %v1082, 1e-12
    %v1085 = vrsqrt.pop %v1083
    %v1086 = vrsqrt.pop %v1084
    %v1087 = vmul.f32 %v1073, %v1085
    %v1088 = vmul.f32 %v1074, %v1086
    %v1089 = vmul.f32 %v1087, %v1065
    %v1090 = vmul.f32 %v1088, %v1065
    %v1091 = vadd.f32 %v1089, %v1066
    %v1092 = vadd.f32 %v1090, %v1066
    %v1093 = vpack.c.bf16 %v1092, %v1091
    %v1094 = vld [vmem:[%s5] sm:$0xff]
    %v1095 = vld [vmem:[%s5 + $0x8] sm:$0xff]
    %v1096 = vld [vmem:[%s5 + $0x10] sm:$0xff]
    %v1097 = vld [vmem:[%s5 + $0x18] sm:$0xff]
    %v1098 = vld [vmem:[%s5 + $0x20] sm:$0xff]
    %v1099 = vld [vmem:[%s5 + $0x28] sm:$0xff]
    %v1100 = vld [vmem:[%s5 + $0x30] sm:$0xff]
    %v1101 = vld [vmem:[%s5 + $0x38] sm:$0xff]
    %v1102 = vld [vmem:[%s5 + $0x40] sm:$0xff]
    %v1103 = vld [vmem:[%s5 + $0x48] sm:$0xff]
    %v1104 = vld [vmem:[%s5 + $0x50] sm:$0xff]
    %v1105 = vld [vmem:[%s5 + $0x58] sm:$0xff]
    %v1106 = vld [vmem:[%s5 + $0x60] sm:$0xff]
    %v1107 = vld [vmem:[%s5 + $0x68] sm:$0xff]
    %v1108 = vld [vmem:[%s5 + $0x70] sm:$0xff]
    %v1109 = vld [vmem:[%s5 + $0x78] sm:$0xff]
    %s1110 = scalar_lea.vmem %s2, 24
    %v1111 = vld [vmem:[%s1110] ss:$8 sm:$0x3]
    %v1113 = vlaneseq
    %v1114 = vshrl.u32 %v1113, 7
    %v1115 = vsub.s32 0, %v1114
    %v1116 = vrot.slane %v1111, %v1115
    %v1117 = vlaneseq
    %v1118 = vshrl.u32 %v1117, 7
    %v1119 = vsub.s32 1, %v1118
    %v1120 = vrot.slane %v1111, %v1119
    %v1139 = vunpack.c.l.b16 %v1094
    %v1140 = vunpack.c.h.b16 %v1094
    %v1141 = vunpack.c.l.b16 %v1095
    %v1142 = vunpack.c.h.b16 %v1095
    %v1143 = vunpack.c.l.b16 %v1096
    %v1144 = vunpack.c.h.b16 %v1096
    %v1145 = vunpack.c.l.b16 %v1097
    %v1146 = vunpack.c.h.b16 %v1097
    %v1147 = vunpack.c.l.b16 %v1098
    %v1148 = vunpack.c.h.b16 %v1098
    %v1149 = vunpack.c.l.b16 %v1099
    %v1150 = vunpack.c.h.b16 %v1099
    %v1151 = vunpack.c.l.b16 %v1100
    %v1152 = vunpack.c.h.b16 %v1100
    %v1153 = vunpack.c.l.b16 %v1101
    %v1154 = vunpack.c.h.b16 %v1101
    %v1155 = vunpack.c.l.b16 %v1102
    %v1156 = vunpack.c.h.b16 %v1102
    %v1157 = vunpack.c.l.b16 %v1103
    %v1158 = vunpack.c.h.b16 %v1103
    %v1159 = vunpack.c.l.b16 %v1104
    %v1160 = vunpack.c.h.b16 %v1104
    %v1161 = vunpack.c.l.b16 %v1105
    %v1162 = vunpack.c.h.b16 %v1105
    %v1163 = vunpack.c.l.b16 %v1106
    %v1164 = vunpack.c.h.b16 %v1106
    %v1165 = vunpack.c.l.b16 %v1107
    %v1166 = vunpack.c.h.b16 %v1107
    %v1167 = vunpack.c.l.b16 %v1108
    %v1168 = vunpack.c.h.b16 %v1108
    %v1169 = vunpack.c.l.b16 %v1109
    %v1170 = vunpack.c.h.b16 %v1109
    %v1171 = vpack.c.b16 %v1141, %v1139
    %v1172 = vpack.c.b16 %v1142, %v1140
    %v1173 = vpack.c.b16 %v1145, %v1143
    %v1174 = vpack.c.b16 %v1146, %v1144
    %v1175 = vpack.c.b16 %v1149, %v1147
    %v1176 = vpack.c.b16 %v1150, %v1148
    %v1177 = vpack.c.b16 %v1153, %v1151
    %v1178 = vpack.c.b16 %v1154, %v1152
    %v1179 = vpack.c.b16 %v1157, %v1155
    %v1180 = vpack.c.b16 %v1158, %v1156
    %v1181 = vpack.c.b16 %v1161, %v1159
    %v1182 = vpack.c.b16 %v1162, %v1160
    %v1183 = vpack.c.b16 %v1165, %v1163
    %v1184 = vpack.c.b16 %v1166, %v1164
    %v1185 = vpack.c.b16 %v1169, %v1167
    %v1186 = vpack.c.b16 %v1170, %v1168
    %1203 = vmatprep.subr.bf16.mxu0 %v1186
    %1204 = vmatpush1.bf16.msra.mxu0 %v1185
    %1205 = vmatprep.subr.bf16.mxu0 %v1184
    %1206 = vmatpush1.bf16.msra.mxu0 %v1183
    %1207 = vmatprep.subr.bf16.mxu0 %v1182
    %1208 = vmatpush1.bf16.msra.mxu0 %v1181
    %1209 = vmatprep.subr.bf16.mxu0 %v1180
    %1210 = vmatpush1.bf16.msra.mxu0 %v1179
    %1211 = vmatprep.subr.bf16.mxu0 %v1178
    %1212 = vmatpush1.bf16.msra.mxu0 %v1177
    %1213 = vmatprep.subr.bf16.mxu0 %v1176
    %1214 = vmatpush1.bf16.msra.mxu0 %v1175
    %1215 = vmatprep.subr.bf16.mxu0 %v1174
    %1216 = vmatpush1.bf16.msra.mxu0 %v1173
    %1217 = vmatprep.subr.bf16.mxu0 %v1172
    %1218 = vmatpush1.bf16.msra.mxu0 %v1171
    %1219 = vmatprep.subr.bf16.mxu0 0
    %1220 = vmatpush2.bf16.msra.mxu0 0
    %1221 = vmatprep.subr.bf16.mxu0 0
    %1222 = vmatpush2.bf16.msra.mxu0 0
    %1223 = vmatprep.subr.bf16.mxu0 0
    %1224 = vmatpush2.bf16.msra.mxu0 0
    %1225 = vmatprep.subr.bf16.mxu0 0
    %1226 = vmatpush2.bf16.msra.mxu0 0
    %1227 = vmatprep.subr.bf16.mxu0 0
    %1228 = vmatpush2.bf16.msra.mxu0 0
    %1229 = vmatprep.subr.bf16.mxu0 0
    %1230 = vmatpush2.bf16.msra.mxu0 0
    %1231 = vmatprep.subr.bf16.mxu0 0
    %1232 = vmatpush2.bf16.msra.mxu0 0
    %1233 = vmatprep.subr.bf16.mxu0 0
    %1234 = vmatpush2.bf16.msra.mxu0 0
    %1235 = vmatprep.mubr.bf16.mxu0 0
    %1236 = vmatmul.mubr.bf16.gmra.mxu0 %v1093
    %v1237 = vpop.f32.mrf.mxu0
    %v1238 = vadd.f32 %v1116, %v1237
    %v1239 = vpop.f32.mrf.mxu0
    %v1240 = vadd.f32 %v1120, %v1239
    %v1241 = vpop.f32.mrf.mxu0
    %v1242 = vadd.f32 %v1116, %v1241
    %v1243 = vpop.f32.mrf.mxu0
    %v1244 = vadd.f32 %v1120, %v1243
    %1245 = vdwg.mxu0
    %v1246 = vmul.f32 %v1238, 0.5
    %v1247 = vmul.f32 %v1240, 0.5
    %v1248 = vmul.f32 %v1242, 0.5
    %v1249 = vmul.f32 %v1244, 0.5
    %v1250 = vmul.f32 %v1238, 0.044715
    %v1251 = vmul.f32 %v1240, 0.044715
    %v1252 = vmul.f32 %v1242, 0.044715
    %v1253 = vmul.f32 %v1244, 0.044715
    %v1254 = vmul.f32 %v1250, %v1238
    %v1255 = vmul.f32 %v1251, %v1240
    %v1256 = vmul.f32 %v1252, %v1242
    %v1257 = vmul.f32 %v1253, %v1244
    %v1258 = vmul.f32 %v1254, %v1238
    %v1259 = vmul.f32 %v1255, %v1240
    %v1260 = vmul.f32 %v1256, %v1242
    %v1261 = vmul.f32 %v1257, %v1244
    %v1262 = vadd.f32 %v1238, %v1258
    %v1263 = vadd.f32 %v1240, %v1259
    %v1264 = vadd.f32 %v1242, %v1260
    %v1265 = vadd.f32 %v1244, %v1261
    %v1266 = vmul.f32 %v1262, 0.7978846
    %v1267 = vmul.f32 %v1263, 0.7978846
    %v1268 = vmul.f32 %v1264, 0.7978846
    %v1269 = vmul.f32 %v1265, 0.7978846
    %v1270 = vtanh.pop %v1266
    %v1271 = vtanh.pop %v1267
    %v1272 = vtanh.pop %v1268
    %v1273 = vtanh.pop %v1269
    %v1274 = vadd.f32 %v1270, 1.0
    %v1275 = vadd.f32 %v1271, 1.0
    %v1276 = vadd.f32 %v1272, 1.0
    %v1277 = vadd.f32 %v1273, 1.0
    %v1278 = vmul.f32 %v1246, %v1274
    %v1279 = vmul.f32 %v1247, %v1275
    %v1280 = vmul.f32 %v1248, %v1276
    %v1281 = vmul.f32 %v1249, %v1277
    %v1282 = vpack.c.bf16 %v1280, %v1278
    %v1283 = vpack.c.bf16 %v1281, %v1279
    %v1284 = vld [vmem:[%s6] sm:$0xf]
    %v1285 = vld [vmem:[%s6 + $0x4] sm:$0xf]
    %v1286 = vld [vmem:[%s6 + $0x8] sm:$0xf]
    %v1287 = vld [vmem:[%s6 + $0xc] sm:$0xf]
    %v1288 = vld [vmem:[%s6 + $0x10] sm:$0xf]
    %v1289 = vld [vmem:[%s6 + $0x14] sm:$0xf]
    %v1290 = vld [vmem:[%s6 + $0x18] sm:$0xf]
    %v1291 = vld [vmem:[%s6 + $0x1c] sm:$0xf]
    %v1292 = vld [vmem:[%s6 + $0x20] sm:$0xf]
    %v1293 = vld [vmem:[%s6 + $0x24] sm:$0xf]
    %v1294 = vld [vmem:[%s6 + $0x28] sm:$0xf]
    %v1295 = vld [vmem:[%s6 + $0x2c] sm:$0xf]
    %v1296 = vld [vmem:[%s6 + $0x30] sm:$0xf]
    %v1297 = vld [vmem:[%s6 + $0x34] sm:$0xf]
    %v1298 = vld [vmem:[%s6 + $0x38] sm:$0xf]
    %v1299 = vld [vmem:[%s6 + $0x3c] sm:$0xf]
    %v1300 = vld [vmem:[%s6 + $0x40] sm:$0xf]
    %v1301 = vld [vmem:[%s6 + $0x44] sm:$0xf]
    %v1302 = vld [vmem:[%s6 + $0x48] sm:$0xf]
    %v1303 = vld [vmem:[%s6 + $0x4c] sm:$0xf]
    %v1304 = vld [vmem:[%s6 + $0x50] sm:$0xf]
    %v1305 = vld [vmem:[%s6 + $0x54] sm:$0xf]
    %v1306 = vld [vmem:[%s6 + $0x58] sm:$0xf]
    %v1307 = vld [vmem:[%s6 + $0x5c] sm:$0xf]
    %v1308 = vld [vmem:[%s6 + $0x60] sm:$0xf]
    %v1309 = vld [vmem:[%s6 + $0x64] sm:$0xf]
    %v1310 = vld [vmem:[%s6 + $0x68] sm:$0xf]
    %v1311 = vld [vmem:[%s6 + $0x6c] sm:$0xf]
    %v1312 = vld [vmem:[%s6 + $0x70] sm:$0xf]
    %v1313 = vld [vmem:[%s6 + $0x74] sm:$0xf]
    %v1314 = vld [vmem:[%s6 + $0x78] sm:$0xf]
    %v1315 = vld [vmem:[%s6 + $0x7c] sm:$0xf]
    %v1316 = vld [vmem:[%s2 + $0x19] ss:$0 sm:$0xff]
    %v1349 = vunpack.c.l.b16 %v1284
    %v1350 = vunpack.c.l.b16 %v1285
    %v1351 = vunpack.c.l.b16 %v1286
    %v1352 = vunpack.c.l.b16 %v1287
    %v1353 = vunpack.c.l.b16 %v1288
    %v1354 = vunpack.c.l.b16 %v1289
    %v1355 = vunpack.c.l.b16 %v1290
    %v1356 = vunpack.c.l.b16 %v1291
    %v1357 = vunpack.c.l.b16 %v1292
    %v1358 = vunpack.c.l.b16 %v1293
    %v1359 = vunpack.c.l.b16 %v1294
    %v1360 = vunpack.c.l.b16 %v1295
    %v1361 = vunpack.c.l.b16 %v1296
    %v1362 = vunpack.c.l.b16 %v1297
    %v1363 = vunpack.c.l.b16 %v1298
    %v1364 = vunpack.c.l.b16 %v1299
    %v1365 = vunpack.c.l.b16 %v1300
    %v1366 = vunpack.c.l.b16 %v1301
    %v1367 = vunpack.c.l.b16 %v1302
    %v1368 = vunpack.c.l.b16 %v1303
    %v1369 = vunpack.c.l.b16 %v1304
    %v1370 = vunpack.c.l.b16 %v1305
    %v1371 = vunpack.c.l.b16 %v1306
    %v1372 = vunpack.c.l.b16 %v1307
    %v1373 = vunpack.c.l.b16 %v1308
    %v1374 = vunpack.c.l.b16 %v1309
    %v1375 = vunpack.c.l.b16 %v1310
    %v1376 = vunpack.c.l.b16 %v1311
    %v1377 = vunpack.c.l.b16 %v1312
    %v1378 = vunpack.c.l.b16 %v1313
    %v1379 = vunpack.c.l.b16 %v1314
    %v1380 = vunpack.c.l.b16 %v1315
    %v1381 = vpack.c.b16 %v1350, %v1349
    %v1382 = vpack.c.b16 %v1352, %v1351
    %v1383 = vpack.c.b16 %v1354, %v1353
    %v1384 = vpack.c.b16 %v1356, %v1355
    %v1385 = vpack.c.b16 %v1358, %v1357
    %v1386 = vpack.c.b16 %v1360, %v1359
    %v1387 = vpack.c.b16 %v1362, %v1361
    %v1388 = vpack.c.b16 %v1364, %v1363
    %v1389 = vpack.c.b16 %v1366, %v1365
    %v1390 = vpack.c.b16 %v1368, %v1367
    %v1391 = vpack.c.b16 %v1370, %v1369
    %v1392 = vpack.c.b16 %v1372, %v1371
    %v1393 = vpack.c.b16 %v1374, %v1373
    %v1394 = vpack.c.b16 %v1376, %v1375
    %v1395 = vpack.c.b16 %v1378, %v1377
    %v1396 = vpack.c.b16 %v1380, %v1379
    %1413 = vmatprep.subr.bf16.mxu0 0
    %1414 = vmatpush1.bf16.msra.mxu0 %v1388
    %1415 = vmatprep.subr.bf16.mxu0 0
    %1416 = vmatpush1.bf16.msra.mxu0 %v1387
    %1417 = vmatprep.subr.bf16.mxu0 0
    %1418 = vmatpush1.bf16.msra.mxu0 %v1386
    %1419 = vmatprep.subr.bf16.mxu0 0
    %1420 = vmatpush1.bf16.msra.mxu0 %v1385
    %1421 = vmatprep.subr.bf16.mxu0 0
    %1422 = vmatpush1.bf16.msra.mxu0 %v1384
    %1423 = vmatprep.subr.bf16.mxu0 0
    %1424 = vmatpush1.bf16.msra.mxu0 %v1383
    %1425 = vmatprep.subr.bf16.mxu0 0
    %1426 = vmatpush1.bf16.msra.mxu0 %v1382
    %1427 = vmatprep.subr.bf16.mxu0 0
    %1428 = vmatpush1.bf16.msra.mxu0 %v1381
    %1429 = vmatprep.subr.bf16.mxu0 0
    %1430 = vmatpush2.bf16.msra.mxu0 %v1396
    %1431 = vmatprep.subr.bf16.mxu0 0
    %1432 = vmatpush2.bf16.msra.mxu0 %v1395
    %1433 = vmatprep.subr.bf16.mxu0 0
    %1434 = vmatpush2.bf16.msra.mxu0 %v1394
    %1435 = vmatprep.subr.bf16.mxu0 0
    %1436 = vmatpush2.bf16.msra.mxu0 %v1393
    %1437 = vmatprep.subr.bf16.mxu0 0
    %1438 = vmatpush2.bf16.msra.mxu0 %v1392
    %1439 = vmatprep.subr.bf16.mxu0 0
    %1440 = vmatpush2.bf16.msra.mxu0 %v1391
    %1441 = vmatprep.subr.bf16.mxu0 0
    %1442 = vmatpush2.bf16.msra.mxu0 %v1390
    %1443 = vmatprep.subr.bf16.mxu0 0
    %1444 = vmatpush2.bf16.msra.mxu0 %v1389
    %1445 = vmatprep.mubr.bf16.mxu0 %v1283
    %1446 = vmatmul.mubr.bf16.gmra.mxu0 %v1282
    %v1447 = vpop.f32.mrf.mxu0
    %v1448 = vadd.f32 %v1316, %v1447
    %v1449 = vpop.f32.mrf.mxu0
    %v1450 = vpop.f32.mrf.mxu0
    %v1451 = vadd.f32 %v1316, %v1450
    %v1452 = vpop.f32.mrf.mxu0
    %1453 = vdwg.mxu0
    %v1454 = vadd.f32 %v1448, %v1091
    %v1455 = vadd.f32 %v1451, %v1092
    %v1456 = vld [vmem:[%s2 + $0x1a] ss:$0 sm:$0xff]
    %v1457 = vld [vmem:[%s2 + $0x1b] ss:$0 sm:$0xff]
    %1458 = vadd.xlane.f32.xlu0 %v1454
    %v1459 = vpop.xlane.xlu0 %1458
    %1460 = vadd.xlane.f32.xlu0 %v1455
    %v1461 = vpop.xlane.xlu0 %1460
    %v1462 = vmul.f32 %v1459, %v39
    %v1463 = vmul.f32 %v1461, %v39
    %v1464 = vsub.f32 %v1454, %v1462
    %v1465 = vsub.f32 %v1455, %v1463
    %v1466 = vmul.f32 %v1464, %v1464
    %v1467 = vmul.f32 %v1465, %v1465
    %1468 = vadd.xlane.f32.xlu0 %v1466
    %v1469 = vpop.xlane.xlu0 %1468
    %1470 = vadd.xlane.f32.xlu0 %v1467
    %v1471 = vpop.xlane.xlu0 %1470
    %v1472 = vmul.f32 %v1469, %v39
    %v1473 = vmul.f32 %v1471, %v39
    %v1474 = vadd.f32 %v1472, 1e-12
    %v1475 = vadd.f32 %v1473, 1e-12
    %v1476 = vrsqrt.pop %v1474
    %v1477 = vrsqrt.pop %v1475
    %v1478 = vmul.f32 %v1464, %v1476
    %v1479 = vmul.f32 %v1465, %v1477
    %v1480 = vmul.f32 %v1478, %v1456
    %v1481 = vmul.f32 %v1479, %v1456
    %v1482 = vadd.f32 %v1480, %v1457
    %v1483 = vadd.f32 %v1481, %v1457
    %v1484 = vpack.c.bf16 %v1483, %v1482
    %s1485 = scalar_lea.vmem %s3, 192
    %v1486 = vld [vmem:[%s1485] sm:$0xff]
    %v1487 = vld [vmem:[%s1485 + $0x8] sm:$0xf]
    %v1488 = vld [vmem:[%s1485 + $0xc] sm:$0xff]
    %v1489 = vld [vmem:[%s1485 + $0x14] sm:$0xf]
    %v1490 = vld [vmem:[%s1485 + $0x18] sm:$0xff]
    %v1491 = vld [vmem:[%s1485 + $0x20] sm:$0xf]
    %v1492 = vld [vmem:[%s1485 + $0x24] sm:$0xff]
    %v1493 = vld [vmem:[%s1485 + $0x2c] sm:$0xf]
    %v1494 = vld [vmem:[%s1485 + $0x30] sm:$0xff]
    %v1495 = vld [vmem:[%s1485 + $0x38] sm:$0xf]
    %v1496 = vld [vmem:[%s1485 + $0x3c] sm:$0xff]
    %v1497 = vld [vmem:[%s1485 + $0x44] sm:$0xf]
    %v1498 = vld [vmem:[%s1485 + $0x48] sm:$0xff]
    %v1499 = vld [vmem:[%s1485 + $0x50] sm:$0xf]
    %v1500 = vld [vmem:[%s1485 + $0x54] sm:$0xff]
    %v1501 = vld [vmem:[%s1485 + $0x5c] sm:$0xf]
    %v1502 = vld [vmem:[%s1485 + $0x60] sm:$0xff]
    %v1503 = vld [vmem:[%s1485 + $0x68] sm:$0xf]
    %v1504 = vld [vmem:[%s1485 + $0x6c] sm:$0xff]
    %v1505 = vld [vmem:[%s1485 + $0x74] sm:$0xf]
    %v1506 = vld [vmem:[%s1485 + $0x78] sm:$0xff]
    %v1507 = vld [vmem:[%s1485 + $0x80] sm:$0xf]
    %v1508 = vld [vmem:[%s1485 + $0x84] sm:$0xff]
    %v1509 = vld [vmem:[%s1485 + $0x8c] sm:$0xf]
    %v1510 = vld [vmem:[%s1485 + $0x90] sm:$0xff]
    %v1511 = vld [vmem:[%s1485 + $0x98] sm:$0xf]
    %v1512 = vld [vmem:[%s1485 + $0x9c] sm:$0xff]
    %v1513 = vld [vmem:[%s1485 + $0xa4] sm:$0xf]
    %v1514 = vld [vmem:[%s1485 + $0xa8] sm:$0xff]
    %v1515 = vld [vmem:[%s1485 + $0xb0] sm:$0xf]
    %v1516 = vld [vmem:[%s1485 + $0xb4] sm:$0xff]
    %v1517 = vld [vmem:[%s1485 + $0xbc] sm:$0xf]
    %s1518 = scalar_lea.vmem %s2, 28
    %v1519 = vld [vmem:[%s1518] ss:$8 sm:$0x7]
    %v1521 = vlaneseq
    %v1522 = vshrl.u32 %v1521, 7
    %v1523 = vsub.s32 0, %v1522
    %v1524 = vrot.slane %v1519, %v1523
    %v1525 = vlaneseq
    %v1526 = vshrl.u32 %v1525, 7
    %v1527 = vsub.s32 1, %v1526
    %v1528 = vrot.slane %v1519, %v1527
    %v1529 = vlaneseq
    %v1530 = vshrl.u32 %v1529, 7
    %v1531 = vsub.s32 2, %v1530
    %v1532 = vrot.slane %v1519, %v1531
    %v1568 = vunpack.c.l.b16 %v1486
    %v1569 = vunpack.c.h.b16 %v1486
    %v1570 = vunpack.c.l.b16 %v1487
    %v1571 = vunpack.c.l.b16 %v1488
    %v1572 = vunpack.c.h.b16 %v1488
    %v1573 = vunpack.c.l.b16 %v1489
    %v1574 = vunpack.c.l.b16 %v1490
    %v1575 = vunpack.c.h.b16 %v1490
    %v1576 = vunpack.c.l.b16 %v1491
    %v1577 = vunpack.c.l.b16 %v1492
    %v1578 = vunpack.c.h.b16 %v1492
    %v1579 = vunpack.c.l.b16 %v1493
    %v1580 = vunpack.c.l.b16 %v1494
    %v1581 = vunpack.c.h.b16 %v1494
    %v1582 = vunpack.c.l.b16 %v1495
    %v1583 = vunpack.c.l.b16 %v1496
    %v1584 = vunpack.c.h.b16 %v1496
    %v1585 = vunpack.c.l.b16 %v1497
    %v1586 = vunpack.c.l.b16 %v1498
    %v1587 = vunpack.c.h.b16 %v1498
    %v1588 = vunpack.c.l.b16 %v1499
    %v1589 = vunpack.c.l.b16 %v1500
    %v1590 = vunpack.c.h.b16 %v1500
    %v1591 = vunpack.c.l.b16 %v1501
    %v1592 = vunpack.c.l.b16 %v1502
    %v1593 = vunpack.c.h.b16 %v1502
    %v1594 = vunpack.c.l.b16 %v1503
    %v1595 = vunpack.c.l.b16 %v1504
    %v1596 = vunpack.c.h.b16 %v1504
    %v1597 = vunpack.c.l.b16 %v1505
    %v1598 = vunpack.c.l.b16 %v1506
    %v1599 = vunpack.c.h.b16 %v1506
    %v1600 = vunpack.c.l.b16 %v1507
    %v1601 = vunpack.c.l.b16 %v1508
    %v1602 = vunpack.c.h.b16 %v1508
    %v1603 = vunpack.c.l.b16 %v1509
    %v1604 = vunpack.c.l.b16 %v1510
    %v1605 = vunpack.c.h.b16 %v1510
    %v1606 = vunpack.c.l.b16 %v1511
    %v1607 = vunpack.c.l.b16 %v1512
    %v1608 = vunpack.c.h.b16 %v1512
    %v1609 = vunpack.c.l.b16 %v1513
    %v1610 = vunpack.c.l.b16 %v1514
    %v1611 = vunpack.c.h.b16 %v1514
    %v1612 = vunpack.c.l.b16 %v1515
    %v1613 = vunpack.c.l.b16 %v1516
    %v1614 = vunpack.c.h.b16 %v1516
    %v1615 = vunpack.c.l.b16 %v1517
    %v1616 = vpack.c.b16 %v1571, %v1568
    %v1617 = vpack.c.b16 %v1572, %v1569
    %v1618 = vpack.c.b16 %v1573, %v1570
    %v1619 = vpack.c.b16 %v1577, %v1574
    %v1620 = vpack.c.b16 %v1578, %v1575
    %v1621 = vpack.c.b16 %v1579, %v1576
    %v1622 = vpack.c.b16 %v1583, %v1580
    %v1623 = vpack.c.b16 %v1584, %v1581
    %v1624 = vpack.c.b16 %v1585, %v1582
    %v1625 = vpack.c.b16 %v1589, %v1586
    %v1626 = vpack.c.b16 %v1590, %v1587
    %v1627 = vpack.c.b16 %v1591, %v1588
    %v1628 = vpack.c.b16 %v1595, %v1592
    %v1629 = vpack.c.b16 %v1596, %v1593
    %v1630 = vpack.c.b16 %v1597, %v1594
    %v1631 = vpack.c.b16 %v1601, %v1598
    %v1632 = vpack.c.b16 %v1602, %v1599
    %v1633 = vpack.c.b16 %v1603, %v1600
    %v1634 = vpack.c.b16 %v1607, %v1604
    %v1635 = vpack.c.b16 %v1608, %v1605
    %v1636 = vpack.c.b16 %v1609, %v1606
    %v1637 = vpack.c.b16 %v1613, %v1610
    %v1638 = vpack.c.b16 %v1614, %v1611
    %v1639 = vpack.c.b16 %v1615, %v1612
    %1664 = vmatprep.subr.bf16.mxu0 %v1638
    %1665 = vmatpush1.bf16.msra.mxu0 %v1637
    %1666 = vmatprep.subr.bf16.mxu0 %v1635
    %1667 = vmatpush1.bf16.msra.mxu0 %v1634
    %1668 = vmatprep.subr.bf16.mxu0 %v1632
    %1669 = vmatpush1.bf16.msra.mxu0 %v1631
    %1670 = vmatprep.subr.bf16.mxu0 %v1629
    %1671 = vmatpush1.bf16.msra.mxu0 %v1628
    %1672 = vmatprep.subr.bf16.mxu0 %v1626
    %1673 = vmatpush1.bf16.msra.mxu0 %v1625
    %1674 = vmatprep.subr.bf16.mxu0 %v1623
    %1675 = vmatpush1.bf16.msra.mxu0 %v1622
    %1676 = vmatprep.subr.bf16.mxu0 %v1620
    %1677 = vmatpush1.bf16.msra.mxu0 %v1619
    %1678 = vmatprep.subr.bf16.mxu0 %v1617
    %1679 = vmatpush1.bf16.msra.mxu0 %v1616
    %1680 = vmatprep.subr.bf16.mxu0 0
    %1681 = vmatpush2.bf16.msra.mxu0 0
    %1682 = vmatprep.subr.bf16.mxu0 0
    %1683 = vmatpush2.bf16.msra.mxu0 0
    %1684 = vmatprep.subr.bf16.mxu0 0
    %1685 = vmatpush2.bf16.msra.mxu0 0
    %1686 = vmatprep.subr.bf16.mxu0 0
    %1687 = vmatpush2.bf16.msra.mxu0 0
    %1688 = vmatprep.subr.bf16.mxu0 0
    %1689 = vmatpush2.bf16.msra.mxu0 0
    %1690 = vmatprep.subr.bf16.mxu0 0
    %1691 = vmatpush2.bf16.msra.mxu0 0
    %1692 = vmatprep.subr.bf16.mxu0 0
    %1693 = vmatpush2.bf16.msra.mxu0 0
    %1694 = vmatprep.subr.bf16.mxu0 0
    %1695 = vmatpush2.bf16.msra.mxu0 0
    %1696 = vmatprep.mubr.bf16.mxu0 0
    %1697 = vmatmul.mubr.bf16.gmra.mxu0 %v1484
    %v1698 = vpop.f32.mrf.mxu0
    %v1699 = vadd.f32 %v1524, %v1698
    %v1700 = vpop.f32.mrf.mxu0
    %v1701 = vadd.f32 %v1528, %v1700
    %v1702 = vpop.f32.mrf.mxu0
    %v1703 = vadd.f32 %v1524, %v1702
    %v1704 = vpop.f32.mrf.mxu0
    %v1705 = vadd.f32 %v1528, %v1704
    %1706 = vdwg.mxu0
    %1707 = vmatprep.subr.bf16.mxu0 0
    %1708 = vmatpush1.bf16.msra.mxu0 %v1639
    %1709 = vmatprep.subr.bf16.mxu0 0
    %1710 = vmatpush1.bf16.msra.mxu0 %v1636
    %1711 = vmatprep.subr.bf16.mxu0 0
    %1712 = vmatpush1.bf16.msra.mxu0 %v1633
    %1713 = vmatprep.subr.bf16.mxu0 0
    %1714 = vmatpush1.bf16.msra.mxu0 %v1630
    %1715 = vmatprep.subr.bf16.mxu0 0
    %1716 = vmatpush1.bf16.msra.mxu0 %v1627
    %1717 = vmatprep.subr.bf16.mxu0 0
    %1718 = vmatpush1.bf16.msra.mxu0 %v1624
    %1719 = vmatprep.subr.bf16.mxu0 0
    %1720 = vmatpush1.bf16.msra.mxu0 %v1621
    %1721 = vmatprep.subr.bf16.mxu0 0
    %1722 = vmatpush1.bf16.msra.mxu0 %v1618
    %1723 = vmatprep.subr.bf16.mxu0 0
    %1724 = vmatpush2.bf16.msra.mxu0 0
    %1725 = vmatprep.subr.bf16.mxu0 0
    %1726 = vmatpush2.bf16.msra.mxu0 0
    %1727 = vmatprep.subr.bf16.mxu0 0
    %1728 = vmatpush2.bf16.msra.mxu0 0
    %1729 = vmatprep.subr.bf16.mxu0 0
    %1730 = vmatpush2.bf16.msra.mxu0 0
    %1731 = vmatprep.subr.bf16.mxu0 0
    %1732 = vmatpush2.bf16.msra.mxu0 0
    %1733 = vmatprep.subr.bf16.mxu0 0
    %1734 = vmatpush2.bf16.msra.mxu0 0
    %1735 = vmatprep.subr.bf16.mxu0 0
    %1736 = vmatpush2.bf16.msra.mxu0 0
    %1737 = vmatprep.subr.bf16.mxu0 0
    %1738 = vmatpush2.bf16.msra.mxu0 0
    %1739 = vmatprep.mubr.bf16.mxu0 0
    %1740 = vmatmul.mubr.bf16.gmra.mxu0 %v1484
    %v1741 = vpop.f32.mrf.mxu0
    %v1742 = vadd.f32 %v1532, %v1741
    %v1743 = vpop.f32.mrf.mxu0
    %v1744 = vpop.f32.mrf.mxu0
    %v1745 = vadd.f32 %v1532, %v1744
    %v1746 = vpop.f32.mrf.mxu0
    %1747 = vdwg.mxu0
    %s1748 = scalar_lea.vmem %s4, 64
    %v1749 = vld [vmem:[%s1748] sm:$0xf]
    %v1750 = vld [vmem:[%s1748 + $0x4] sm:$0xf]
    %v1751 = vld [vmem:[%s1748 + $0x8] sm:$0xf]
    %v1752 = vld [vmem:[%s1748 + $0xc] sm:$0xf]
    %v1753 = vld [vmem:[%s1748 + $0x10] sm:$0xf]
    %v1754 = vld [vmem:[%s1748 + $0x14] sm:$0xf]
    %v1755 = vld [vmem:[%s1748 + $0x18] sm:$0xf]
    %v1756 = vld [vmem:[%s1748 + $0x1c] sm:$0xf]
    %v1757 = vld [vmem:[%s1748 + $0x20] sm:$0xf]
    %v1758 = vld [vmem:[%s1748 + $0x24] sm:$0xf]
    %v1759 = vld [vmem:[%s1748 + $0x28] sm:$0xf]
    %v1760 = vld [vmem:[%s1748 + $0x2c] sm:$0xf]
    %v1761 = vld [vmem:[%s1748 + $0x30] sm:$0xf]
    %v1762 = vld [vmem:[%s1748 + $0x34] sm:$0xf]
    %v1763 = vld [vmem:[%s1748 + $0x38] sm:$0xf]
    %v1764 = vld [vmem:[%s1748 + $0x3c] sm:$0xf]
    %v1765 = vpack.c.bf16 %v1703, %v1699
    %v1766 = vpack.c.bf16 %v1705, %v1701
    %v1767 = vpack.c.bf16 %v1745, %v1742
    %v1769 = vsel %vm346, %v1765, 0
    %v1772 = vsel %vm346, %v1766, 0
    %1774 = vmatprep.subr.bf16.mxu0 0
    %1775 = vmatpush1.bf16.xpose.msra.mxu0 0
    %1776 = vmatprep.subr.bf16.mxu0 0
    %1777 = vmatpush1.bf16.xpose.msra.mxu0 0
    %1778 = vmatprep.subr.bf16.mxu0 0
    %1779 = vmatpush1.bf16.xpose.msra.mxu0 0
    %1780 = vmatprep.subr.bf16.mxu0 0
    %1781 = vmatpush1.bf16.xpose.msra.mxu0 0
    %1782 = vmatprep.subr.bf16.mxu0 0
    %1783 = vmatpush1.bf16.xpose.msra.mxu0 0
    %1784 = vmatprep.subr.bf16.mxu0 0
    %1785 = vmatpush1.bf16.xpose.msra.mxu0 0
    %1786 = vmatprep.subr.bf16.mxu0 0
    %1787 = vmatpush1.bf16.xpose.msra.mxu0 0
    %1788 = vmatprep.subr.bf16.mxu0 0
    %1789 = vmatpush1.bf16.xpose.msra.mxu0 %v1772
    %1790 = vmatprep.subr.bf16.mxu0 0
    %1791 = vmatpush2.bf16.xpose.msra.mxu0 0
    %1792 = vmatprep.subr.bf16.mxu0 0
    %1793 = vmatpush2.bf16.xpose.msra.mxu0 0
    %1794 = vmatprep.subr.bf16.mxu0 0
    %1795 = vmatpush2.bf16.xpose.msra.mxu0 0
    %1796 = vmatprep.subr.bf16.mxu0 0
    %1797 = vmatpush2.bf16.xpose.msra.mxu0 0
    %1798 = vmatprep.subr.bf16.mxu0 0
    %1799 = vmatpush2.bf16.xpose.msra.mxu0 0
    %1800 = vmatprep.subr.bf16.mxu0 0
    %1801 = vmatpush2.bf16.xpose.msra.mxu0 0
    %1802 = vmatprep.subr.bf16.mxu0 0
    %1803 = vmatpush2.bf16.xpose.msra.mxu0 0
    %1804 = vmatprep.subr.bf16.mxu0 0
    %1805 = vmatpush2.bf16.xpose.msra.mxu0 0
    %1806 = vmatprep.mubr.bf16.mxu0 0
    %1807 = vmatmul.mubr.bf16.gmra.mxu0 %v1769
    %v1808 = vpop.f32.mrf.mxu0
    %v1809 = vadd.f32 %v62, %v1808
    %v1810 = vpop.f32.mrf.mxu0
    %v1811 = vpop.f32.mrf.mxu0
    %v1812 = vadd.f32 %v63, %v1811
    %v1813 = vpop.f32.mrf.mxu0
    %1814 = vdwg.mxu0
    %v1815 = vsel %vm394, %v1809, -inf
    %1816 = vmax.xlane.f32.xlu0 %v1815
    %v1817 = vpop.xlane.xlu0 %1816
    %v1818 = vsel %vm394, %v1812, -inf
    %1819 = vmax.xlane.f32.xlu0 %v1818
    %v1820 = vpop.xlane.xlu0 %1819
    %v1821 = vsub.f32 %v1809, %v1817
    %v1822 = vsub.f32 %v1812, %v1820
    %v1823 = vmul.f32 %v1821, 1.442695
    %v1824 = vpow.pop %v1823
    %v1825 = vmul.f32 %v1822, 1.442695
    %v1826 = vpow.pop %v1825
    %v1827 = vsel %vm394, %v1824, 0.0
    %1828 = vadd.xlane.f32.xlu0 %v1827
    %v1829 = vpop.xlane.xlu0 %1828
    %v1830 = vsel %vm394, %v1826, 0.0
    %1831 = vadd.xlane.f32.xlu0 %v1830
    %v1832 = vpop.xlane.xlu0 %1831
    %v1833 = vrcp.pop %v1829
    %v1834 = vmul.f32 %v1824, %v1833
    %v1835 = vrcp.pop %v1832
    %v1836 = vmul.f32 %v1826, %v1835
    %v1837 = vpack.c.bf16 %v1836, %v1834
    %v1839 = vsel %vm394, %v1837, 0
    %1841 = vmatprep.subr.bf16.mxu0 0
    %1842 = vmatpush1.bf16.msra.mxu0 0
    %1843 = vmatprep.subr.bf16.mxu0 0
    %1844 = vmatpush1.bf16.msra.mxu0 0
    %1845 = vmatprep.subr.bf16.mxu0 0
    %1846 = vmatpush1.bf16.msra.mxu0 0
    %1847 = vmatprep.subr.bf16.mxu0 0
    %1848 = vmatpush1.bf16.msra.mxu0 0
    %1849 = vmatprep.subr.bf16.mxu0 0
    %1850 = vmatpush1.bf16.msra.mxu0 0
    %1851 = vmatprep.subr.bf16.mxu0 0
    %1852 = vmatpush1.bf16.msra.mxu0 0
    %1853 = vmatprep.subr.bf16.mxu0 0
    %1854 = vmatpush1.bf16.msra.mxu0 0
    %1855 = vmatprep.subr.bf16.mxu0 0
    %1856 = vmatpush1.bf16.msra.mxu0 %v1767
    %1857 = vmatprep.subr.bf16.mxu0 0
    %1858 = vmatpush2.bf16.msra.mxu0 0
    %1859 = vmatprep.subr.bf16.mxu0 0
    %1860 = vmatpush2.bf16.msra.mxu0 0
    %1861 = vmatprep.subr.bf16.mxu0 0
    %1862 = vmatpush2.bf16.msra.mxu0 0
    %1863 = vmatprep.subr.bf16.mxu0 0
    %1864 = vmatpush2.bf16.msra.mxu0 0
    %1865 = vmatprep.subr.bf16.mxu0 0
    %1866 = vmatpush2.bf16.msra.mxu0 0
    %1867 = vmatprep.subr.bf16.mxu0 0
    %1868 = vmatpush2.bf16.msra.mxu0 0
    %1869 = vmatprep.subr.bf16.mxu0 0
    %1870 = vmatpush2.bf16.msra.mxu0 0
    %1871 = vmatprep.subr.bf16.mxu0 0
    %1872 = vmatpush2.bf16.msra.mxu0 0
    %1873 = vmatprep.mubr.bf16.mxu0 0
    %1874 = vmatmul.mubr.bf16.gmra.mxu0 %v1839
    %v1875 = vpop.f32.mrf.mxu0
    %v1876 = vadd.f32 0.0, %v1875
    %v1877 = vpop.f32.mrf.mxu0
    %v1878 = vpop.f32.mrf.mxu0
    %v1879 = vadd.f32 0.0, %v1878
    %v1880 = vpop.f32.mrf.mxu0
    %1881 = vdwg.mxu0
    %v1882 = vpack.c.bf16 %v1879, %v1876
    %1884 = vrot.lane.b32.xlu0 %v1765, 96
    %v1885 = vpop.permute.xlu0 %1884
    %1887 = vrot.lane.b32.xlu0 %v1766, 96
    %v1888 = vpop.permute.xlu0 %1887
    %v1890 = vsel %vm346, %v1885, 0
    %v1893 = vsel %vm346, %v1888, 0
    %1895 = vmatprep.subr.bf16.mxu0 0
    %1896 = vmatpush1.bf16.xpose.msra.mxu0 0
    %1897 = vmatprep.subr.bf16.mxu0 0
    %1898 = vmatpush1.bf16.xpose.msra.mxu0 0
    %1899 = vmatprep.subr.bf16.mxu0 0
    %1900 = vmatpush1.bf16.xpose.msra.mxu0 0
    %1901 = vmatprep.subr.bf16.mxu0 0
    %1902 = vmatpush1.bf16.xpose.msra.mxu0 0
    %1903 = vmatprep.subr.bf16.mxu0 0
    %1904 = vmatpush1.bf16.xpose.msra.mxu0 0
    %1905 = vmatprep.subr.bf16.mxu0 0
    %1906 = vmatpush1.bf16.xpose.msra.mxu0 0
    %1907 = vmatprep.subr.bf16.mxu0 0
    %1908 = vmatpush1.bf16.xpose.msra.mxu0 0
    %1909 = vmatprep.subr.bf16.mxu0 0
    %1910 = vmatpush1.bf16.xpose.msra.mxu0 %v1893
    %1911 = vmatprep.subr.bf16.mxu0 0
    %1912 = vmatpush2.bf16.xpose.msra.mxu0 0
    %1913 = vmatprep.subr.bf16.mxu0 0
    %1914 = vmatpush2.bf16.xpose.msra.mxu0 0
    %1915 = vmatprep.subr.bf16.mxu0 0
    %1916 = vmatpush2.bf16.xpose.msra.mxu0 0
    %1917 = vmatprep.subr.bf16.mxu0 0
    %1918 = vmatpush2.bf16.xpose.msra.mxu0 0
    %1919 = vmatprep.subr.bf16.mxu0 0
    %1920 = vmatpush2.bf16.xpose.msra.mxu0 0
    %1921 = vmatprep.subr.bf16.mxu0 0
    %1922 = vmatpush2.bf16.xpose.msra.mxu0 0
    %1923 = vmatprep.subr.bf16.mxu0 0
    %1924 = vmatpush2.bf16.xpose.msra.mxu0 0
    %1925 = vmatprep.subr.bf16.mxu0 0
    %1926 = vmatpush2.bf16.xpose.msra.mxu0 0
    %1927 = vmatprep.mubr.bf16.mxu0 0
    %1928 = vmatmul.mubr.bf16.gmra.mxu0 %v1890
    %v1929 = vpop.f32.mrf.mxu0
    %v1930 = vadd.f32 %v62, %v1929
    %v1931 = vpop.f32.mrf.mxu0
    %v1932 = vpop.f32.mrf.mxu0
    %v1933 = vadd.f32 %v63, %v1932
    %v1934 = vpop.f32.mrf.mxu0
    %1935 = vdwg.mxu0
    %v1936 = vsel %vm394, %v1930, -inf
    %1937 = vmax.xlane.f32.xlu0 %v1936
    %v1938 = vpop.xlane.xlu0 %1937
    %v1939 = vsel %vm394, %v1933, -inf
    %1940 = vmax.xlane.f32.xlu0 %v1939
    %v1941 = vpop.xlane.xlu0 %1940
    %v1942 = vsub.f32 %v1930, %v1938
    %v1943 = vsub.f32 %v1933, %v1941
    %v1944 = vmul.f32 %v1942, 1.442695
    %v1945 = vpow.pop %v1944
    %v1946 = vmul.f32 %v1943, 1.442695
    %v1947 = vpow.pop %v1946
    %v1948 = vsel %vm394, %v1945, 0.0
    %1949 = vadd.xlane.f32.xlu0 %v1948
    %v1950 = vpop.xlane.xlu0 %1949
    %v1951 = vsel %vm394, %v1947, 0.0
    %1952 = vadd.xlane.f32.xlu0 %v1951
    %v1953 = vpop.xlane.xlu0 %1952
    %v1954 = vrcp.pop %v1950
    %v1955 = vmul.f32 %v1945, %v1954
    %v1956 = vrcp.pop %v1953
    %v1957 = vmul.f32 %v1947, %v1956
    %v1958 = vpack.c.bf16 %v1957, %v1955
    %1960 = vrot.lane.b32.xlu0 %v1767, 96
    %v1961 = vpop.permute.xlu0 %1960
    %v1964 = vsel %vm394, %v1958, 0
    %1966 = vmatprep.subr.bf16.mxu0 0
    %1967 = vmatpush1.bf16.msra.mxu0 0
    %1968 = vmatprep.subr.bf16.mxu0 0
    %1969 = vmatpush1.bf16.msra.mxu0 0
    %1970 = vmatprep.subr.bf16.mxu0 0
    %1971 = vmatpush1.bf16.msra.mxu0 0
    %1972 = vmatprep.subr.bf16.mxu0 0
    %1973 = vmatpush1.bf16.msra.mxu0 0
    %1974 = vmatprep.subr.bf16.mxu0 0
    %1975 = vmatpush1.bf16.msra.mxu0 0
    %1976 = vmatprep.subr.bf16.mxu0 0
    %1977 = vmatpush1.bf16.msra.mxu0 0
    %1978 = vmatprep.subr.bf16.mxu0 0
    %1979 = vmatpush1.bf16.msra.mxu0 0
    %1980 = vmatprep.subr.bf16.mxu0 0
    %1981 = vmatpush1.bf16.msra.mxu0 %v1961
    %1982 = vmatprep.subr.bf16.mxu0 0
    %1983 = vmatpush2.bf16.msra.mxu0 0
    %1984 = vmatprep.subr.bf16.mxu0 0
    %1985 = vmatpush2.bf16.msra.mxu0 0
    %1986 = vmatprep.subr.bf16.mxu0 0
    %1987 = vmatpush2.bf16.msra.mxu0 0
    %1988 = vmatprep.subr.bf16.mxu0 0
    %1989 = vmatpush2.bf16.msra.mxu0 0
    %1990 = vmatprep.subr.bf16.mxu0 0
    %1991 = vmatpush2.bf16.msra.mxu0 0
    %1992 = vmatprep.subr.bf16.mxu0 0
    %1993 = vmatpush2.bf16.msra.mxu0 0
    %1994 = vmatprep.subr.bf16.mxu0 0
    %1995 = vmatpush2.bf16.msra.mxu0 0
    %1996 = vmatprep.subr.bf16.mxu0 0
    %1997 = vmatpush2.bf16.msra.mxu0 0
    %1998 = vmatprep.mubr.bf16.mxu0 0
    %1999 = vmatmul.mubr.bf16.gmra.mxu0 %v1964
    %v2000 = vpop.f32.mrf.mxu0
    %v2001 = vadd.f32 0.0, %v2000
    %v2002 = vpop.f32.mrf.mxu0
    %v2003 = vpop.f32.mrf.mxu0
    %v2004 = vadd.f32 0.0, %v2003
    %v2005 = vpop.f32.mrf.mxu0
    %2006 = vdwg.mxu0
    %v2007 = vpack.c.bf16 %v2004, %v2001
    %v2012 = vunpack.c.l.b16 %v1753
    %v2013 = vunpack.c.l.b16 %v1754
    %v2014 = vunpack.c.l.b16 %v1755
    %v2015 = vunpack.c.l.b16 %v1756
    %v2016 = vpack.c.b16 %v2013, %v2012
    %v2017 = vpack.c.b16 %v2015, %v2014
    %v2021 = vsel %vm346, %v2007, 0
    %2023 = vmatprep.subr.bf16.mxu0 0
    %2024 = vmatpush1.bf16.msra.mxu0 0
    %2025 = vmatprep.subr.bf16.mxu0 0
    %2026 = vmatpush1.bf16.msra.mxu0 0
    %2027 = vmatprep.subr.bf16.mxu0 0
    %2028 = vmatpush1.bf16.msra.mxu0 0
    %2029 = vmatprep.subr.bf16.mxu0 0
    %2030 = vmatpush1.bf16.msra.mxu0 0
    %2031 = vmatprep.subr.bf16.mxu0 0
    %2032 = vmatpush1.bf16.msra.mxu0 0
    %2033 = vmatprep.subr.bf16.mxu0 0
    %2034 = vmatpush1.bf16.msra.mxu0 0
    %2035 = vmatprep.subr.bf16.mxu0 0
    %2036 = vmatpush1.bf16.msra.mxu0 %v2017
    %2037 = vmatprep.subr.bf16.mxu0 0
    %2038 = vmatpush1.bf16.msra.mxu0 %v2016
    %2039 = vmatprep.subr.bf16.mxu0 0
    %2040 = vmatpush2.bf16.msra.mxu0 0
    %2041 = vmatprep.subr.bf16.mxu0 0
    %2042 = vmatpush2.bf16.msra.mxu0 0
    %2043 = vmatprep.subr.bf16.mxu0 0
    %2044 = vmatpush2.bf16.msra.mxu0 0
    %2045 = vmatprep.subr.bf16.mxu0 0
    %2046 = vmatpush2.bf16.msra.mxu0 0
    %2047 = vmatprep.subr.bf16.mxu0 0
    %2048 = vmatpush2.bf16.msra.mxu0 0
    %2049 = vmatprep.subr.bf16.mxu0 0
    %2050 = vmatpush2.bf16.msra.mxu0 0
    %2051 = vmatprep.subr.bf16.mxu0 0
    %2052 = vmatpush2.bf16.msra.mxu0 0
    %2053 = vmatprep.subr.bf16.mxu0 0
    %2054 = vmatpush2.bf16.msra.mxu0 0
    %2055 = vmatprep.mubr.bf16.mxu0 0
    %2056 = vmatmul.mubr.bf16.gmra.mxu0 %v2021
    %v2057 = vpop.f32.mrf.mxu0
    %v2058 = vadd.f32 0.0, %v2057
    %v2059 = vpop.f32.mrf.mxu0
    %v2060 = vpop.f32.mrf.mxu0
    %v2061 = vadd.f32 0.0, %v2060
    %v2062 = vpop.f32.mrf.mxu0
    %2063 = vdwg.mxu0
    %v2068 = vunpack.c.l.b16 %v1749
    %v2069 = vunpack.c.l.b16 %v1750
    %v2070 = vunpack.c.l.b16 %v1751
    %v2071 = vunpack.c.l.b16 %v1752
    %v2072 = vpack.c.b16 %v2069, %v2068
    %v2073 = vpack.c.b16 %v2071, %v2070
    %v2077 = vsel %vm346, %v1882, 0
    %2079 = vmatprep.subr.bf16.mxu0 0
    %2080 = vmatpush1.bf16.msra.mxu0 0
    %2081 = vmatprep.subr.bf16.mxu0 0
    %2082 = vmatpush1.bf16.msra.mxu0 0
    %2083 = vmatprep.subr.bf16.mxu0 0
    %2084 = vmatpush1.bf16.msra.mxu0 0
    %2085 = vmatprep.subr.bf16.mxu0 0
    %2086 = vmatpush1.bf16.msra.mxu0 0
    %2087 = vmatprep.subr.bf16.mxu0 0
    %2088 = vmatpush1.bf16.msra.mxu0 0
    %2089 = vmatprep.subr.bf16.mxu0 0
    %2090 = vmatpush1.bf16.msra.mxu0 0
    %2091 = vmatprep.subr.bf16.mxu0 0
    %2092 = vmatpush1.bf16.msra.mxu0 %v2073
    %2093 = vmatprep.subr.bf16.mxu0 0
    %2094 = vmatpush1.bf16.msra.mxu0 %v2072
    %2095 = vmatprep.subr.bf16.mxu0 0
    %2096 = vmatpush2.bf16.msra.mxu0 0
    %2097 = vmatprep.subr.bf16.mxu0 0
    %2098 = vmatpush2.bf16.msra.mxu0 0
    %2099 = vmatprep.subr.bf16.mxu0 0
    %2100 = vmatpush2.bf16.msra.mxu0 0
    %2101 = vmatprep.subr.bf16.mxu0 0
    %2102 = vmatpush2.bf16.msra.mxu0 0
    %2103 = vmatprep.subr.bf16.mxu0 0
    %2104 = vmatpush2.bf16.msra.mxu0 0
    %2105 = vmatprep.subr.bf16.mxu0 0
    %2106 = vmatpush2.bf16.msra.mxu0 0
    %2107 = vmatprep.subr.bf16.mxu0 0
    %2108 = vmatpush2.bf16.msra.mxu0 0
    %2109 = vmatprep.subr.bf16.mxu0 0
    %2110 = vmatpush2.bf16.msra.mxu0 0
    %2111 = vmatprep.mubr.bf16.mxu0 0
    %2112 = vmatmul.mubr.bf16.gmra.mxu0 %v2077
    %v2113 = vpop.f32.mrf.mxu0
    %v2114 = vadd.f32 %v2058, %v2113
    %v2115 = vpop.f32.mrf.mxu0
    %v2116 = vpop.f32.mrf.mxu0
    %v2117 = vadd.f32 %v2061, %v2116
    %v2118 = vpop.f32.mrf.mxu0
    %2119 = vdwg.mxu0
    %2120 = vrot.lane.b32.xlu0 %v1765, 64
    %v2121 = vpop.permute.xlu0 %2120
    %2122 = vrot.lane.b32.xlu0 %v1766, 64
    %v2123 = vpop.permute.xlu0 %2122
    %v2125 = vsel %vm346, %v2121, 0
    %v2128 = vsel %vm346, %v2123, 0
    %2130 = vmatprep.subr.bf16.mxu0 0
    %2131 = vmatpush1.bf16.xpose.msra.mxu0 0
    %2132 = vmatprep.subr.bf16.mxu0 0
    %2133 = vmatpush1.bf16.xpose.msra.mxu0 0
    %2134 = vmatprep.subr.bf16.mxu0 0
    %2135 = vmatpush1.bf16.xpose.msra.mxu0 0
    %2136 = vmatprep.subr.bf16.mxu0 0
    %2137 = vmatpush1.bf16.xpose.msra.mxu0 0
    %2138 = vmatprep.subr.bf16.mxu0 0
    %2139 = vmatpush1.bf16.xpose.msra.mxu0 0
    %2140 = vmatprep.subr.bf16.mxu0 0
    %2141 = vmatpush1.bf16.xpose.msra.mxu0 0
    %2142 = vmatprep.subr.bf16.mxu0 0
    %2143 = vmatpush1.bf16.xpose.msra.mxu0 0
    %2144 = vmatprep.subr.bf16.mxu0 0
    %2145 = vmatpush1.bf16.xpose.msra.mxu0 %v2128
    %2146 = vmatprep.subr.bf16.mxu0 0
    %2147 = vmatpush2.bf16.xpose.msra.mxu0 0
    %2148 = vmatprep.subr.bf16.mxu0 0
    %2149 = vmatpush2.bf16.xpose.msra.mxu0 0
    %2150 = vmatprep.subr.bf16.mxu0 0
    %2151 = vmatpush2.bf16.xpose.msra.mxu0 0
    %2152 = vmatprep.subr.bf16.mxu0 0
    %2153 = vmatpush2.bf16.xpose.msra.mxu0 0
    %2154 = vmatprep.subr.bf16.mxu0 0
    %2155 = vmatpush2.bf16.xpose.msra.mxu0 0
    %2156 = vmatprep.subr.bf16.mxu0 0
    %2157 = vmatpush2.bf16.xpose.msra.mxu0 0
    %2158 = vmatprep.subr.bf16.mxu0 0
    %2159 = vmatpush2.bf16.xpose.msra.mxu0 0
    %2160 = vmatprep.subr.bf16.mxu0 0
    %2161 = vmatpush2.bf16.xpose.msra.mxu0 0
    %2162 = vmatprep.mubr.bf16.mxu0 0
    %2163 = vmatmul.mubr.bf16.gmra.mxu0 %v2125
    %v2164 = vpop.f32.mrf.mxu0
    %v2165 = vadd.f32 %v62, %v2164
    %v2166 = vpop.f32.mrf.mxu0
    %v2167 = vpop.f32.mrf.mxu0
    %v2168 = vadd.f32 %v63, %v2167
    %v2169 = vpop.f32.mrf.mxu0
    %2170 = vdwg.mxu0
    %v2171 = vsel %vm394, %v2165, -inf
    %2172 = vmax.xlane.f32.xlu0 %v2171
    %v2173 = vpop.xlane.xlu0 %2172
    %v2174 = vsel %vm394, %v2168, -inf
    %2175 = vmax.xlane.f32.xlu0 %v2174
    %v2176 = vpop.xlane.xlu0 %2175
    %v2177 = vsub.f32 %v2165, %v2173
    %v2178 = vsub.f32 %v2168, %v2176
    %v2179 = vmul.f32 %v2177, 1.442695
    %v2180 = vpow.pop %v2179
    %v2181 = vmul.f32 %v2178, 1.442695
    %v2182 = vpow.pop %v2181
    %v2183 = vsel %vm394, %v2180, 0.0
    %2184 = vadd.xlane.f32.xlu0 %v2183
    %v2185 = vpop.xlane.xlu0 %2184
    %v2186 = vsel %vm394, %v2182, 0.0
    %2187 = vadd.xlane.f32.xlu0 %v2186
    %v2188 = vpop.xlane.xlu0 %2187
    %v2189 = vrcp.pop %v2185
    %v2190 = vmul.f32 %v2180, %v2189
    %v2191 = vrcp.pop %v2188
    %v2192 = vmul.f32 %v2182, %v2191
    %v2193 = vpack.c.bf16 %v2192, %v2190
    %2194 = vrot.lane.b32.xlu0 %v1767, 64
    %v2195 = vpop.permute.xlu0 %2194
    %v2198 = vsel %vm394, %v2193, 0
    %2200 = vmatprep.subr.bf16.mxu0 0
    %2201 = vmatpush1.bf16.msra.mxu0 0
    %2202 = vmatprep.subr.bf16.mxu0 0
    %2203 = vmatpush1.bf16.msra.mxu0 0
    %2204 = vmatprep.subr.bf16.mxu0 0
    %2205 = vmatpush1.bf16.msra.mxu0 0
    %2206 = vmatprep.subr.bf16.mxu0 0
    %2207 = vmatpush1.bf16.msra.mxu0 0
    %2208 = vmatprep.subr.bf16.mxu0 0
    %2209 = vmatpush1.bf16.msra.mxu0 0
    %2210 = vmatprep.subr.bf16.mxu0 0
    %2211 = vmatpush1.bf16.msra.mxu0 0
    %2212 = vmatprep.subr.bf16.mxu0 0
    %2213 = vmatpush1.bf16.msra.mxu0 0
    %2214 = vmatprep.subr.bf16.mxu0 0
    %2215 = vmatpush1.bf16.msra.mxu0 %v2195
    %2216 = vmatprep.subr.bf16.mxu0 0
    %2217 = vmatpush2.bf16.msra.mxu0 0
    %2218 = vmatprep.subr.bf16.mxu0 0
    %2219 = vmatpush2.bf16.msra.mxu0 0
    %2220 = vmatprep.subr.bf16.mxu0 0
    %2221 = vmatpush2.bf16.msra.mxu0 0
    %2222 = vmatprep.subr.bf16.mxu0 0
    %2223 = vmatpush2.bf16.msra.mxu0 0
    %2224 = vmatprep.subr.bf16.mxu0 0
    %2225 = vmatpush2.bf16.msra.mxu0 0
    %2226 = vmatprep.subr.bf16.mxu0 0
    %2227 = vmatpush2.bf16.msra.mxu0 0
    %2228 = vmatprep.subr.bf16.mxu0 0
    %2229 = vmatpush2.bf16.msra.mxu0 0
    %2230 = vmatprep.subr.bf16.mxu0 0
    %2231 = vmatpush2.bf16.msra.mxu0 0
    %2232 = vmatprep.mubr.bf16.mxu0 0
    %2233 = vmatmul.mubr.bf16.gmra.mxu0 %v2198
    %v2234 = vpop.f32.mrf.mxu0
    %v2235 = vadd.f32 0.0, %v2234
    %v2236 = vpop.f32.mrf.mxu0
    %v2237 = vpop.f32.mrf.mxu0
    %v2238 = vadd.f32 0.0, %v2237
    %v2239 = vpop.f32.mrf.mxu0
    %2240 = vdwg.mxu0
    %v2241 = vpack.c.bf16 %v2238, %v2235
    %v2246 = vunpack.c.l.b16 %v1757
    %v2247 = vunpack.c.l.b16 %v1758
    %v2248 = vunpack.c.l.b16 %v1759
    %v2249 = vunpack.c.l.b16 %v1760
    %v2250 = vpack.c.b16 %v2247, %v2246
    %v2251 = vpack.c.b16 %v2249, %v2248
    %v2255 = vsel %vm346, %v2241, 0
    %2257 = vmatprep.subr.bf16.mxu0 0
    %2258 = vmatpush1.bf16.msra.mxu0 0
    %2259 = vmatprep.subr.bf16.mxu0 0
    %2260 = vmatpush1.bf16.msra.mxu0 0
    %2261 = vmatprep.subr.bf16.mxu0 0
    %2262 = vmatpush1.bf16.msra.mxu0 0
    %2263 = vmatprep.subr.bf16.mxu0 0
    %2264 = vmatpush1.bf16.msra.mxu0 0
    %2265 = vmatprep.subr.bf16.mxu0 0
    %2266 = vmatpush1.bf16.msra.mxu0 0
    %2267 = vmatprep.subr.bf16.mxu0 0
    %2268 = vmatpush1.bf16.msra.mxu0 0
    %2269 = vmatprep.subr.bf16.mxu0 0
    %2270 = vmatpush1.bf16.msra.mxu0 %v2251
    %2271 = vmatprep.subr.bf16.mxu0 0
    %2272 = vmatpush1.bf16.msra.mxu0 %v2250
    %2273 = vmatprep.subr.bf16.mxu0 0
    %2274 = vmatpush2.bf16.msra.mxu0 0
    %2275 = vmatprep.subr.bf16.mxu0 0
    %2276 = vmatpush2.bf16.msra.mxu0 0
    %2277 = vmatprep.subr.bf16.mxu0 0
    %2278 = vmatpush2.bf16.msra.mxu0 0
    %2279 = vmatprep.subr.bf16.mxu0 0
    %2280 = vmatpush2.bf16.msra.mxu0 0
    %2281 = vmatprep.subr.bf16.mxu0 0
    %2282 = vmatpush2.bf16.msra.mxu0 0
    %2283 = vmatprep.subr.bf16.mxu0 0
    %2284 = vmatpush2.bf16.msra.mxu0 0
    %2285 = vmatprep.subr.bf16.mxu0 0
    %2286 = vmatpush2.bf16.msra.mxu0 0
    %2287 = vmatprep.subr.bf16.mxu0 0
    %2288 = vmatpush2.bf16.msra.mxu0 0
    %2289 = vmatprep.mubr.bf16.mxu0 0
    %2290 = vmatmul.mubr.bf16.gmra.mxu0 %v2255
    %v2291 = vpop.f32.mrf.mxu0
    %v2292 = vadd.f32 0.0, %v2291
    %v2293 = vpop.f32.mrf.mxu0
    %v2294 = vpop.f32.mrf.mxu0
    %v2295 = vadd.f32 0.0, %v2294
    %v2296 = vpop.f32.mrf.mxu0
    %2297 = vdwg.mxu0
    %v2298 = vadd.f32 %v2114, %v2292
    %v2299 = vadd.f32 %v2117, %v2295
    %2300 = vrot.lane.b32.xlu0 %v1765, 32
    %v2301 = vpop.permute.xlu0 %2300
    %2302 = vrot.lane.b32.xlu0 %v1766, 32
    %v2303 = vpop.permute.xlu0 %2302
    %v2305 = vsel %vm346, %v2301, 0
    %v2308 = vsel %vm346, %v2303, 0
    %2310 = vmatprep.subr.bf16.mxu0 0
    %2311 = vmatpush1.bf16.xpose.msra.mxu0 0
    %2312 = vmatprep.subr.bf16.mxu0 0
    %2313 = vmatpush1.bf16.xpose.msra.mxu0 0
    %2314 = vmatprep.subr.bf16.mxu0 0
    %2315 = vmatpush1.bf16.xpose.msra.mxu0 0
    %2316 = vmatprep.subr.bf16.mxu0 0
    %2317 = vmatpush1.bf16.xpose.msra.mxu0 0
    %2318 = vmatprep.subr.bf16.mxu0 0
    %2319 = vmatpush1.bf16.xpose.msra.mxu0 0
    %2320 = vmatprep.subr.bf16.mxu0 0
    %2321 = vmatpush1.bf16.xpose.msra.mxu0 0
    %2322 = vmatprep.subr.bf16.mxu0 0
    %2323 = vmatpush1.bf16.xpose.msra.mxu0 0
    %2324 = vmatprep.subr.bf16.mxu0 0
    %2325 = vmatpush1.bf16.xpose.msra.mxu0 %v2308
    %2326 = vmatprep.subr.bf16.mxu0 0
    %2327 = vmatpush2.bf16.xpose.msra.mxu0 0
    %2328 = vmatprep.subr.bf16.mxu0 0
    %2329 = vmatpush2.bf16.xpose.msra.mxu0 0
    %2330 = vmatprep.subr.bf16.mxu0 0
    %2331 = vmatpush2.bf16.xpose.msra.mxu0 0
    %2332 = vmatprep.subr.bf16.mxu0 0
    %2333 = vmatpush2.bf16.xpose.msra.mxu0 0
    %2334 = vmatprep.subr.bf16.mxu0 0
    %2335 = vmatpush2.bf16.xpose.msra.mxu0 0
    %2336 = vmatprep.subr.bf16.mxu0 0
    %2337 = vmatpush2.bf16.xpose.msra.mxu0 0
    %2338 = vmatprep.subr.bf16.mxu0 0
    %2339 = vmatpush2.bf16.xpose.msra.mxu0 0
    %2340 = vmatprep.subr.bf16.mxu0 0
    %2341 = vmatpush2.bf16.xpose.msra.mxu0 0
    %2342 = vmatprep.mubr.bf16.mxu0 0
    %2343 = vmatmul.mubr.bf16.gmra.mxu0 %v2305
    %v2344 = vpop.f32.mrf.mxu0
    %v2345 = vadd.f32 %v62, %v2344
    %v2346 = vpop.f32.mrf.mxu0
    %v2347 = vpop.f32.mrf.mxu0
    %v2348 = vadd.f32 %v63, %v2347
    %v2349 = vpop.f32.mrf.mxu0
    %2350 = vdwg.mxu0
    %v2351 = vsel %vm394, %v2345, -inf
    %2352 = vmax.xlane.f32.xlu0 %v2351
    %v2353 = vpop.xlane.xlu0 %2352
    %v2354 = vsel %vm394, %v2348, -inf
    %2355 = vmax.xlane.f32.xlu0 %v2354
    %v2356 = vpop.xlane.xlu0 %2355
    %v2357 = vsub.f32 %v2345, %v2353
    %v2358 = vsub.f32 %v2348, %v2356
    %v2359 = vmul.f32 %v2357, 1.442695
    %v2360 = vpow.pop %v2359
    %v2361 = vmul.f32 %v2358, 1.442695
    %v2362 = vpow.pop %v2361
    %v2363 = vsel %vm394, %v2360, 0.0
    %2364 = vadd.xlane.f32.xlu0 %v2363
    %v2365 = vpop.xlane.xlu0 %2364
    %v2366 = vsel %vm394, %v2362, 0.0
    %2367 = vadd.xlane.f32.xlu0 %v2366
    %v2368 = vpop.xlane.xlu0 %2367
    %v2369 = vrcp.pop %v2365
    %v2370 = vmul.f32 %v2360, %v2369
    %v2371 = vrcp.pop %v2368
    %v2372 = vmul.f32 %v2362, %v2371
    %v2373 = vpack.c.bf16 %v2372, %v2370
    %2374 = vrot.lane.b32.xlu0 %v1767, 32
    %v2375 = vpop.permute.xlu0 %2374
    %v2378 = vsel %vm394, %v2373, 0
    %2380 = vmatprep.subr.bf16.mxu0 0
    %2381 = vmatpush1.bf16.msra.mxu0 0
    %2382 = vmatprep.subr.bf16.mxu0 0
    %2383 = vmatpush1.bf16.msra.mxu0 0
    %2384 = vmatprep.subr.bf16.mxu0 0
    %2385 = vmatpush1.bf16.msra.mxu0 0
    %2386 = vmatprep.subr.bf16.mxu0 0
    %2387 = vmatpush1.bf16.msra.mxu0 0
    %2388 = vmatprep.subr.bf16.mxu0 0
    %2389 = vmatpush1.bf16.msra.mxu0 0
    %2390 = vmatprep.subr.bf16.mxu0 0
    %2391 = vmatpush1.bf16.msra.mxu0 0
    %2392 = vmatprep.subr.bf16.mxu0 0
    %2393 = vmatpush1.bf16.msra.mxu0 0
    %2394 = vmatprep.subr.bf16.mxu0 0
    %2395 = vmatpush1.bf16.msra.mxu0 %v2375
    %2396 = vmatprep.subr.bf16.mxu0 0
    %2397 = vmatpush2.bf16.msra.mxu0 0
    %2398 = vmatprep.subr.bf16.mxu0 0
    %2399 = vmatpush2.bf16.msra.mxu0 0
    %2400 = vmatprep.subr.bf16.mxu0 0
    %2401 = vmatpush2.bf16.msra.mxu0 0
    %2402 = vmatprep.subr.bf16.mxu0 0
    %2403 = vmatpush2.bf16.msra.mxu0 0
    %2404 = vmatprep.subr.bf16.mxu0 0
    %2405 = vmatpush2.bf16.msra.mxu0 0
    %2406 = vmatprep.subr.bf16.mxu0 0
    %2407 = vmatpush2.bf16.msra.mxu0 0
    %2408 = vmatprep.subr.bf16.mxu0 0
    %2409 = vmatpush2.bf16.msra.mxu0 0
    %2410 = vmatprep.subr.bf16.mxu0 0
    %2411 = vmatpush2.bf16.msra.mxu0 0
    %2412 = vmatprep.mubr.bf16.mxu0 0
    %2413 = vmatmul.mubr.bf16.gmra.mxu0 %v2378
    %v2414 = vpop.f32.mrf.mxu0
    %v2415 = vadd.f32 0.0, %v2414
    %v2416 = vpop.f32.mrf.mxu0
    %v2417 = vpop.f32.mrf.mxu0
    %v2418 = vadd.f32 0.0, %v2417
    %v2419 = vpop.f32.mrf.mxu0
    %2420 = vdwg.mxu0
    %v2421 = vpack.c.bf16 %v2418, %v2415
    %v2426 = vunpack.c.l.b16 %v1761
    %v2427 = vunpack.c.l.b16 %v1762
    %v2428 = vunpack.c.l.b16 %v1763
    %v2429 = vunpack.c.l.b16 %v1764
    %v2430 = vpack.c.b16 %v2427, %v2426
    %v2431 = vpack.c.b16 %v2429, %v2428
    %v2435 = vsel %vm346, %v2421, 0
    %2437 = vmatprep.subr.bf16.mxu0 0
    %2438 = vmatpush1.bf16.msra.mxu0 0
    %2439 = vmatprep.subr.bf16.mxu0 0
    %2440 = vmatpush1.bf16.msra.mxu0 0
    %2441 = vmatprep.subr.bf16.mxu0 0
    %2442 = vmatpush1.bf16.msra.mxu0 0
    %2443 = vmatprep.subr.bf16.mxu0 0
    %2444 = vmatpush1.bf16.msra.mxu0 0
    %2445 = vmatprep.subr.bf16.mxu0 0
    %2446 = vmatpush1.bf16.msra.mxu0 0
    %2447 = vmatprep.subr.bf16.mxu0 0
    %2448 = vmatpush1.bf16.msra.mxu0 0
    %2449 = vmatprep.subr.bf16.mxu0 0
    %2450 = vmatpush1.bf16.msra.mxu0 %v2431
    %2451 = vmatprep.subr.bf16.mxu0 0
    %2452 = vmatpush1.bf16.msra.mxu0 %v2430
    %2453 = vmatprep.subr.bf16.mxu0 0
    %2454 = vmatpush2.bf16.msra.mxu0 0
    %2455 = vmatprep.subr.bf16.mxu0 0
    %2456 = vmatpush2.bf16.msra.mxu0 0
    %2457 = vmatprep.subr.bf16.mxu0 0
    %2458 = vmatpush2.bf16.msra.mxu0 0
    %2459 = vmatprep.subr.bf16.mxu0 0
    %2460 = vmatpush2.bf16.msra.mxu0 0
    %2461 = vmatprep.subr.bf16.mxu0 0
    %2462 = vmatpush2.bf16.msra.mxu0 0
    %2463 = vmatprep.subr.bf16.mxu0 0
    %2464 = vmatpush2.bf16.msra.mxu0 0
    %2465 = vmatprep.subr.bf16.mxu0 0
    %2466 = vmatpush2.bf16.msra.mxu0 0
    %2467 = vmatprep.subr.bf16.mxu0 0
    %2468 = vmatpush2.bf16.msra.mxu0 0
    %2469 = vmatprep.mubr.bf16.mxu0 0
    %2470 = vmatmul.mubr.bf16.gmra.mxu0 %v2435
    %v2471 = vpop.f32.mrf.mxu0
    %v2472 = vadd.f32 0.0, %v2471
    %v2473 = vpop.f32.mrf.mxu0
    %v2474 = vpop.f32.mrf.mxu0
    %v2475 = vadd.f32 0.0, %v2474
    %v2476 = vpop.f32.mrf.mxu0
    %2477 = vdwg.mxu0
    %v2478 = vadd.f32 %v2298, %v2472
    %v2479 = vadd.f32 %v2299, %v2475
    %v2480 = vld [vmem:[%s2 + $0x1d] ss:$0 sm:$0xff]
    %v2481 = vadd.f32 %v2478, %v2480
    %v2482 = vadd.f32 %v2479, %v2480
    %v2483 = vadd.f32 %v2481, %v1482
    %v2484 = vadd.f32 %v2482, %v1483
    %v2485 = vld [vmem:[%s2 + $0x1e] ss:$0 sm:$0xff]
    %v2486 = vld [vmem:[%s2 + $0x1f] ss:$0 sm:$0xff]
    %2487 = vadd.xlane.f32.xlu0 %v2483
    %v2488 = vpop.xlane.xlu0 %2487
    %2489 = vadd.xlane.f32.xlu0 %v2484
    %v2490 = vpop.xlane.xlu0 %2489
    %v2491 = vmul.f32 %v2488, %v39
    %v2492 = vmul.f32 %v2490, %v39
    %v2493 = vsub.f32 %v2483, %v2491
    %v2494 = vsub.f32 %v2484, %v2492
    %v2495 = vmul.f32 %v2493, %v2493
    %v2496 = vmul.f32 %v2494, %v2494
    %2497 = vadd.xlane.f32.xlu0 %v2495
    %v2498 = vpop.xlane.xlu0 %2497
    %2499 = vadd.xlane.f32.xlu0 %v2496
    %v2500 = vpop.xlane.xlu0 %2499
    %v2501 = vmul.f32 %v2498, %v39
    %v2502 = vmul.f32 %v2500, %v39
    %v2503 = vadd.f32 %v2501, 1e-12
    %v2504 = vadd.f32 %v2502, 1e-12
    %v2505 = vrsqrt.pop %v2503
    %v2506 = vrsqrt.pop %v2504
    %v2507 = vmul.f32 %v2493, %v2505
    %v2508 = vmul.f32 %v2494, %v2506
    %v2509 = vmul.f32 %v2507, %v2485
    %v2510 = vmul.f32 %v2508, %v2485
    %v2511 = vadd.f32 %v2509, %v2486
    %v2512 = vadd.f32 %v2510, %v2486
    %v2513 = vpack.c.bf16 %v2512, %v2511
    %s2514 = scalar_lea.vmem %s5, 128
    %v2515 = vld [vmem:[%s2514] sm:$0xff]
    %v2516 = vld [vmem:[%s2514 + $0x8] sm:$0xff]
    %v2517 = vld [vmem:[%s2514 + $0x10] sm:$0xff]
    %v2518 = vld [vmem:[%s2514 + $0x18] sm:$0xff]
    %v2519 = vld [vmem:[%s2514 + $0x20] sm:$0xff]
    %v2520 = vld [vmem:[%s2514 + $0x28] sm:$0xff]
    %v2521 = vld [vmem:[%s2514 + $0x30] sm:$0xff]
    %v2522 = vld [vmem:[%s2514 + $0x38] sm:$0xff]
    %v2523 = vld [vmem:[%s2514 + $0x40] sm:$0xff]
    %v2524 = vld [vmem:[%s2514 + $0x48] sm:$0xff]
    %v2525 = vld [vmem:[%s2514 + $0x50] sm:$0xff]
    %v2526 = vld [vmem:[%s2514 + $0x58] sm:$0xff]
    %v2527 = vld [vmem:[%s2514 + $0x60] sm:$0xff]
    %v2528 = vld [vmem:[%s2514 + $0x68] sm:$0xff]
    %v2529 = vld [vmem:[%s2514 + $0x70] sm:$0xff]
    %v2530 = vld [vmem:[%s2514 + $0x78] sm:$0xff]
    %s2531 = scalar_lea.vmem %s2, 48
    %v2532 = vld [vmem:[%s2531] ss:$8 sm:$0x3]
    %v2534 = vlaneseq
    %v2535 = vshrl.u32 %v2534, 7
    %v2536 = vsub.s32 0, %v2535
    %v2537 = vrot.slane %v2532, %v2536
    %v2538 = vlaneseq
    %v2539 = vshrl.u32 %v2538, 7
    %v2540 = vsub.s32 1, %v2539
    %v2541 = vrot.slane %v2532, %v2540
    %v2560 = vunpack.c.l.b16 %v2515
    %v2561 = vunpack.c.h.b16 %v2515
    %v2562 = vunpack.c.l.b16 %v2516
    %v2563 = vunpack.c.h.b16 %v2516
    %v2564 = vunpack.c.l.b16 %v2517
    %v2565 = vunpack.c.h.b16 %v2517
    %v2566 = vunpack.c.l.b16 %v2518
    %v2567 = vunpack.c.h.b16 %v2518
    %v2568 = vunpack.c.l.b16 %v2519
    %v2569 = vunpack.c.h.b16 %v2519
    %v2570 = vunpack.c.l.b16 %v2520
    %v2571 = vunpack.c.h.b16 %v2520
    %v2572 = vunpack.c.l.b16 %v2521
    %v2573 = vunpack.c.h.b16 %v2521
    %v2574 = vunpack.c.l.b16 %v2522
    %v2575 = vunpack.c.h.b16 %v2522
    %v2576 = vunpack.c.l.b16 %v2523
    %v2577 = vunpack.c.h.b16 %v2523
    %v2578 = vunpack.c.l.b16 %v2524
    %v2579 = vunpack.c.h.b16 %v2524
    %v2580 = vunpack.c.l.b16 %v2525
    %v2581 = vunpack.c.h.b16 %v2525
    %v2582 = vunpack.c.l.b16 %v2526
    %v2583 = vunpack.c.h.b16 %v2526
    %v2584 = vunpack.c.l.b16 %v2527
    %v2585 = vunpack.c.h.b16 %v2527
    %v2586 = vunpack.c.l.b16 %v2528
    %v2587 = vunpack.c.h.b16 %v2528
    %v2588 = vunpack.c.l.b16 %v2529
    %v2589 = vunpack.c.h.b16 %v2529
    %v2590 = vunpack.c.l.b16 %v2530
    %v2591 = vunpack.c.h.b16 %v2530
    %v2592 = vpack.c.b16 %v2562, %v2560
    %v2593 = vpack.c.b16 %v2563, %v2561
    %v2594 = vpack.c.b16 %v2566, %v2564
    %v2595 = vpack.c.b16 %v2567, %v2565
    %v2596 = vpack.c.b16 %v2570, %v2568
    %v2597 = vpack.c.b16 %v2571, %v2569
    %v2598 = vpack.c.b16 %v2574, %v2572
    %v2599 = vpack.c.b16 %v2575, %v2573
    %v2600 = vpack.c.b16 %v2578, %v2576
    %v2601 = vpack.c.b16 %v2579, %v2577
    %v2602 = vpack.c.b16 %v2582, %v2580
    %v2603 = vpack.c.b16 %v2583, %v2581
    %v2604 = vpack.c.b16 %v2586, %v2584
    %v2605 = vpack.c.b16 %v2587, %v2585
    %v2606 = vpack.c.b16 %v2590, %v2588
    %v2607 = vpack.c.b16 %v2591, %v2589
    %2624 = vmatprep.subr.bf16.mxu0 %v2607
    %2625 = vmatpush1.bf16.msra.mxu0 %v2606
    %2626 = vmatprep.subr.bf16.mxu0 %v2605
    %2627 = vmatpush1.bf16.msra.mxu0 %v2604
    %2628 = vmatprep.subr.bf16.mxu0 %v2603
    %2629 = vmatpush1.bf16.msra.mxu0 %v2602
    %2630 = vmatprep.subr.bf16.mxu0 %v2601
    %2631 = vmatpush1.bf16.msra.mxu0 %v2600
    %2632 = vmatprep.subr.bf16.mxu0 %v2599
    %2633 = vmatpush1.bf16.msra.mxu0 %v2598
    %2634 = vmatprep.subr.bf16.mxu0 %v2597
    %2635 = vmatpush1.bf16.msra.mxu0 %v2596
    %2636 = vmatprep.subr.bf16.mxu0 %v2595
    %2637 = vmatpush1.bf16.msra.mxu0 %v2594
    %2638 = vmatprep.subr.bf16.mxu0 %v2593
    %2639 = vmatpush1.bf16.msra.mxu0 %v2592
    %2640 = vmatprep.subr.bf16.mxu0 0
    %2641 = vmatpush2.bf16.msra.mxu0 0
    %2642 = vmatprep.subr.bf16.mxu0 0
    %2643 = vmatpush2.bf16.msra.mxu0 0
    %2644 = vmatprep.subr.bf16.mxu0 0
    %2645 = vmatpush2.bf16.msra.mxu0 0
    %2646 = vmatprep.subr.bf16.mxu0 0
    %2647 = vmatpush2.bf16.msra.mxu0 0
    %2648 = vmatprep.subr.bf16.mxu0 0
    %2649 = vmatpush2.bf16.msra.mxu0 0
    %2650 = vmatprep.subr.bf16.mxu0 0
    %2651 = vmatpush2.bf16.msra.mxu0 0
    %2652 = vmatprep.subr.bf16.mxu0 0
    %2653 = vmatpush2.bf16.msra.mxu0 0
    %2654 = vmatprep.subr.bf16.mxu0 0
    %2655 = vmatpush2.bf16.msra.mxu0 0
    %2656 = vmatprep.mubr.bf16.mxu0 0
    %2657 = vmatmul.mubr.bf16.gmra.mxu0 %v2513
    %v2658 = vpop.f32.mrf.mxu0
    %v2659 = vadd.f32 %v2537, %v2658
    %v2660 = vpop.f32.mrf.mxu0
    %v2661 = vadd.f32 %v2541, %v2660
    %v2662 = vpop.f32.mrf.mxu0
    %v2663 = vadd.f32 %v2537, %v2662
    %v2664 = vpop.f32.mrf.mxu0
    %v2665 = vadd.f32 %v2541, %v2664
    %2666 = vdwg.mxu0
    %v2667 = vmul.f32 %v2659, 0.5
    %v2668 = vmul.f32 %v2661, 0.5
    %v2669 = vmul.f32 %v2663, 0.5
    %v2670 = vmul.f32 %v2665, 0.5
    %v2671 = vmul.f32 %v2659, 0.044715
    %v2672 = vmul.f32 %v2661, 0.044715
    %v2673 = vmul.f32 %v2663, 0.044715
    %v2674 = vmul.f32 %v2665, 0.044715
    %v2675 = vmul.f32 %v2671, %v2659
    %v2676 = vmul.f32 %v2672, %v2661
    %v2677 = vmul.f32 %v2673, %v2663
    %v2678 = vmul.f32 %v2674, %v2665
    %v2679 = vmul.f32 %v2675, %v2659
    %v2680 = vmul.f32 %v2676, %v2661
    %v2681 = vmul.f32 %v2677, %v2663
    %v2682 = vmul.f32 %v2678, %v2665
    %v2683 = vadd.f32 %v2659, %v2679
    %v2684 = vadd.f32 %v2661, %v2680
    %v2685 = vadd.f32 %v2663, %v2681
    %v2686 = vadd.f32 %v2665, %v2682
    %v2687 = vmul.f32 %v2683, 0.7978846
    %v2688 = vmul.f32 %v2684, 0.7978846
    %v2689 = vmul.f32 %v2685, 0.7978846
    %v2690 = vmul.f32 %v2686, 0.7978846
    %v2691 = vtanh.pop %v2687
    %v2692 = vtanh.pop %v2688
    %v2693 = vtanh.pop %v2689
    %v2694 = vtanh.pop %v2690
    %v2695 = vadd.f32 %v2691, 1.0
    %v2696 = vadd.f32 %v2692, 1.0
    %v2697 = vadd.f32 %v2693, 1.0
    %v2698 = vadd.f32 %v2694, 1.0
    %v2699 = vmul.f32 %v2667, %v2695
    %v2700 = vmul.f32 %v2668, %v2696
    %v2701 = vmul.f32 %v2669, %v2697
    %v2702 = vmul.f32 %v2670, %v2698
    %v2703 = vpack.c.bf16 %v2701, %v2699
    %v2704 = vpack.c.bf16 %v2702, %v2700
    %s2705 = scalar_lea.vmem %s6, 128
    %v2706 = vld [vmem:[%s2705] sm:$0xf]
    %v2707 = vld [vmem:[%s2705 + $0x4] sm:$0xf]
    %v2708 = vld [vmem:[%s2705 + $0x8] sm:$0xf]
    %v2709 = vld [vmem:[%s2705 + $0xc] sm:$0xf]
    %v2710 = vld [vmem:[%s2705 + $0x10] sm:$0xf]
    %v2711 = vld [vmem:[%s2705 + $0x14] sm:$0xf]
    %v2712 = vld [vmem:[%s2705 + $0x18] sm:$0xf]
    %v2713 = vld [vmem:[%s2705 + $0x1c] sm:$0xf]
    %v2714 = vld [vmem:[%s2705 + $0x20] sm:$0xf]
    %v2715 = vld [vmem:[%s2705 + $0x24] sm:$0xf]
    %v2716 = vld [vmem:[%s2705 + $0x28] sm:$0xf]
    %v2717 = vld [vmem:[%s2705 + $0x2c] sm:$0xf]
    %v2718 = vld [vmem:[%s2705 + $0x30] sm:$0xf]
    %v2719 = vld [vmem:[%s2705 + $0x34] sm:$0xf]
    %v2720 = vld [vmem:[%s2705 + $0x38] sm:$0xf]
    %v2721 = vld [vmem:[%s2705 + $0x3c] sm:$0xf]
    %v2722 = vld [vmem:[%s2705 + $0x40] sm:$0xf]
    %v2723 = vld [vmem:[%s2705 + $0x44] sm:$0xf]
    %v2724 = vld [vmem:[%s2705 + $0x48] sm:$0xf]
    %v2725 = vld [vmem:[%s2705 + $0x4c] sm:$0xf]
    %v2726 = vld [vmem:[%s2705 + $0x50] sm:$0xf]
    %v2727 = vld [vmem:[%s2705 + $0x54] sm:$0xf]
    %v2728 = vld [vmem:[%s2705 + $0x58] sm:$0xf]
    %v2729 = vld [vmem:[%s2705 + $0x5c] sm:$0xf]
    %v2730 = vld [vmem:[%s2705 + $0x60] sm:$0xf]
    %v2731 = vld [vmem:[%s2705 + $0x64] sm:$0xf]
    %v2732 = vld [vmem:[%s2705 + $0x68] sm:$0xf]
    %v2733 = vld [vmem:[%s2705 + $0x6c] sm:$0xf]
    %v2734 = vld [vmem:[%s2705 + $0x70] sm:$0xf]
    %v2735 = vld [vmem:[%s2705 + $0x74] sm:$0xf]
    %v2736 = vld [vmem:[%s2705 + $0x78] sm:$0xf]
    %v2737 = vld [vmem:[%s2705 + $0x7c] sm:$0xf]
    %v2738 = vld [vmem:[%s2 + $0x31] ss:$0 sm:$0xff]
    %v2771 = vunpack.c.l.b16 %v2706
    %v2772 = vunpack.c.l.b16 %v2707
    %v2773 = vunpack.c.l.b16 %v2708
    %v2774 = vunpack.c.l.b16 %v2709
    %v2775 = vunpack.c.l.b16 %v2710
    %v2776 = vunpack.c.l.b16 %v2711
    %v2777 = vunpack.c.l.b16 %v2712
    %v2778 = vunpack.c.l.b16 %v2713
    %v2779 = vunpack.c.l.b16 %v2714
    %v2780 = vunpack.c.l.b16 %v2715
    %v2781 = vunpack.c.l.b16 %v2716
    %v2782 = vunpack.c.l.b16 %v2717
    %v2783 = vunpack.c.l.b16 %v2718
    %v2784 = vunpack.c.l.b16 %v2719
    %v2785 = vunpack.c.l.b16 %v2720
    %v2786 = vunpack.c.l.b16 %v2721
    %v2787 = vunpack.c.l.b16 %v2722
    %v2788 = vunpack.c.l.b16 %v2723
    %v2789 = vunpack.c.l.b16 %v2724
    %v2790 = vunpack.c.l.b16 %v2725
    %v2791 = vunpack.c.l.b16 %v2726
    %v2792 = vunpack.c.l.b16 %v2727
    %v2793 = vunpack.c.l.b16 %v2728
    %v2794 = vunpack.c.l.b16 %v2729
    %v2795 = vunpack.c.l.b16 %v2730
    %v2796 = vunpack.c.l.b16 %v2731
    %v2797 = vunpack.c.l.b16 %v2732
    %v2798 = vunpack.c.l.b16 %v2733
    %v2799 = vunpack.c.l.b16 %v2734
    %v2800 = vunpack.c.l.b16 %v2735
    %v2801 = vunpack.c.l.b16 %v2736
    %v2802 = vunpack.c.l.b16 %v2737
    %v2803 = vpack.c.b16 %v2772, %v2771
    %v2804 = vpack.c.b16 %v2774, %v2773
    %v2805 = vpack.c.b16 %v2776, %v2775
    %v2806 = vpack.c.b16 %v2778, %v2777
    %v2807 = vpack.c.b16 %v2780, %v2779
    %v2808 = vpack.c.b16 %v2782, %v2781
    %v2809 = vpack.c.b16 %v2784, %v2783
    %v2810 = vpack.c.b16 %v2786, %v2785
    %v2811 = vpack.c.b16 %v2788, %v2787
    %v2812 = vpack.c.b16 %v2790, %v2789
    %v2813 = vpack.c.b16 %v2792, %v2791
    %v2814 = vpack.c.b16 %v2794, %v2793
    %v2815 = vpack.c.b16 %v2796, %v2795
    %v2816 = vpack.c.b16 %v2798, %v2797
    %v2817 = vpack.c.b16 %v2800, %v2799
    %v2818 = vpack.c.b16 %v2802, %v2801
    %2835 = vmatprep.subr.bf16.mxu0 0
    %2836 = vmatpush1.bf16.msra.mxu0 %v2810
    %2837 = vmatprep.subr.bf16.mxu0 0
    %2838 = vmatpush1.bf16.msra.mxu0 %v2809
    %2839 = vmatprep.subr.bf16.mxu0 0
    %2840 = vmatpush1.bf16.msra.mxu0 %v2808
    %2841 = vmatprep.subr.bf16.mxu0 0
    %2842 = vmatpush1.bf16.msra.mxu0 %v2807
    %2843 = vmatprep.subr.bf16.mxu0 0
    %2844 = vmatpush1.bf16.msra.mxu0 %v2806
    %2845 = vmatprep.subr.bf16.mxu0 0
    %2846 = vmatpush1.bf16.msra.mxu0 %v2805
    %2847 = vmatprep.subr.bf16.mxu0 0
    %2848 = vmatpush1.bf16.msra.mxu0 %v2804
    %2849 = vmatprep.subr.bf16.mxu0 0
    %2850 = vmatpush1.bf16.msra.mxu0 %v2803
    %2851 = vmatprep.subr.bf16.mxu0 0
    %2852 = vmatpush2.bf16.msra.mxu0 %v2818
    %2853 = vmatprep.subr.bf16.mxu0 0
    %2854 = vmatpush2.bf16.msra.mxu0 %v2817
    %2855 = vmatprep.subr.bf16.mxu0 0
    %2856 = vmatpush2.bf16.msra.mxu0 %v2816
    %2857 = vmatprep.subr.bf16.mxu0 0
    %2858 = vmatpush2.bf16.msra.mxu0 %v2815
    %2859 = vmatprep.subr.bf16.mxu0 0
    %2860 = vmatpush2.bf16.msra.mxu0 %v2814
    %2861 = vmatprep.subr.bf16.mxu0 0
    %2862 = vmatpush2.bf16.msra.mxu0 %v2813
    %2863 = vmatprep.subr.bf16.mxu0 0
    %2864 = vmatpush2.bf16.msra.mxu0 %v2812
    %2865 = vmatprep.subr.bf16.mxu0 0
    %2866 = vmatpush2.bf16.msra.mxu0 %v2811
    %2867 = vmatprep.mubr.bf16.mxu0 %v2704
    %2868 = vmatmul.mubr.bf16.gmra.mxu0 %v2703
    %v2869 = vpop.f32.mrf.mxu0
    %v2870 = vadd.f32 %v2738, %v2869
    %v2871 = vpop.f32.mrf.mxu0
    %v2872 = vpop.f32.mrf.mxu0
    %v2873 = vadd.f32 %v2738, %v2872
    %v2874 = vpop.f32.mrf.mxu0
    %2875 = vdwg.mxu0
    %v2876 = vadd.f32 %v2870, %v2511
    %v2877 = vadd.f32 %v2873, %v2512
    %v2878 = vld [vmem:[%s2 + $0x32] ss:$0 sm:$0xff]
    %v2879 = vld [vmem:[%s2 + $0x33] ss:$0 sm:$0xff]
    %2880 = vadd.xlane.f32.xlu0 %v2876
    %v2881 = vpop.xlane.xlu0 %2880
    %2882 = vadd.xlane.f32.xlu0 %v2877
    %v2883 = vpop.xlane.xlu0 %2882
    %v2884 = vmul.f32 %v2881, %v39
    %v2885 = vmul.f32 %v2883, %v39
    %v2886 = vsub.f32 %v2876, %v2884
    %v2887 = vsub.f32 %v2877, %v2885
    %v2888 = vmul.f32 %v2886, %v2886
    %v2889 = vmul.f32 %v2887, %v2887
    %2890 = vadd.xlane.f32.xlu0 %v2888
    %v2891 = vpop.xlane.xlu0 %2890
    %2892 = vadd.xlane.f32.xlu0 %v2889
    %v2893 = vpop.xlane.xlu0 %2892
    %v2894 = vmul.f32 %v2891, %v39
    %v2895 = vmul.f32 %v2893, %v39
    %v2896 = vadd.f32 %v2894, 1e-12
    %v2897 = vadd.f32 %v2895, 1e-12
    %v2898 = vrsqrt.pop %v2896
    %v2899 = vrsqrt.pop %v2897
    %v2900 = vmul.f32 %v2886, %v2898
    %v2901 = vmul.f32 %v2887, %v2899
    %v2902 = vmul.f32 %v2900, %v2878
    %v2903 = vmul.f32 %v2901, %v2878
    %v2904 = vadd.f32 %v2902, %v2879
    %v2905 = vadd.f32 %v2903, %v2879
    %v2907 = vrot.slane %v2905, 7
    %vm2909 = vcmask 1040384
    %v2910 = vsel %vm2909, %v2904, %v2907
    %v2911 = vpack.c.bf16 %v2910, %v2910
    %v2912 = vld [vmem:[%s7] sm:$0xf]
    %v2913 = vld [vmem:[%s7 + $0x8] sm:$0xf]
    %v2914 = vld [vmem:[%s7 + $0x10] sm:$0xf]
    %v2915 = vld [vmem:[%s7 + $0x18] sm:$0xf]
    %v2916 = vld [vmem:[%s7 + $0x20] sm:$0xf]
    %v2917 = vld [vmem:[%s7 + $0x28] sm:$0xf]
    %v2918 = vld [vmem:[%s7 + $0x30] sm:$0xf]
    %v2919 = vld [vmem:[%s7 + $0x38] sm:$0xf]
    %v2920 = vld [vmem:[%s7 + $0x40] sm:$0xf]
    %v2921 = vld [vmem:[%s7 + $0x48] sm:$0xf]
    %v2922 = vld [vmem:[%s7 + $0x50] sm:$0xf]
    %v2923 = vld [vmem:[%s7 + $0x58] sm:$0xf]
    %v2924 = vld [vmem:[%s7 + $0x60] sm:$0xf]
    %v2925 = vld [vmem:[%s7 + $0x68] sm:$0xf]
    %v2926 = vld [vmem:[%s7 + $0x70] sm:$0xf]
    %v2927 = vld [vmem:[%s7 + $0x78] sm:$0xf]
    %v2928 = vld [vmem:[%s2 + $0x2] ss:$0 sm:$0xff]
    %v2945 = vunpack.c.l.b16 %v2912
    %v2946 = vunpack.c.l.b16 %v2913
    %v2947 = vunpack.c.l.b16 %v2914
    %v2948 = vunpack.c.l.b16 %v2915
    %v2949 = vunpack.c.l.b16 %v2916
    %v2950 = vunpack.c.l.b16 %v2917
    %v2951 = vunpack.c.l.b16 %v2918
    %v2952 = vunpack.c.l.b16 %v2919
    %v2953 = vunpack.c.l.b16 %v2920
    %v2954 = vunpack.c.l.b16 %v2921
    %v2955 = vunpack.c.l.b16 %v2922
    %v2956 = vunpack.c.l.b16 %v2923
    %v2957 = vunpack.c.l.b16 %v2924
    %v2958 = vunpack.c.l.b16 %v2925
    %v2959 = vunpack.c.l.b16 %v2926
    %v2960 = vunpack.c.l.b16 %v2927
    %v2961 = vpack.c.b16 %v2946, %v2945
    %v2962 = vpack.c.b16 %v2948, %v2947
    %v2963 = vpack.c.b16 %v2950, %v2949
    %v2964 = vpack.c.b16 %v2952, %v2951
    %v2965 = vpack.c.b16 %v2954, %v2953
    %v2966 = vpack.c.b16 %v2956, %v2955
    %v2967 = vpack.c.b16 %v2958, %v2957
    %v2968 = vpack.c.b16 %v2960, %v2959
    %2977 = vmatprep.subr.bf16.mxu0 0
    %2978 = vmatpush1.bf16.msra.mxu0 %v2968
    %2979 = vmatprep.subr.bf16.mxu0 0
    %2980 = vmatpush1.bf16.msra.mxu0 %v2967
    %2981 = vmatprep.subr.bf16.mxu0 0
    %2982 = vmatpush1.bf16.msra.mxu0 %v2966
    %2983 = vmatprep.subr.bf16.mxu0 0
    %2984 = vmatpush1.bf16.msra.mxu0 %v2965
    %2985 = vmatprep.subr.bf16.mxu0 0
    %2986 = vmatpush1.bf16.msra.mxu0 %v2964
    %2987 = vmatprep.subr.bf16.mxu0 0
    %2988 = vmatpush1.bf16.msra.mxu0 %v2963
    %2989 = vmatprep.subr.bf16.mxu0 0
    %2990 = vmatpush1.bf16.msra.mxu0 %v2962
    %2991 = vmatprep.subr.bf16.mxu0 0
    %2992 = vmatpush1.bf16.msra.mxu0 %v2961
    %2993 = vmatprep.subr.bf16.mxu0 0
    %2994 = vmatpush2.bf16.msra.mxu0 0
    %2995 = vmatprep.subr.bf16.mxu0 0
    %2996 = vmatpush2.bf16.msra.mxu0 0
    %2997 = vmatprep.subr.bf16.mxu0 0
    %2998 = vmatpush2.bf16.msra.mxu0 0
    %2999 = vmatprep.subr.bf16.mxu0 0
    %3000 = vmatpush2.bf16.msra.mxu0 0
    %3001 = vmatprep.subr.bf16.mxu0 0
    %3002 = vmatpush2.bf16.msra.mxu0 0
    %3003 = vmatprep.subr.bf16.mxu0 0
    %3004 = vmatpush2.bf16.msra.mxu0 0
    %3005 = vmatprep.subr.bf16.mxu0 0
    %3006 = vmatpush2.bf16.msra.mxu0 0
    %3007 = vmatprep.subr.bf16.mxu0 0
    %3008 = vmatpush2.bf16.msra.mxu0 0
    %3009 = vmatprep.mubr.bf16.mxu0 0
    %3010 = vmatmul.mubr.bf16.gmra.mxu0 %v2911
    %v3011 = vpop.f32.mrf.mxu0
    %v3012 = vadd.f32 %v2928, %v3011
    %v3013 = vpop.f32.mrf.mxu0
    %v3014 = vpop.f32.mrf.mxu0
    %v3015 = vpop.f32.mrf.mxu0
    %3016 = vdwg.mxu0
    %v3017 = vmax.f32 %v3012, 0.0
    %v3018 = vpack.c.bf16 %v3017, %v3017
    %v3019 = vld [vmem:[%s7 + $0x4] sm:$0xf]
    %v3020 = vld [vmem:[%s7 + $0xc] sm:$0xf]
    %v3021 = vld [vmem:[%s7 + $0x14] sm:$0xf]
    %v3022 = vld [vmem:[%s7 + $0x1c] sm:$0xf]
    %v3023 = vld [vmem:[%s7 + $0x24] sm:$0xf]
    %v3024 = vld [vmem:[%s7 + $0x2c] sm:$0xf]
    %v3025 = vld [vmem:[%s7 + $0x34] sm:$0xf]
    %v3026 = vld [vmem:[%s7 + $0x3c] sm:$0xf]
    %v3027 = vld [vmem:[%s7 + $0x44] sm:$0xf]
    %v3028 = vld [vmem:[%s7 + $0x4c] sm:$0xf]
    %v3029 = vld [vmem:[%s7 + $0x54] sm:$0xf]
    %v3030 = vld [vmem:[%s7 + $0x5c] sm:$0xf]
    %v3031 = vld [vmem:[%s7 + $0x64] sm:$0xf]
    %v3032 = vld [vmem:[%s7 + $0x6c] sm:$0xf]
    %v3033 = vld [vmem:[%s7 + $0x74] sm:$0xf]
    %v3034 = vld [vmem:[%s7 + $0x7c] sm:$0xf]
    %v3035 = vld [vmem:[%s2 + $0x3] ss:$0 sm:$0xff]
    %v3052 = vunpack.c.l.b16 %v3019
    %v3053 = vunpack.c.l.b16 %v3020
    %v3054 = vunpack.c.l.b16 %v3021
    %v3055 = vunpack.c.l.b16 %v3022
    %v3056 = vunpack.c.l.b16 %v3023
    %v3057 = vunpack.c.l.b16 %v3024
    %v3058 = vunpack.c.l.b16 %v3025
    %v3059 = vunpack.c.l.b16 %v3026
    %v3060 = vunpack.c.l.b16 %v3027
    %v3061 = vunpack.c.l.b16 %v3028
    %v3062 = vunpack.c.l.b16 %v3029
    %v3063 = vunpack.c.l.b16 %v3030
    %v3064 = vunpack.c.l.b16 %v3031
    %v3065 = vunpack.c.l.b16 %v3032
    %v3066 = vunpack.c.l.b16 %v3033
    %v3067 = vunpack.c.l.b16 %v3034
    %v3068 = vpack.c.b16 %v3053, %v3052
    %v3069 = vpack.c.b16 %v3055, %v3054
    %v3070 = vpack.c.b16 %v3057, %v3056
    %v3071 = vpack.c.b16 %v3059, %v3058
    %v3072 = vpack.c.b16 %v3061, %v3060
    %v3073 = vpack.c.b16 %v3063, %v3062
    %v3074 = vpack.c.b16 %v3065, %v3064
    %v3075 = vpack.c.b16 %v3067, %v3066
    %3084 = vmatprep.subr.bf16.mxu0 0
    %3085 = vmatpush1.bf16.msra.mxu0 %v3075
    %3086 = vmatprep.subr.bf16.mxu0 0
    %3087 = vmatpush1.bf16.msra.mxu0 %v3074
    %3088 = vmatprep.subr.bf16.mxu0 0
    %3089 = vmatpush1.bf16.msra.mxu0 %v3073
    %3090 = vmatprep.subr.bf16.mxu0 0
    %3091 = vmatpush1.bf16.msra.mxu0 %v3072
    %3092 = vmatprep.subr.bf16.mxu0 0
    %3093 = vmatpush1.bf16.msra.mxu0 %v3071
    %3094 = vmatprep.subr.bf16.mxu0 0
    %3095 = vmatpush1.bf16.msra.mxu0 %v3070
    %3096 = vmatprep.subr.bf16.mxu0 0
    %3097 = vmatpush1.bf16.msra.mxu0 %v3069
    %3098 = vmatprep.subr.bf16.mxu0 0
    %3099 = vmatpush1.bf16.msra.mxu0 %v3068
    %3100 = vmatprep.subr.bf16.mxu0 0
    %3101 = vmatpush2.bf16.msra.mxu0 0
    %3102 = vmatprep.subr.bf16.mxu0 0
    %3103 = vmatpush2.bf16.msra.mxu0 0
    %3104 = vmatprep.subr.bf16.mxu0 0
    %3105 = vmatpush2.bf16.msra.mxu0 0
    %3106 = vmatprep.subr.bf16.mxu0 0
    %3107 = vmatpush2.bf16.msra.mxu0 0
    %3108 = vmatprep.subr.bf16.mxu0 0
    %3109 = vmatpush2.bf16.msra.mxu0 0
    %3110 = vmatprep.subr.bf16.mxu0 0
    %3111 = vmatpush2.bf16.msra.mxu0 0
    %3112 = vmatprep.subr.bf16.mxu0 0
    %3113 = vmatpush2.bf16.msra.mxu0 0
    %3114 = vmatprep.subr.bf16.mxu0 0
    %3115 = vmatpush2.bf16.msra.mxu0 0
    %3116 = vmatprep.mubr.bf16.mxu0 0
    %3117 = vmatmul.mubr.bf16.gmra.mxu0 %v3018
    %v3118 = vpop.f32.mrf.mxu0
    %v3119 = vadd.f32 %v3035, %v3118
    %v3120 = vpop.f32.mrf.mxu0
    %v3121 = vpop.f32.mrf.mxu0
    %v3122 = vpop.f32.mrf.mxu0
    %3123 = vdwg.mxu0
    %3124 = vst [vmem:[#allocation2] sm:$0x3] %v3119
    // Predicated region
    $region34: #{model_forward.1} parent=1 // pred_check
      _
    $region35: #{model_forward.1} parent=1 // pred_check_branch
      %3126 = sbr.rel (0) target = $region37
    $region36: #{model_forward.1} parent=1 // pred_region
      %s3128 = ssub.s32 32, 32
      %3129 = vsyncadd [#allocation3], %s3128
      %s3131 = sshll.u32 [#allocation2], 4
      %s3132 = int_to_ptr.vmem [resolvable:$true] %s3131
      %3134 = dma.vmem_to_hbm [thread:$0]  %s3132, 32, %s8, [#allocation3]
    $region37: #{model_forward.1} parent=1 // pred_fallthru
      _
    // Predicated region
    $region38: #{model_forward.1} parent=1 // pred_check
      _
    $region39: #{model_forward.1} parent=1 // pred_check_branch
      %3136 = sbr.rel (0) target = $region41
    $region40: #{model_forward.1} parent=1 // pred_region
      %3137 = dma.done [#allocation3], 32
    $region41: #{model_forward.1} parent=1 // pred_fallthru
      _
    %3138 = vsyncpa [#allocation3], 1

</llo_original>
